<compile_context>
chip_gen: v7x
topology: tpu7x:2x2x1
jax: 0.10.0
libtpu: 0.0.40
codegen_flags: <defaults>
</compile_context>

<pallas_src>
import functools

import jax
import jax.numpy as jnp
from jax.experimental import pallas as pl
from jax.experimental.pallas import tpu as pltpu


# ----------------------------------------------------------------------------
# Fused Pallas kernel: 4x SPP((1,2)) pooling + 4 linear heads, one batch element
# ----------------------------------------------------------------------------
def _fused_kernel(p1_ref, p2_ref, p3_ref, w_ref, b_ref, o_ref, *, windows):
    """One batch element.

    p1_ref : (1, 24, W, C)  rows 0:24 of p1 (the 'head' window), channels-last
    p2_ref : (1, H2, W, C)  full p2; 'mid' (4:20) and 'low' (16:H2) sliced in-kernel
    p3_ref : (1, H3, W, C)  full p3
    w_ref  : (4*5C, NPAD)   block-diagonal head weight, rows in kernel (block) SPP order
    b_ref  : (1, NPAD)      concatenated biases, zero-padded
    o_ref  : (1, 1, NPAD)   padded logits for this batch element
    """
    width = p1_ref.shape[2]
    w_half = width // 2

    def window_sum(ref, h0, h1, w0, w1):
        # Sum over an (h, w) window; C stays on the 128-lane axis the whole time, so the
        # reduction is VPU adds across rows + a single sublane reduce (no lane XLU work).
        x = ref[0, h0:h1, w0:w1, :].astype(jnp.float32)            # (h, w, C)
        return jnp.sum(jnp.sum(x, axis=0), axis=0, keepdims=True)  # (1, C)

    def spp(ref, h0, h1):
        # PyramidPooling((1, 2)) on rows [h0:h1), emitted in "block" order
        # [g | q00 | q01 | q10 | q11]; weight rows were pre-permuted to match.
        h = h1 - h0
        hm = h0 + h // 2
        s00 = window_sum(ref, h0, hm, 0, w_half)
        s01 = window_sum(ref, h0, hm, w_half, width)
        s10 = window_sum(ref, hm, h1, 0, w_half)
        s11 = window_sum(ref, hm, h1, w_half, width)
        inv_q = 1.0 / ((h // 2) * w_half)
        inv_g = 1.0 / (h * width)
        g = (s00 + s01 + s10 + s11) * inv_g   # 1x1 global mean = avg of quadrant sums
        return jnp.concatenate(
            [g, s00 * inv_q, s01 * inv_q, s10 * inv_q, s11 * inv_q], axis=1)  # (1, 5C)

    (hh0, hh1), (hm0, hm1), (hl0, hl1), (ha0, ha1) = windows
    feat = jnp.concatenate(
        [
            spp(p1_ref, hh0, hh1),   # head : p1[:, :, :24, :]
            spp(p2_ref, hm0, hm1),   # mid  : p2[:, :, 4:20, :]
            spp(p2_ref, hl0, hl1),   # low  : p2[:, :, 16:, :]
            spp(p3_ref, ha0, ha1),   # all  : p3
        ],
        axis=1,                      # (1, 4*5C) = (1, 5120), all chunks 128-lane aligned
    )
    # Single MXU matmul for all four heads; NPAD=128 keeps the store unmasked/full-lane.
    o_ref[0] = (jnp.dot(feat, w_ref[...], preferred_element_type=jnp.float32)
                + b_ref[...])


# ----------------------------------------------------------------------------
# Wrapper: one pallas_call for the whole classifier forward
# ----------------------------------------------------------------------------
def sspnet_classifier_forward(feature, w_big, b_big, nattr):
    """Forward of LinearClassifier('SSPNet', nattr=26, bn=False, pool='avg') (eval mode)."""
    p1, p2, p3 = feature
    B, C, H1, W = p1.shape
    H2, H3 = p2.shape[2], p3.shape[2]
    assert C % 128 == 0 and W % 8 == 0, "lane-dense layout needs C%128==0, W%8==0"
    assert H1 >= 24 and H2 == 24, "block() windows assume p1 H>=24, p2 H==24"
    HEAD_H = 24
    # (h0, h1) row windows, applied to (p1-block, p2, p2, p3) respectively.
    windows = ((0, HEAD_H), (4, 20), (16, H2), (0, H3))
    for (a, b) in windows:
        assert (b - a) % 2 == 0 and W % 2 == 0, "2x2 adaptive pooling needs even H, W"

    # Channels-last presentation so C rides the 128-lane axis inside the kernel.
    p1_t = jnp.transpose(p1, (0, 2, 3, 1))   # (B, H1, W, C)
    p2_t = jnp.transpose(p2, (0, 2, 3, 1))   # (B, H2, W, C)
    p3_t = jnp.transpose(p3, (0, 2, 3, 1))   # (B, H3, W, C)

    n_pad = w_big.shape[1]
    kernel = functools.partial(_fused_kernel, windows=windows)
    out = pl.pallas_call(
        kernel,
        out_shape=jax.ShapeDtypeStruct((B, 1, n_pad), jnp.float32),
        grid=(B,),
        in_specs=[
            # Only rows [0, 24) of p1 are ever used -> DMA just that window per step.
            pl.BlockSpec((1, HEAD_H, W, C), lambda b: (b, 0, 0, 0)),
            pl.BlockSpec((1, H2, W, C), lambda b: (b, 0, 0, 0)),
            pl.BlockSpec((1, H3, W, C), lambda b: (b, 0, 0, 0)),
            # Grid-invariant weight/bias: constant block index -> fetched once, kept in VMEM.
            pl.BlockSpec((4 * 5 * C, n_pad), lambda b: (0, 0)),
            pl.BlockSpec((1, n_pad), lambda b: (0, 0)),
        ],
        out_specs=pl.BlockSpec((1, 1, n_pad), lambda b: (b, 0, 0)),
        compiler_params=pltpu.CompilerParams(
            dimension_semantics=("parallel",)),   # v7x megacore: batch split across TCs
    )(p1_t, p2_t, p3_t, w_big, b_big)

    x_cls = out[:, 0, :nattr]                     # drop lane padding -> (B, 26)
    return [x_cls], feature


# ----------------------------------------------------------------------------
# Parameter setup (PyTorch-convention params -> fused kernel params)
# ----------------------------------------------------------------------------
def block(x1, x2, x3, cls):
    """Exact reproduction of the PyTorch block() slicing (used by the reference path)."""
    if cls == 'head':
        return x1[:, :, :24, :], x2[:, :, :12, :], x3[:, :, :6, :]
    if cls == 'mid':
        return x1[:, :, 8:40, :], x2[:, :, 4:20, :], x3[:, :, 2:10, :]
    if cls == 'low':
        return x1[:, :, 32:, :], x2[:, :, 16:, :], x3[:, :, 8:, :]
    return x1, x2, x3


def init_params(key, c_in=1280):
    """Deterministic synthetic init mimicking nn.Linear default (uniform +-1/sqrt(in))."""
    bound = 1.0 / (c_in ** 0.5)
    keys = jax.random.split(key, 8)

    def lin(kw, kb, n_out):
        w = jax.random.uniform(kw, (c_in, n_out), jnp.float32, -bound, bound)
        b = jax.random.uniform(kb, (1, n_out), jnp.float32, -bound, bound)
        return w, b

    w_head, b_head = lin(keys[0], keys[1], 2)
    w_mid, b_mid = lin(keys[2], keys[3], 7)
    w_low, b_low = lin(keys[4], keys[5], 5)
    w_all, b_all = lin(keys[6], keys[7], 12)
    return dict(w_head=w_head, b_head=b_head, w_mid=w_mid, b_mid=b_mid,
                w_low=w_low, b_low=b_low, w_all=w_all, b_all=b_all)


def prepare_fused_params(params, c=256, n_pad=128):
    """Fuse the 4 heads into one block-diagonal (4*5C, n_pad) weight + (1, n_pad) bias.

    Weight rows are permuted from PyTorch SPP feature order
        [global(C) | per-channel interleaved 2x2 quads (4C)]
    to the kernel's block order
        [global(C) | q00(C) | q01(C) | q10(C) | q11(C)]
    so the kernel never has to lane-interleave the pooled features.
    NOTE: n_pad=128 fills a v5e MXU tile; use 256 to fill a whole v6e/v7x MXU tile.
    """
    feat_per_head = 5 * c
    ch = jnp.arange(c)
    perm = jnp.concatenate([ch] + [c + 4 * ch + j for j in range(4)])   # (5C,)

    heads = ("head", "mid", "low", "all")                # torch.cat order
    n_outs = [params["w_" + h].shape[1] for h in heads]  # [2, 7, 5, 12]
    nattr = sum(n_outs)
    assert nattr <= n_pad

    w_big = jnp.zeros((len(heads) * feat_per_head, n_pad), jnp.float32)
    b_big = jnp.zeros((1, n_pad), jnp.float32)
    col = 0
    for i, h in enumerate(heads):
        n = n_outs[i]
        r0 = i * feat_per_head
        w_big = w_big.at[r0:r0 + feat_per_head, col:col + n].set(params["w_" + h][perm, :])
        b_big = b_big.at[:, col:col + n].set(params["b_" + h])
        col += n
    return w_big, b_big, nattr


# ----------------------------------------------------------------------------
# Pure-JAX reference (PyTorch ordering / original params) for validation
# ----------------------------------------------------------------------------
def _spp_ref(x):
    B, C, H, W = x.shape
    g = x.mean(axis=(2, 3))
    q = x.reshape(B, C, 2, H // 2, 2, W // 2).mean(axis=(3, 5)).reshape(B, 4 * C)
    return jnp.concatenate([g, q], axis=1)


def _forward_ref(feature, params):
    p1, p2, p3 = feature
    fh, _, _ = block(p1, p2, p3, 'head')
    _, fm, _ = block(p1, p2, p3, 'mid')
    _, fl, _ = block(p1, p2, p3, 'low')

    def lin(x, w, b):
        return x @ w + b

    yh = lin(_spp_ref(fh), params["w_head"], params["b_head"])
    ym = lin(_spp_ref(fm), params["w_mid"], params["b_mid"])
    yl = lin(_spp_ref(fl), params["w_low"], params["b_low"])
    ya = lin(_spp_ref(p3), params["w_all"], params["b_all"])
    return jnp.concatenate([yh, ym, yl, ya], axis=1)


if __name__ == "__main__":
    key = jax.random.PRNGKey(0)
    k1, k2, k3, kp = jax.random.split(key, 4)
    B, C, W = 2, 256, 16
    # Feature pyramid implied by block(): p1 H=48, p2 H=24, p3 H=12; C=256 so SPP -> 1280.
    p1 = jax.random.normal(k1, (B, C, 48, W), jnp.float32)
    p2 = jax.random.normal(k2, (B, C, 24, W), jnp.float32)
    p3 = jax.random.normal(k3, (B, C, 12, W), jnp.float32)

    params = init_params(kp, c_in=5 * C)
    w_big, b_big, nattr = prepare_fused_params(params, c=C, n_pad=128)

    fwd = jax.jit(functools.partial(sspnet_classifier_forward, nattr=nattr))
    logits_list, feats = fwd([p1, p2, p3], w_big, b_big)
    x_cls = jax.block_until_ready(logits_list[0])
    assert x_cls.shape == (B, 26), x_cls.shape

    ref = _forward_ref([p1, p2, p3], params)
    max_err = float(jnp.abs(x_cls - ref).max())
    assert jnp.allclose(x_cls, ref, atol=1e-3, rtol=1e-3), max_err

    print("KERNEL_OK")
</pallas_src>

<mosaic_0001>
module attributes {stable_mosaic.version = 11 : i64} {
  func.func @_fused_kernel(%arg0: i32, %arg1: memref<1x24x16x256xf32, #tpu.memory_space<vmem>>, %arg2: memref<1x24x16x256xf32, #tpu.memory_space<vmem>>, %arg3: memref<1x12x16x256xf32, #tpu.memory_space<vmem>>, %arg4: memref<5120x128xf32, #tpu.memory_space<vmem>>, %arg5: memref<1x128xf32, #tpu.memory_space<vmem>>, %arg6: memref<1x1x128xf32, #tpu.memory_space<vmem>>) attributes {dimension_semantics = [#tpu.dimension_semantics<parallel>], iteration_bounds = array<i64: 2>, scalar_prefetch = 0 : i64, scratch_operands = 0 : i64, tpu.core_type = #tpu.core_type<tc>, window_params = [{transform_indices = @transform_0, window_bounds = array<i64: 1, 24, 16, 256>}, {transform_indices = @transform_1, window_bounds = array<i64: 1, 24, 16, 256>}, {transform_indices = @transform_2, window_bounds = array<i64: 1, 12, 16, 256>}, {pipeline_mode = #tpu.pipeline_mode<synchronous>, transform_indices = @transform_3, window_bounds = array<i64: 5120, 128>}, {pipeline_mode = #tpu.pipeline_mode<synchronous>, transform_indices = @transform_4, window_bounds = array<i64: 1, 128>}, {transform_indices = @transform_5, window_bounds = array<i64: 1, 1, 128>}]} {
    %c0 = arith.constant 0 : index
    %c0_0 = arith.constant 0 : index
    %c0_1 = arith.constant 0 : index
    %c0_2 = arith.constant 0 : index
    %0 = vector.load %arg1[%c0, %c0_0, %c0_1, %c0_2] : memref<1x24x16x256xf32, #tpu.memory_space<vmem>>, vector<1x12x8x256xf32>
    %1 = vector.shape_cast %0 : vector<1x12x8x256xf32> to vector<12x8x256xf32>
    %cst = arith.constant dense<0.000000e+00> : vector<8x256xf32>
    %2 = vector.multi_reduction <add>, %1, %cst [0] : vector<12x8x256xf32> to vector<8x256xf32>
    %cst_3 = arith.constant dense<0.000000e+00> : vector<256xf32>
    %3 = vector.multi_reduction <add>, %2, %cst_3 [0] : vector<8x256xf32> to vector<256xf32>
    %4 = vector.shape_cast %3 : vector<256xf32> to vector<1x256xf32>
    %c0_4 = arith.constant 0 : index
    %c0_5 = arith.constant 0 : index
    %c8 = arith.constant 8 : index
    %c0_6 = arith.constant 0 : index
    %5 = vector.load %arg1[%c0_4, %c0_5, %c8, %c0_6] : memref<1x24x16x256xf32, #tpu.memory_space<vmem>>, vector<1x12x8x256xf32>
    %6 = vector.shape_cast %5 : vector<1x12x8x256xf32> to vector<12x8x256xf32>
    %cst_7 = arith.constant dense<0.000000e+00> : vector<8x256xf32>
    %7 = vector.multi_reduction <add>, %6, %cst_7 [0] : vector<12x8x256xf32> to vector<8x256xf32>
    %cst_8 = arith.constant dense<0.000000e+00> : vector<256xf32>
    %8 = vector.multi_reduction <add>, %7, %cst_8 [0] : vector<8x256xf32> to vector<256xf32>
    %9 = vector.shape_cast %8 : vector<256xf32> to vector<1x256xf32>
    %c0_9 = arith.constant 0 : index
    %c12 = arith.constant 12 : index
    %c0_10 = arith.constant 0 : index
    %c0_11 = arith.constant 0 : index
    %10 = vector.load %arg1[%c0_9, %c12, %c0_10, %c0_11] : memref<1x24x16x256xf32, #tpu.memory_space<vmem>>, vector<1x12x8x256xf32>
    %11 = vector.shape_cast %10 : vector<1x12x8x256xf32> to vector<12x8x256xf32>
    %cst_12 = arith.constant dense<0.000000e+00> : vector<8x256xf32>
    %12 = vector.multi_reduction <add>, %11, %cst_12 [0] : vector<12x8x256xf32> to vector<8x256xf32>
    %cst_13 = arith.constant dense<0.000000e+00> : vector<256xf32>
    %13 = vector.multi_reduction <add>, %12, %cst_13 [0] : vector<8x256xf32> to vector<256xf32>
    %14 = vector.shape_cast %13 : vector<256xf32> to vector<1x256xf32>
    %c0_14 = arith.constant 0 : index
    %c12_15 = arith.constant 12 : index
    %c8_16 = arith.constant 8 : index
    %c0_17 = arith.constant 0 : index
    %15 = vector.load %arg1[%c0_14, %c12_15, %c8_16, %c0_17] : memref<1x24x16x256xf32, #tpu.memory_space<vmem>>, vector<1x12x8x256xf32>
    %16 = vector.shape_cast %15 : vector<1x12x8x256xf32> to vector<12x8x256xf32>
    %cst_18 = arith.constant dense<0.000000e+00> : vector<8x256xf32>
    %17 = vector.multi_reduction <add>, %16, %cst_18 [0] : vector<12x8x256xf32> to vector<8x256xf32>
    %cst_19 = arith.constant dense<0.000000e+00> : vector<256xf32>
    %18 = vector.multi_reduction <add>, %17, %cst_19 [0] : vector<8x256xf32> to vector<256xf32>
    %19 = vector.shape_cast %18 : vector<256xf32> to vector<1x256xf32>
    %20 = arith.addf %4, %9 : vector<1x256xf32>
    %21 = arith.addf %20, %14 : vector<1x256xf32>
    %22 = arith.addf %21, %19 : vector<1x256xf32>
    %cst_20 = arith.constant 0.00260416674 : f32
    %23 = vector.broadcast %cst_20 : f32 to vector<1x256xf32>
    %24 = arith.mulf %22, %23 : vector<1x256xf32>
    %cst_21 = arith.constant 0.010416667 : f32
    %25 = vector.broadcast %cst_21 : f32 to vector<1x256xf32>
    %26 = arith.mulf %4, %25 : vector<1x256xf32>
    %cst_22 = arith.constant 0.010416667 : f32
    %27 = vector.broadcast %cst_22 : f32 to vector<1x256xf32>
    %28 = arith.mulf %9, %27 : vector<1x256xf32>
    %cst_23 = arith.constant 0.010416667 : f32
    %29 = vector.broadcast %cst_23 : f32 to vector<1x256xf32>
    %30 = arith.mulf %14, %29 : vector<1x256xf32>
    %cst_24 = arith.constant 0.010416667 : f32
    %31 = vector.broadcast %cst_24 : f32 to vector<1x256xf32>
    %32 = arith.mulf %19, %31 : vector<1x256xf32>
    %33 = tpu.concatenate %24, %26, %28, %30, %32 in 1 : vector<1x256xf32>, vector<1x256xf32>, vector<1x256xf32>, vector<1x256xf32>, vector<1x256xf32> -> vector<1x1280xf32>
    %c0_25 = arith.constant 0 : index
    %c4 = arith.constant 4 : index
    %c0_26 = arith.constant 0 : index
    %c0_27 = arith.constant 0 : index
    %34 = vector.load %arg2[%c0_25, %c4, %c0_26, %c0_27] : memref<1x24x16x256xf32, #tpu.memory_space<vmem>>, vector<1x8x8x256xf32>
    %35 = vector.shape_cast %34 : vector<1x8x8x256xf32> to vector<8x8x256xf32>
    %cst_28 = arith.constant dense<0.000000e+00> : vector<8x256xf32>
    %36 = vector.multi_reduction <add>, %35, %cst_28 [0] : vector<8x8x256xf32> to vector<8x256xf32>
    %cst_29 = arith.constant dense<0.000000e+00> : vector<256xf32>
    %37 = vector.multi_reduction <add>, %36, %cst_29 [0] : vector<8x256xf32> to vector<256xf32>
    %38 = vector.shape_cast %37 : vector<256xf32> to vector<1x256xf32>
    %c0_30 = arith.constant 0 : index
    %c4_31 = arith.constant 4 : index
    %c8_32 = arith.constant 8 : index
    %c0_33 = arith.constant 0 : index
    %39 = vector.load %arg2[%c0_30, %c4_31, %c8_32, %c0_33] : memref<1x24x16x256xf32, #tpu.memory_space<vmem>>, vector<1x8x8x256xf32>
    %40 = vector.shape_cast %39 : vector<1x8x8x256xf32> to vector<8x8x256xf32>
    %cst_34 = arith.constant dense<0.000000e+00> : vector<8x256xf32>
    %41 = vector.multi_reduction <add>, %40, %cst_34 [0] : vector<8x8x256xf32> to vector<8x256xf32>
    %cst_35 = arith.constant dense<0.000000e+00> : vector<256xf32>
    %42 = vector.multi_reduction <add>, %41, %cst_35 [0] : vector<8x256xf32> to vector<256xf32>
    %43 = vector.shape_cast %42 : vector<256xf32> to vector<1x256xf32>
    %c0_36 = arith.constant 0 : index
    %c12_37 = arith.constant 12 : index
    %c0_38 = arith.constant 0 : index
    %c0_39 = arith.constant 0 : index
    %44 = vector.load %arg2[%c0_36, %c12_37, %c0_38, %c0_39] : memref<1x24x16x256xf32, #tpu.memory_space<vmem>>, vector<1x8x8x256xf32>
    %45 = vector.shape_cast %44 : vector<1x8x8x256xf32> to vector<8x8x256xf32>
    %cst_40 = arith.constant dense<0.000000e+00> : vector<8x256xf32>
    %46 = vector.multi_reduction <add>, %45, %cst_40 [0] : vector<8x8x256xf32> to vector<8x256xf32>
    %cst_41 = arith.constant dense<0.000000e+00> : vector<256xf32>
    %47 = vector.multi_reduction <add>, %46, %cst_41 [0] : vector<8x256xf32> to vector<256xf32>
    %48 = vector.shape_cast %47 : vector<256xf32> to vector<1x256xf32>
    %c0_42 = arith.constant 0 : index
    %c12_43 = arith.constant 12 : index
    %c8_44 = arith.constant 8 : index
    %c0_45 = arith.constant 0 : index
    %49 = vector.load %arg2[%c0_42, %c12_43, %c8_44, %c0_45] : memref<1x24x16x256xf32, #tpu.memory_space<vmem>>, vector<1x8x8x256xf32>
    %50 = vector.shape_cast %49 : vector<1x8x8x256xf32> to vector<8x8x256xf32>
    %cst_46 = arith.constant dense<0.000000e+00> : vector<8x256xf32>
    %51 = vector.multi_reduction <add>, %50, %cst_46 [0] : vector<8x8x256xf32> to vector<8x256xf32>
    %cst_47 = arith.constant dense<0.000000e+00> : vector<256xf32>
    %52 = vector.multi_reduction <add>, %51, %cst_47 [0] : vector<8x256xf32> to vector<256xf32>
    %53 = vector.shape_cast %52 : vector<256xf32> to vector<1x256xf32>
    %54 = arith.addf %38, %43 : vector<1x256xf32>
    %55 = arith.addf %54, %48 : vector<1x256xf32>
    %56 = arith.addf %55, %53 : vector<1x256xf32>
    %cst_48 = arith.constant 3.906250e-03 : f32
    %57 = vector.broadcast %cst_48 : f32 to vector<1x256xf32>
    %58 = arith.mulf %56, %57 : vector<1x256xf32>
    %cst_49 = arith.constant 1.562500e-02 : f32
    %59 = vector.broadcast %cst_49 : f32 to vector<1x256xf32>
    %60 = arith.mulf %38, %59 : vector<1x256xf32>
    %cst_50 = arith.constant 1.562500e-02 : f32
    %61 = vector.broadcast %cst_50 : f32 to vector<1x256xf32>
    %62 = arith.mulf %43, %61 : vector<1x256xf32>
    %cst_51 = arith.constant 1.562500e-02 : f32
    %63 = vector.broadcast %cst_51 : f32 to vector<1x256xf32>
    %64 = arith.mulf %48, %63 : vector<1x256xf32>
    %cst_52 = arith.constant 1.562500e-02 : f32
    %65 = vector.broadcast %cst_52 : f32 to vector<1x256xf32>
    %66 = arith.mulf %53, %65 : vector<1x256xf32>
    %67 = tpu.concatenate %58, %60, %62, %64, %66 in 1 : vector<1x256xf32>, vector<1x256xf32>, vector<1x256xf32>, vector<1x256xf32>, vector<1x256xf32> -> vector<1x1280xf32>
    %c0_53 = arith.constant 0 : index
    %c16 = arith.constant 16 : index
    %c0_54 = arith.constant 0 : index
    %c0_55 = arith.constant 0 : index
    %68 = vector.load %arg2[%c0_53, %c16, %c0_54, %c0_55] : memref<1x24x16x256xf32, #tpu.memory_space<vmem>>, vector<1x4x8x256xf32>
    %69 = vector.shape_cast %68 : vector<1x4x8x256xf32> to vector<4x8x256xf32>
    %cst_56 = arith.constant dense<0.000000e+00> : vector<8x256xf32>
    %70 = vector.multi_reduction <add>, %69, %cst_56 [0] : vector<4x8x256xf32> to vector<8x256xf32>
    %cst_57 = arith.constant dense<0.000000e+00> : vector<256xf32>
    %71 = vector.multi_reduction <add>, %70, %cst_57 [0] : vector<8x256xf32> to vector<256xf32>
    %72 = vector.shape_cast %71 : vector<256xf32> to vector<1x256xf32>
    %c0_58 = arith.constant 0 : index
    %c16_59 = arith.constant 16 : index
    %c8_60 = arith.constant 8 : index
    %c0_61 = arith.constant 0 : index
    %73 = vector.load %arg2[%c0_58, %c16_59, %c8_60, %c0_61] : memref<1x24x16x256xf32, #tpu.memory_space<vmem>>, vector<1x4x8x256xf32>
    %74 = vector.shape_cast %73 : vector<1x4x8x256xf32> to vector<4x8x256xf32>
    %cst_62 = arith.constant dense<0.000000e+00> : vector<8x256xf32>
    %75 = vector.multi_reduction <add>, %74, %cst_62 [0] : vector<4x8x256xf32> to vector<8x256xf32>
    %cst_63 = arith.constant dense<0.000000e+00> : vector<256xf32>
    %76 = vector.multi_reduction <add>, %75, %cst_63 [0] : vector<8x256xf32> to vector<256xf32>
    %77 = vector.shape_cast %76 : vector<256xf32> to vector<1x256xf32>
    %c0_64 = arith.constant 0 : index
    %c20 = arith.constant 20 : index
    %c0_65 = arith.constant 0 : index
    %c0_66 = arith.constant 0 : index
    %78 = vector.load %arg2[%c0_64, %c20, %c0_65, %c0_66] : memref<1x24x16x256xf32, #tpu.memory_space<vmem>>, vector<1x4x8x256xf32>
    %79 = vector.shape_cast %78 : vector<1x4x8x256xf32> to vector<4x8x256xf32>
    %cst_67 = arith.constant dense<0.000000e+00> : vector<8x256xf32>
    %80 = vector.multi_reduction <add>, %79, %cst_67 [0] : vector<4x8x256xf32> to vector<8x256xf32>
    %cst_68 = arith.constant dense<0.000000e+00> : vector<256xf32>
    %81 = vector.multi_reduction <add>, %80, %cst_68 [0] : vector<8x256xf32> to vector<256xf32>
    %82 = vector.shape_cast %81 : vector<256xf32> to vector<1x256xf32>
    %c0_69 = arith.constant 0 : index
    %c20_70 = arith.constant 20 : index
    %c8_71 = arith.constant 8 : index
    %c0_72 = arith.constant 0 : index
    %83 = vector.load %arg2[%c0_69, %c20_70, %c8_71, %c0_72] : memref<1x24x16x256xf32, #tpu.memory_space<vmem>>, vector<1x4x8x256xf32>
    %84 = vector.shape_cast %83 : vector<1x4x8x256xf32> to vector<4x8x256xf32>
    %cst_73 = arith.constant dense<0.000000e+00> : vector<8x256xf32>
    %85 = vector.multi_reduction <add>, %84, %cst_73 [0] : vector<4x8x256xf32> to vector<8x256xf32>
    %cst_74 = arith.constant dense<0.000000e+00> : vector<256xf32>
    %86 = vector.multi_reduction <add>, %85, %cst_74 [0] : vector<8x256xf32> to vector<256xf32>
    %87 = vector.shape_cast %86 : vector<256xf32> to vector<1x256xf32>
    %88 = arith.addf %72, %77 : vector<1x256xf32>
    %89 = arith.addf %88, %82 : vector<1x256xf32>
    %90 = arith.addf %89, %87 : vector<1x256xf32>
    %cst_75 = arith.constant 7.812500e-03 : f32
    %91 = vector.broadcast %cst_75 : f32 to vector<1x256xf32>
    %92 = arith.mulf %90, %91 : vector<1x256xf32>
    %cst_76 = arith.constant 3.125000e-02 : f32
    %93 = vector.broadcast %cst_76 : f32 to vector<1x256xf32>
    %94 = arith.mulf %72, %93 : vector<1x256xf32>
    %cst_77 = arith.constant 3.125000e-02 : f32
    %95 = vector.broadcast %cst_77 : f32 to vector<1x256xf32>
    %96 = arith.mulf %77, %95 : vector<1x256xf32>
    %cst_78 = arith.constant 3.125000e-02 : f32
    %97 = vector.broadcast %cst_78 : f32 to vector<1x256xf32>
    %98 = arith.mulf %82, %97 : vector<1x256xf32>
    %cst_79 = arith.constant 3.125000e-02 : f32
    %99 = vector.broadcast %cst_79 : f32 to vector<1x256xf32>
    %100 = arith.mulf %87, %99 : vector<1x256xf32>
    %101 = tpu.concatenate %92, %94, %96, %98, %100 in 1 : vector<1x256xf32>, vector<1x256xf32>, vector<1x256xf32>, vector<1x256xf32>, vector<1x256xf32> -> vector<1x1280xf32>
    %c0_80 = arith.constant 0 : index
    %c0_81 = arith.constant 0 : index
    %c0_82 = arith.constant 0 : index
    %c0_83 = arith.constant 0 : index
    %102 = vector.load %arg3[%c0_80, %c0_81, %c0_82, %c0_83] : memref<1x12x16x256xf32, #tpu.memory_space<vmem>>, vector<1x6x8x256xf32>
    %103 = vector.shape_cast %102 : vector<1x6x8x256xf32> to vector<6x8x256xf32>
    %cst_84 = arith.constant dense<0.000000e+00> : vector<8x256xf32>
    %104 = vector.multi_reduction <add>, %103, %cst_84 [0] : vector<6x8x256xf32> to vector<8x256xf32>
    %cst_85 = arith.constant dense<0.000000e+00> : vector<256xf32>
    %105 = vector.multi_reduction <add>, %104, %cst_85 [0] : vector<8x256xf32> to vector<256xf32>
    %106 = vector.shape_cast %105 : vector<256xf32> to vector<1x256xf32>
    %c0_86 = arith.constant 0 : index
    %c0_87 = arith.constant 0 : index
    %c8_88 = arith.constant 8 : index
    %c0_89 = arith.constant 0 : index
    %107 = vector.load %arg3[%c0_86, %c0_87, %c8_88, %c0_89] : memref<1x12x16x256xf32, #tpu.memory_space<vmem>>, vector<1x6x8x256xf32>
    %108 = vector.shape_cast %107 : vector<1x6x8x256xf32> to vector<6x8x256xf32>
    %cst_90 = arith.constant dense<0.000000e+00> : vector<8x256xf32>
    %109 = vector.multi_reduction <add>, %108, %cst_90 [0] : vector<6x8x256xf32> to vector<8x256xf32>
    %cst_91 = arith.constant dense<0.000000e+00> : vector<256xf32>
    %110 = vector.multi_reduction <add>, %109, %cst_91 [0] : vector<8x256xf32> to vector<256xf32>
    %111 = vector.shape_cast %110 : vector<256xf32> to vector<1x256xf32>
    %c0_92 = arith.constant 0 : index
    %c6 = arith.constant 6 : index
    %c0_93 = arith.constant 0 : index
    %c0_94 = arith.constant 0 : index
    %112 = vector.load %arg3[%c0_92, %c6, %c0_93, %c0_94] : memref<1x12x16x256xf32, #tpu.memory_space<vmem>>, vector<1x6x8x256xf32>
    %113 = vector.shape_cast %112 : vector<1x6x8x256xf32> to vector<6x8x256xf32>
    %cst_95 = arith.constant dense<0.000000e+00> : vector<8x256xf32>
    %114 = vector.multi_reduction <add>, %113, %cst_95 [0] : vector<6x8x256xf32> to vector<8x256xf32>
    %cst_96 = arith.constant dense<0.000000e+00> : vector<256xf32>
    %115 = vector.multi_reduction <add>, %114, %cst_96 [0] : vector<8x256xf32> to vector<256xf32>
    %116 = vector.shape_cast %115 : vector<256xf32> to vector<1x256xf32>
    %c0_97 = arith.constant 0 : index
    %c6_98 = arith.constant 6 : index
    %c8_99 = arith.constant 8 : index
    %c0_100 = arith.constant 0 : index
    %117 = vector.load %arg3[%c0_97, %c6_98, %c8_99, %c0_100] : memref<1x12x16x256xf32, #tpu.memory_space<vmem>>, vector<1x6x8x256xf32>
    %118 = vector.shape_cast %117 : vector<1x6x8x256xf32> to vector<6x8x256xf32>
    %cst_101 = arith.constant dense<0.000000e+00> : vector<8x256xf32>
    %119 = vector.multi_reduction <add>, %118, %cst_101 [0] : vector<6x8x256xf32> to vector<8x256xf32>
    %cst_102 = arith.constant dense<0.000000e+00> : vector<256xf32>
    %120 = vector.multi_reduction <add>, %119, %cst_102 [0] : vector<8x256xf32> to vector<256xf32>
    %121 = vector.shape_cast %120 : vector<256xf32> to vector<1x256xf32>
    %122 = arith.addf %106, %111 : vector<1x256xf32>
    %123 = arith.addf %122, %116 : vector<1x256xf32>
    %124 = arith.addf %123, %121 : vector<1x256xf32>
    %cst_103 = arith.constant 0.00520833349 : f32
    %125 = vector.broadcast %cst_103 : f32 to vector<1x256xf32>
    %126 = arith.mulf %124, %125 : vector<1x256xf32>
    %cst_104 = arith.constant 0.020833334 : f32
    %127 = vector.broadcast %cst_104 : f32 to vector<1x256xf32>
    %128 = arith.mulf %106, %127 : vector<1x256xf32>
    %cst_105 = arith.constant 0.020833334 : f32
    %129 = vector.broadcast %cst_105 : f32 to vector<1x256xf32>
    %130 = arith.mulf %111, %129 : vector<1x256xf32>
    %cst_106 = arith.constant 0.020833334 : f32
    %131 = vector.broadcast %cst_106 : f32 to vector<1x256xf32>
    %132 = arith.mulf %116, %131 : vector<1x256xf32>
    %cst_107 = arith.constant 0.020833334 : f32
    %133 = vector.broadcast %cst_107 : f32 to vector<1x256xf32>
    %134 = arith.mulf %121, %133 : vector<1x256xf32>
    %135 = tpu.concatenate %126, %128, %130, %132, %134 in 1 : vector<1x256xf32>, vector<1x256xf32>, vector<1x256xf32>, vector<1x256xf32>, vector<1x256xf32> -> vector<1x1280xf32>
    %136 = tpu.concatenate %33, %67, %101, %135 in 1 : vector<1x1280xf32>, vector<1x1280xf32>, vector<1x1280xf32>, vector<1x1280xf32> -> vector<1x5120xf32>
    %c0_108 = arith.constant 0 : index
    %c0_109 = arith.constant 0 : index
    %137 = vector.load %arg4[%c0_108, %c0_109] : memref<5120x128xf32, #tpu.memory_space<vmem>>, vector<5120x128xf32>
    %cst_110 = arith.constant dense<0.000000e+00> : vector<1x128xf32>
    %138 = tpu.matmul %136, %137, %cst_110 {dimension_numbers = #tpu.dot_dimension_numbers<[1], [0], [0], [1], [0, 0, 1, 1], [], []>} : vector<1x5120xf32>, vector<5120x128xf32>, vector<1x128xf32> -> vector<1x128xf32>
    %c0_111 = arith.constant 0 : index
    %c0_112 = arith.constant 0 : index
    %139 = vector.load %arg5[%c0_111, %c0_112] : memref<1x128xf32, #tpu.memory_space<vmem>>, vector<1x128xf32>
    %140 = arith.addf %138, %139 : vector<1x128xf32>
    %c0_113 = arith.constant 0 : index
    %c0_114 = arith.constant 0 : index
    %c0_115 = arith.constant 0 : index
    %141 = vector.load %arg6[%c0_113, %c0_114, %c0_115] : memref<1x1x128xf32, #tpu.memory_space<vmem>>, vector<1x1x128xf32>
    %142 = vector.shape_cast %141 : vector<1x1x128xf32> to vector<1x128xf32>
    %143 = vector.shape_cast %140 : vector<1x128xf32> to vector<1x1x128xf32>
    tpu.vector_store %arg6[%c0_113, %c0_114, %c0_115], %143 {strides = array<i32>} : memref<1x1x128xf32, #tpu.memory_space<vmem>>, vector<1x1x128xf32>,
    return
  }
  func.func @transform_0(%arg0: i32) -> (i32, i32, i32, i32) {
    %c0_i32 = arith.constant 0 : i32
    %c0_i32_0 = arith.constant 0 : i32
    %c0_i32_1 = arith.constant 0 : i32
    %c0_i32_2 = arith.constant 0 : i32
    return %arg0, %c0_i32, %c0_i32_0, %c0_i32_1 : i32, i32, i32, i32
  }
  func.func @transform_1(%arg0: i32) -> (i32, i32, i32, i32) {
    %c0_i32 = arith.constant 0 : i32
    %c0_i32_0 = arith.constant 0 : i32
    %c0_i32_1 = arith.constant 0 : i32
    %c0_i32_2 = arith.constant 0 : i32
    return %arg0, %c0_i32, %c0_i32_0, %c0_i32_1 : i32, i32, i32, i32
  }
  func.func @transform_2(%arg0: i32) -> (i32, i32, i32, i32) {
    %c0_i32 = arith.constant 0 : i32
    %c0_i32_0 = arith.constant 0 : i32
    %c0_i32_1 = arith.constant 0 : i32
    %c0_i32_2 = arith.constant 0 : i32
    return %arg0, %c0_i32, %c0_i32_0, %c0_i32_1 : i32, i32, i32, i32
  }
  func.func @transform_3(%arg0: i32) -> (i32, i32) {
    %c0_i32 = arith.constant 0 : i32
    %c0_i32_0 = arith.constant 0 : i32
    %c0_i32_1 = arith.constant 0 : i32
    return %c0_i32, %c0_i32_0 : i32, i32
  }
  func.func @transform_4(%arg0: i32) -> (i32, i32) {
    %c0_i32 = arith.constant 0 : i32
    %c0_i32_0 = arith.constant 0 : i32
    %c0_i32_1 = arith.constant 0 : i32
    return %c0_i32, %c0_i32_0 : i32, i32
  }
  func.func @transform_5(%arg0: i32) -> (i32, i32, i32) {
    %c0_i32 = arith.constant 0 : i32
    %c0_i32_0 = arith.constant 0 : i32
    %c0_i32_1 = arith.constant 0 : i32
    return %arg0, %c0_i32, %c0_i32_0 : i32, i32, i32
  }
}

</mosaic_0001>

<llo_original>
// kernel: sspnet_classifier_forward.1
$region0: #{sspnet_classifier_forward.1}
  #allocation0 [shape = 'u32[]', space=smem, size = 0x4, offset = 0x4, fixed_abs, tag = 'smem constant byte address 0x4 - core index']
  #allocation1 [shape = 'u32[144,128]{1,0:T(1,128)}', space=vmem, size = 0x12000, scoped, tag = 'internal scratch']
  %s0 = inlined_call_operand.hbm [shape: f32[2,48,16,256], index: 0, kind: input, shape index: {}]
  %s1 = inlined_call_operand.hbm [shape: f32[2,24,16,256], index: 1, kind: input, shape index: {}]
  %s2 = inlined_call_operand.hbm [shape: f32[2,12,16,256], index: 2, kind: input, shape index: {}]
  %s3 = inlined_call_operand.hbm [shape: f32[5120,128], index: 3, kind: input, shape index: {}]
  %s4 = inlined_call_operand.hbm [shape: f32[1,128], index: 4, kind: input, shape index: {}]
  %s5 = inlined_call_operand.hbm [shape: f32[2,1,128], index: 5, kind: output, shape index: {}]
  %s6 = sld [smem:[#allocation0]]
  $region73: #{sspnet_classifier_forward.1} parent=0
    _
  %s8 = ssub.s32 1, %s6
  %s9 = scalar_select 0, %s8, %s6
  $region1: #{sspnet_classifier_forward.1} parent=0
    #allocation2 [shape = 'u8[786432]{0}', space=vmem, size = 0xc0000, scoped, tag = 'input window, operand 0']
    #allocation3 [shape = 's32[2]{0}', space=sflag, size = 0x8, scoped, tag = 'scoped memory for sspnet_classifier_forward.1']
    #allocation4 [shape = 's32[2]{0}', space=sflag, size = 0x8, scoped, tag = 'scoped memory for sspnet_classifier_forward.1']
    #allocation5 [shape = 'u8[786432]{0}', space=vmem, size = 0xc0000, scoped, tag = 'input window, operand 1']
    #allocation6 [shape = 's32[2]{0}', space=sflag, size = 0x8, scoped, tag = 'scoped memory for sspnet_classifier_forward.1']
    #allocation7 [shape = 'u8[393216]{0}', space=vmem, size = 0x60000, scoped, tag = 'input window, operand 2']
    #allocation8 [shape = 'u8[2621440]{0}', space=vmem, size = 0x280000, scoped, tag = 'input window, operand 3, single buffered']
    #allocation9 [shape = 's32[1]{0}', space=sflag, size = 0x4, scoped, tag = 'scoped memory for sspnet_classifier_forward.1']
    #allocation10 [shape = 'u8[512]{0}', space=vmem, size = 0x400, scoped, tag = 'input window, operand 4, single buffered']
    #allocation11 [shape = 'u8[1024]{0}', space=vmem, size = 0x400, scoped, tag = 'output window, operand 0']
    %10 = vsyncpa [#allocation3], 0
    %s11 = scalar_lea.sflag [#allocation3], 1
    %12 = vsyncpa %s11, 0
    %13 = vsyncpa [#allocation6], 0
    %s14 = scalar_lea.sflag [#allocation6], 1
    %15 = vsyncpa %s14, 0
    %16 = vsyncpa [#allocation9], 0
    %17 = vsyncpa [#allocation4], 0
    %s18 = scalar_lea.sflag [#allocation4], 1
    %19 = vsyncpa %s18, 0
    loop: start=0, step=1, limit=4
    $region2: #{sspnet_classifier_forward.1} parent=1 // loop_pre_header
      _
    $region3: #{sspnet_classifier_forward.1} parent=1 // loop_header
      %s21 = sphi 0, %s25
      %p22 = scmp.ge.s32.totalorder %s21, 4
      %s31 = sphi 0, %s33
      %s34 = sphi 0, %s31
      %s35 = sphi 0, %s34
      %s51 = sphi 0, %s35
      %s57 = sphi 0, %s59
      %s60 = sphi 0, %s57
      %s61 = sphi 0, %s60
      %s77 = sphi 0, %s61
      %s83 = sphi 0, %s85
      %s86 = sphi 0, %s83
      %s87 = sphi 0, %s86
      %s103 = sphi 0, %s87
      %s107 = sphi 0, %s107
      %s109 = sphi 0, %s107
      %s110 = sphi 0, %s109
      %s124 = sphi 0, %s110
      %s128 = sphi 0, %s128
      %s130 = sphi 0, %s128
      %s131 = sphi 0, %s130
      %s145 = sphi 0, %s131
      %s151 = sphi 0, %s153
      %s154 = sphi 0, %s151
      %s155 = sphi 0, %s154
      %s171 = sphi 0, %s155
    $region4: #{sspnet_classifier_forward.1} parent=1 // loop_header_branch
      %24 = sbr.rel (%p22) target = $region8
    $region5: #{sspnet_classifier_forward.1} parent=1 // loop_body
      %s26 = ssub.s32 %s21, 1
      %s27 = ssub.s32 %s21, 2
      %s28 = sadd.s32 %s21, 1
      %s29 = ssub.s32 %s21, %s28
      %p30 = scmp.eq.s32.totalorder %s29, 0
      %s32 = sadd.s32 %s31, 1
      %s33 = scalar_select %p30, %s31, %s32
      %p36 = pneg %p30
      %p37 = scmp.eq.s32.totalorder %s21, 1
      %p38 = por %p36, %p37
      %p39 = scmp.ne.s32.totalorder %s31, %s34
      %p40 = scmp.eq.s32.totalorder %s21, 0
      %p41 = por %p39, %p40
      %p42 = scmp.ne.s32.totalorder %s31, %s34
      %p43 = scmp.eq.s32.totalorder %s26, 1
      %p44 = por %p42, %p43
      %p45 = scmp.ne.s32.totalorder %s34, %s35
      %p46 = scmp.eq.s32.totalorder %s26, 0
      %p47 = por %p45, %p46
      %p48 = scmp.ne.s32.totalorder %s34, %s35
      %p49 = scmp.eq.s32.totalorder %s27, 1
      %p50 = por %p48, %p49
      %p52 = scmp.ne.s32.totalorder %s35, %s51
      %p53 = scmp.eq.s32.totalorder %s27, 0
      %p54 = por %p52, %p53
      %s55 = ssub.s32 %s21, %s28
      %p56 = scmp.eq.s32.totalorder %s55, 0
      %s58 = sadd.s32 %s57, 1
      %s59 = scalar_select %p56, %s57, %s58
      %p62 = pneg %p56
      %p63 = scmp.eq.s32.totalorder %s21, 1
      %p64 = por %p62, %p63
      %p65 = scmp.ne.s32.totalorder %s57, %s60
      %p66 = scmp.eq.s32.totalorder %s21, 0
      %p67 = por %p65, %p66
      %p68 = scmp.ne.s32.totalorder %s57, %s60
      %p69 = scmp.eq.s32.totalorder %s26, 1
      %p70 = por %p68, %p69
      %p71 = scmp.ne.s32.totalorder %s60, %s61
      %p72 = scmp.eq.s32.totalorder %s26, 0
      %p73 = por %p71, %p72
      %p74 = scmp.ne.s32.totalorder %s60, %s61
      %p75 = scmp.eq.s32.totalorder %s27, 1
      %p76 = por %p74, %p75
      %p78 = scmp.ne.s32.totalorder %s61, %s77
      %p79 = scmp.eq.s32.totalorder %s27, 0
      %p80 = por %p78, %p79
      %s81 = ssub.s32 %s21, %s28
      %p82 = scmp.eq.s32.totalorder %s81, 0
      %s84 = sadd.s32 %s83, 1
      %s85 = scalar_select %p82, %s83, %s84
      %p88 = pneg %p82
      %p89 = scmp.eq.s32.totalorder %s21, 1
      %p90 = por %p88, %p89
      %p91 = scmp.ne.s32.totalorder %s83, %s86
      %p92 = scmp.eq.s32.totalorder %s21, 0
      %p93 = por %p91, %p92
      %p94 = scmp.ne.s32.totalorder %s83, %s86
      %p95 = scmp.eq.s32.totalorder %s26, 1
      %p96 = por %p94, %p95
      %p97 = scmp.ne.s32.totalorder %s86, %s87
      %p98 = scmp.eq.s32.totalorder %s26, 0
      %p99 = por %p97, %p98
      %p100 = scmp.ne.s32.totalorder %s86, %s87
      %p101 = scmp.eq.s32.totalorder %s27, 1
      %p102 = por %p100, %p101
      %p104 = scmp.ne.s32.totalorder %s87, %s103
      %p105 = scmp.eq.s32.totalorder %s27, 0
      %p106 = por %p104, %p105
      %s108 = sadd.s32 %s107, 1
      %p111 = scmp.eq.s32.totalorder %s21, 1
      %p112 = scmp.ne.s32.totalorder %s107, %s109
      %p113 = scmp.eq.s32.totalorder %s21, 0
      %p114 = por %p112, %p113
      %p115 = scmp.ne.s32.totalorder %s107, %s109
      %p116 = scmp.eq.s32.totalorder %s26, 1
      %p117 = por %p115, %p116
      %p118 = scmp.ne.s32.totalorder %s109, %s110
      %p119 = scmp.eq.s32.totalorder %s26, 0
      %p120 = por %p118, %p119
      %p121 = scmp.ne.s32.totalorder %s109, %s110
      %p122 = scmp.eq.s32.totalorder %s27, 1
      %p123 = por %p121, %p122
      %p125 = scmp.ne.s32.totalorder %s110, %s124
      %p126 = scmp.eq.s32.totalorder %s27, 0
      %p127 = por %p125, %p126
      %s129 = sadd.s32 %s128, 1
      %p132 = scmp.eq.s32.totalorder %s21, 1
      %p133 = scmp.ne.s32.totalorder %s128, %s130
      %p134 = scmp.eq.s32.totalorder %s21, 0
      %p135 = por %p133, %p134
      %p136 = scmp.ne.s32.totalorder %s128, %s130
      %p137 = scmp.eq.s32.totalorder %s26, 1
      %p138 = por %p136, %p137
      %p139 = scmp.ne.s32.totalorder %s130, %s131
      %p140 = scmp.eq.s32.totalorder %s26, 0
      %p141 = por %p139, %p140
      %p142 = scmp.ne.s32.totalorder %s130, %s131
      %p143 = scmp.eq.s32.totalorder %s27, 1
      %p144 = por %p142, %p143
      %p146 = scmp.ne.s32.totalorder %s131, %s145
      %p147 = scmp.eq.s32.totalorder %s27, 0
      %p148 = por %p146, %p147
      %s149 = ssub.s32 %s21, %s28
      %p150 = scmp.eq.s32.totalorder %s149, 0
      %s152 = sadd.s32 %s151, 1
      %s153 = scalar_select %p150, %s151, %s152
      %p156 = pneg %p150
      %p157 = scmp.eq.s32.totalorder %s21, 1
      %p158 = por %p156, %p157
      %p159 = scmp.ne.s32.totalorder %s151, %s154
      %p160 = scmp.eq.s32.totalorder %s21, 0
      %p161 = por %p159, %p160
      %p162 = scmp.ne.s32.totalorder %s151, %s154
      %p163 = scmp.eq.s32.totalorder %s26, 1
      %p164 = por %p162, %p163
      %p165 = scmp.ne.s32.totalorder %s154, %s155
      %p166 = scmp.eq.s32.totalorder %s26, 0
      %p167 = por %p165, %p166
      %p168 = scmp.ne.s32.totalorder %s154, %s155
      %p169 = scmp.eq.s32.totalorder %s27, 1
      %p170 = por %p168, %p169
      %p172 = scmp.ne.s32.totalorder %s155, %s171
      %p173 = scmp.eq.s32.totalorder %s27, 0
      %p174 = por %p172, %p173
      %p175 = scmp.le.s32.totalorder 1, %s21
      %p176 = scmp.lt.s32.totalorder %s21, 3
      %p177 = pnand %p175, %p176
      %p178 = pneg %p177
      // Predicated region
      $region9: #{sspnet_classifier_forward.1} parent=5 // pred_check
        _
      $region10: #{sspnet_classifier_forward.1} parent=5 // pred_check_branch
        %180 = sbr.rel (%p177) target = $region12
      $region11: #{sspnet_classifier_forward.1} parent=5 // pred_region
        %s181 = ssub.s32 %s21, 1
        // Predicated region
        $region13: #{sspnet_classifier_forward.1} parent=11 // pred_check
          %p182 = pneg %p120
        $region14: #{sspnet_classifier_forward.1} parent=11 // pred_check_branch
          %184 = sbr.rel (%p182) target = $region16
        $region15: #{sspnet_classifier_forward.1} parent=11 // pred_region
          %s186 = ssub.s32 81920, 81920
          %187 = vsyncadd [#allocation9], %s186
          %s188 = sshll.u32 [#allocation8], 4
          %s189 = int_to_ptr.vmem [resolvable:$true] %s188
          %194 = dma.hbm_to_vmem [thread:$0]  %s3, 81920, %s189, [#allocation9], 128, 128, 8
        $region16: #{sspnet_classifier_forward.1} parent=11 // pred_fallthru
          _
        // Predicated region
        $region17: #{sspnet_classifier_forward.1} parent=11 // pred_check
          %p195 = pneg %p141
        $region18: #{sspnet_classifier_forward.1} parent=11 // pred_check_branch
          %197 = sbr.rel (%p195) target = $region20
        $region19: #{sspnet_classifier_forward.1} parent=11 // pred_region
          %s199 = ssub.s32 16, 16
          %200 = vsyncadd [#allocation9], %s199
          %s202 = sshll.u32 [#allocation10], 4
          %s203 = int_to_ptr.vmem [resolvable:$true] %s202
          %205 = dma.hbm_to_vmem [thread:$0]  %s4, 16, %s203, [#allocation9]
        $region20: #{sspnet_classifier_forward.1} parent=11 // pred_fallthru
          _
      $region12: #{sspnet_classifier_forward.1} parent=5 // pred_fallthru
        _
      %p206 = scmp.lt.s32.totalorder %s21, 2
      // Predicated region
      $region21: #{sspnet_classifier_forward.1} parent=5 // pred_check
        %p207 = pneg %p206
      $region22: #{sspnet_classifier_forward.1} parent=5 // pred_check_branch
        %209 = sbr.rel (%p207) target = $region24
      $region23: #{sspnet_classifier_forward.1} parent=5 // pred_region
        // Predicated region
        $region25: #{sspnet_classifier_forward.1} parent=23 // pred_check
          %p210 = pneg %p41
        $region26: #{sspnet_classifier_forward.1} parent=23 // pred_check_branch
          %212 = sbr.rel (%p210) target = $region28
        $region27: #{sspnet_classifier_forward.1} parent=23 // pred_region
          %s213 = sand.u32 %s31, 1
          %s214 = scalar_lea.sflag [#allocation3], %s213
          %s215 = sand.u32 %s31, 1
          %s216 = smul.addr %s215, 768
          %s217 = scalar_lea.vmem [#allocation2], %s216
          %s219 = ssub.s32 12288, 12288
          %220 = vsyncadd %s214, %s219
          %s221 = smul.addr %s21, 192
          %s222 = smul.addr %s221, 128
          %s223 = scalar_lea.hbm %s0, %s222
          %s224 = sshll.u32 %s217, 4
          %s225 = int_to_ptr.vmem [resolvable:$true] %s224
          %230 = dma.hbm_to_vmem [thread:$0]  %s223, 12288, %s225, %s214, 256, 256, 16
        $region28: #{sspnet_classifier_forward.1} parent=23 // pred_fallthru
          _
        // Predicated region
        $region29: #{sspnet_classifier_forward.1} parent=23 // pred_check
          %p231 = pneg %p67
        $region30: #{sspnet_classifier_forward.1} parent=23 // pred_check_branch
          %233 = sbr.rel (%p231) target = $region32
        $region31: #{sspnet_classifier_forward.1} parent=23 // pred_region
          %s234 = sand.u32 %s21, 1
          %s235 = scalar_lea.sflag [#allocation6], %s234
          %s236 = sand.u32 %s57, 1
          %s237 = smul.addr %s236, 768
          %s238 = scalar_lea.vmem [#allocation5], %s237
          %s240 = ssub.s32 12288, 12288
          %241 = vsyncadd %s235, %s240
          %s242 = smul.addr %s21, 96
          %s243 = smul.addr %s242, 128
          %s244 = scalar_lea.hbm %s1, %s243
          %s245 = sshll.u32 %s238, 4
          %s246 = int_to_ptr.vmem [resolvable:$true] %s245
          %251 = dma.hbm_to_vmem [thread:$0]  %s244, 12288, %s246, %s235, 256, 256, 16
        $region32: #{sspnet_classifier_forward.1} parent=23 // pred_fallthru
          _
        // Predicated region
        $region33: #{sspnet_classifier_forward.1} parent=23 // pred_check
          %p252 = pneg %p93
        $region34: #{sspnet_classifier_forward.1} parent=23 // pred_check_branch
          %254 = sbr.rel (%p252) target = $region36
        $region35: #{sspnet_classifier_forward.1} parent=23 // pred_region
          %s255 = sand.u32 %s21, 1
          %s256 = scalar_lea.sflag [#allocation6], %s255
          %s257 = sand.u32 %s83, 1
          %s258 = smul.addr %s257, 384
          %s259 = scalar_lea.vmem [#allocation7], %s258
          %s261 = ssub.s32 6144, 6144
          %262 = vsyncadd %s256, %s261
          %s263 = smul.addr %s21, 48
          %s264 = smul.addr %s263, 128
          %s265 = scalar_lea.hbm %s2, %s264
          %s266 = sshll.u32 %s259, 4
          %s267 = int_to_ptr.vmem [resolvable:$true] %s266
          %272 = dma.hbm_to_vmem [thread:$0]  %s265, 6144, %s267, %s256, 256, 256, 16
        $region36: #{sspnet_classifier_forward.1} parent=23 // pred_fallthru
          _
      $region24: #{sspnet_classifier_forward.1} parent=5 // pred_fallthru
        _
      %p273 = scmp.le.s32.totalorder 1, %s21
      %p274 = scmp.lt.s32.totalorder %s21, 3
      %p275 = pnand %p273, %p274
      %p276 = pneg %p275
      // Predicated region
      $region37: #{sspnet_classifier_forward.1} parent=5 // pred_check
        _
      $region38: #{sspnet_classifier_forward.1} parent=5 // pred_check_branch
        %278 = sbr.rel (%p275) target = $region40
      $region39: #{sspnet_classifier_forward.1} parent=5 // pred_region
        %s279 = ssub.s32 %s21, 1
        %s280 = sand.u32 %s34, 1
        %s281 = scalar_lea.sflag [#allocation3], %s280
        %s282 = sand.u32 %s34, 1
        %s283 = smul.addr %s282, 768
        %s284 = scalar_lea.vmem [#allocation2], %s283
        // Predicated region
        $region41: #{sspnet_classifier_forward.1} parent=39 // pred_check
          %p285 = pneg %p47
        $region42: #{sspnet_classifier_forward.1} parent=39 // pred_check_branch
          %287 = sbr.rel (%p285) target = $region44
        $region43: #{sspnet_classifier_forward.1} parent=39 // pred_region
          %288 = dma.done %s281, 12288
        $region44: #{sspnet_classifier_forward.1} parent=39 // pred_fallthru
          _
        %s289 = sand.u32 %s26, 1
        %s290 = scalar_lea.sflag [#allocation6], %s289
        %s291 = sand.u32 %s60, 1
        %s292 = smul.addr %s291, 768
        %s293 = scalar_lea.vmem [#allocation5], %s292
        // Predicated region
        $region45: #{sspnet_classifier_forward.1} parent=39 // pred_check
          %p294 = pneg %p73
        $region46: #{sspnet_classifier_forward.1} parent=39 // pred_check_branch
          %296 = sbr.rel (%p294) target = $region48
        $region47: #{sspnet_classifier_forward.1} parent=39 // pred_region
          %297 = dma.done %s290, 12288
        $region48: #{sspnet_classifier_forward.1} parent=39 // pred_fallthru
          _
        %s298 = sand.u32 %s26, 1
        %s299 = scalar_lea.sflag [#allocation6], %s298
        %s300 = sand.u32 %s86, 1
        %s301 = smul.addr %s300, 384
        %s302 = scalar_lea.vmem [#allocation7], %s301
        // Predicated region
        $region49: #{sspnet_classifier_forward.1} parent=39 // pred_check
          %p303 = pneg %p99
        $region50: #{sspnet_classifier_forward.1} parent=39 // pred_check_branch
          %305 = sbr.rel (%p303) target = $region52
        $region51: #{sspnet_classifier_forward.1} parent=39 // pred_region
          %306 = dma.done %s299, 6144
        $region52: #{sspnet_classifier_forward.1} parent=39 // pred_fallthru
          _
        // Predicated region
        $region53: #{sspnet_classifier_forward.1} parent=39 // pred_check
          %p307 = pneg %p120
        $region54: #{sspnet_classifier_forward.1} parent=39 // pred_check_branch
          %309 = sbr.rel (%p307) target = $region56
        $region55: #{sspnet_classifier_forward.1} parent=39 // pred_region
          %310 = dma.done [#allocation9], 81920
        $region56: #{sspnet_classifier_forward.1} parent=39 // pred_fallthru
          _
        // Predicated region
        $region57: #{sspnet_classifier_forward.1} parent=39 // pred_check
          %p311 = pneg %p141
        $region58: #{sspnet_classifier_forward.1} parent=39 // pred_check_branch
          %313 = sbr.rel (%p311) target = $region60
        $region59: #{sspnet_classifier_forward.1} parent=39 // pred_region
          %314 = dma.done [#allocation9], 16
        $region60: #{sspnet_classifier_forward.1} parent=39 // pred_fallthru
          _
        %s315 = sand.u32 %s34, 1
        %s316 = scalar_lea.sflag [#allocation3], %s315
        %s317 = sand.u32 %s34, 1
        %s318 = smul.addr %s317, 768
        %s319 = scalar_lea.vmem [#allocation2], %s318
        %p320 = pneg %p47
        %p321 = pneg %p44
        %s322 = sand.u32 %s26, 1
        %s323 = scalar_lea.sflag [#allocation6], %s322
        %s324 = sand.u32 %s60, 1
        %s325 = smul.addr %s324, 768
        %s326 = scalar_lea.vmem [#allocation5], %s325
        %p327 = pneg %p73
        %p328 = pneg %p70
        %s329 = sand.u32 %s26, 1
        %s330 = scalar_lea.sflag [#allocation6], %s329
        %s331 = sand.u32 %s86, 1
        %s332 = smul.addr %s331, 384
        %s333 = scalar_lea.vmem [#allocation7], %s332
        %p334 = pneg %p99
        %p335 = pneg %p96
        %p336 = pneg %p120
        %p337 = pneg %p117
        %p338 = pneg %p141
        %p339 = pneg %p138
        %p340 = pneg %p167
        %p341 = pneg %p164
        %s342 = sand.u32 %s154, 1
        %s343 = scalar_lea.sflag [#allocation4], %s342
        %s344 = sand.u32 %s154, 1
        %s345 = scalar_lea.vmem [#allocation11], %s344
        %v346 = vld [vmem:[%s284] sm:$0xff]
        %v347 = vld [vmem:[%s284 + $0x8] sm:$0xff]
        %v348 = vld [vmem:[%s284 + $0x20] sm:$0xff]
        %v349 = vld [vmem:[%s284 + $0x28] sm:$0xff]
        %v350 = vld [vmem:[%s284 + $0x40] sm:$0xff]
        %v351 = vld [vmem:[%s284 + $0x48] sm:$0xff]
        %v352 = vld [vmem:[%s284 + $0x60] sm:$0xff]
        %v353 = vld [vmem:[%s284 + $0x68] sm:$0xff]
        %v354 = vld [vmem:[%s284 + $0x80] sm:$0xff]
        %v355 = vld [vmem:[%s284 + $0x88] sm:$0xff]
        %v356 = vld [vmem:[%s284 + $0xa0] sm:$0xff]
        %v357 = vld [vmem:[%s284 + $0xa8] sm:$0xff]
        %v358 = vld [vmem:[%s284 + $0xc0] sm:$0xff]
        %v359 = vld [vmem:[%s284 + $0xc8] sm:$0xff]
        %v360 = vld [vmem:[%s284 + $0xe0] sm:$0xff]
        %v361 = vld [vmem:[%s284 + $0xe8] sm:$0xff]
        %v362 = vld [vmem:[%s284 + $0x100] sm:$0xff]
        %v363 = vld [vmem:[%s284 + $0x108] sm:$0xff]
        %v364 = vld [vmem:[%s284 + $0x120] sm:$0xff]
        %v365 = vld [vmem:[%s284 + $0x128] sm:$0xff]
        %v366 = vld [vmem:[%s284 + $0x140] sm:$0xff]
        %v367 = vld [vmem:[%s284 + $0x148] sm:$0xff]
        %v368 = vld [vmem:[%s284 + $0x160] sm:$0xff]
        %v369 = vld [vmem:[%s284 + $0x168] sm:$0xff]
        %v370 = vadd.f32 %v346, %v348
        %v371 = vadd.f32 %v370, %v350
        %v372 = vadd.f32 %v371, %v352
        %v373 = vadd.f32 %v372, %v354
        %v374 = vadd.f32 %v373, %v356
        %v375 = vadd.f32 %v374, %v358
        %v376 = vadd.f32 %v375, %v360
        %v377 = vadd.f32 %v376, %v362
        %v378 = vadd.f32 %v377, %v364
        %v379 = vadd.f32 %v378, %v366
        %v380 = vadd.f32 %v379, %v368
        %v381 = vadd.f32 %v347, %v349
        %v382 = vadd.f32 %v381, %v351
        %v383 = vadd.f32 %v382, %v353
        %v384 = vadd.f32 %v383, %v355
        %v385 = vadd.f32 %v384, %v357
        %v386 = vadd.f32 %v385, %v359
        %v387 = vadd.f32 %v386, %v361
        %v388 = vadd.f32 %v387, %v363
        %v389 = vadd.f32 %v388, %v365
        %v390 = vadd.f32 %v389, %v367
        %v391 = vadd.f32 %v390, %v369
        %v392 = vrot.slane %v380, 4
        %v393 = vadd.f32 %v380, %v392
        %v394 = vrot.slane %v393, 2
        %v395 = vadd.f32 %v393, %v394
        %v396 = vrot.slane %v395, 1
        %v397 = vadd.f32 %v395, %v396
        %v398 = vrot.slane %v391, 4
        %v399 = vadd.f32 %v391, %v398
        %v400 = vrot.slane %v399, 2
        %v401 = vadd.f32 %v399, %v400
        %v402 = vrot.slane %v401, 1
        %v403 = vadd.f32 %v401, %v402
        %v404 = vld [vmem:[%s284 + $0x10] sm:$0xff]
        %v405 = vld [vmem:[%s284 + $0x18] sm:$0xff]
        %v406 = vld [vmem:[%s284 + $0x30] sm:$0xff]
        %v407 = vld [vmem:[%s284 + $0x38] sm:$0xff]
        %v408 = vld [vmem:[%s284 + $0x50] sm:$0xff]
        %v409 = vld [vmem:[%s284 + $0x58] sm:$0xff]
        %v410 = vld [vmem:[%s284 + $0x70] sm:$0xff]
        %v411 = vld [vmem:[%s284 + $0x78] sm:$0xff]
        %v412 = vld [vmem:[%s284 + $0x90] sm:$0xff]
        %v413 = vld [vmem:[%s284 + $0x98] sm:$0xff]
        %v414 = vld [vmem:[%s284 + $0xb0] sm:$0xff]
        %v415 = vld [vmem:[%s284 + $0xb8] sm:$0xff]
        %v416 = vld [vmem:[%s284 + $0xd0] sm:$0xff]
        %v417 = vld [vmem:[%s284 + $0xd8] sm:$0xff]
        %v418 = vld [vmem:[%s284 + $0xf0] sm:$0xff]
        %v419 = vld [vmem:[%s284 + $0xf8] sm:$0xff]
        %v420 = vld [vmem:[%s284 + $0x110] sm:$0xff]
        %v421 = vld [vmem:[%s284 + $0x118] sm:$0xff]
        %v422 = vld [vmem:[%s284 + $0x130] sm:$0xff]
        %v423 = vld [vmem:[%s284 + $0x138] sm:$0xff]
        %v424 = vld [vmem:[%s284 + $0x150] sm:$0xff]
        %v425 = vld [vmem:[%s284 + $0x158] sm:$0xff]
        %v426 = vld [vmem:[%s284 + $0x170] sm:$0xff]
        %v427 = vld [vmem:[%s284 + $0x178] sm:$0xff]
        %v428 = vadd.f32 %v404, %v406
        %v429 = vadd.f32 %v428, %v408
        %v430 = vadd.f32 %v429, %v410
        %v431 = vadd.f32 %v430, %v412
        %v432 = vadd.f32 %v431, %v414
        %v433 = vadd.f32 %v432, %v416
        %v434 = vadd.f32 %v433, %v418
        %v435 = vadd.f32 %v434, %v420
        %v436 = vadd.f32 %v435, %v422
        %v437 = vadd.f32 %v436, %v424
        %v438 = vadd.f32 %v437, %v426
        %v439 = vadd.f32 %v405, %v407
        %v440 = vadd.f32 %v439, %v409
        %v441 = vadd.f32 %v440, %v411
        %v442 = vadd.f32 %v441, %v413
        %v443 = vadd.f32 %v442, %v415
        %v444 = vadd.f32 %v443, %v417
        %v445 = vadd.f32 %v444, %v419
        %v446 = vadd.f32 %v445, %v421
        %v447 = vadd.f32 %v446, %v423
        %v448 = vadd.f32 %v447, %v425
        %v449 = vadd.f32 %v448, %v427
        %v450 = vrot.slane %v438, 4
        %v451 = vadd.f32 %v438, %v450
        %v452 = vrot.slane %v451, 2
        %v453 = vadd.f32 %v451, %v452
        %v454 = vrot.slane %v453, 1
        %v455 = vadd.f32 %v453, %v454
        %v456 = vrot.slane %v449, 4
        %v457 = vadd.f32 %v449, %v456
        %v458 = vrot.slane %v457, 2
        %v459 = vadd.f32 %v457, %v458
        %v460 = vrot.slane %v459, 1
        %v461 = vadd.f32 %v459, %v460
        %s462 = scalar_lea.vmem %s284, 384 [#allocation2]
        %v463 = vld [vmem:[%s462] sm:$0xff]
        %v464 = vld [vmem:[%s462 + $0x8] sm:$0xff]
        %v465 = vld [vmem:[%s462 + $0x20] sm:$0xff]
        %v466 = vld [vmem:[%s462 + $0x28] sm:$0xff]
        %v467 = vld [vmem:[%s462 + $0x40] sm:$0xff]
        %v468 = vld [vmem:[%s462 + $0x48] sm:$0xff]
        %v469 = vld [vmem:[%s462 + $0x60] sm:$0xff]
        %v470 = vld [vmem:[%s462 + $0x68] sm:$0xff]
        %v471 = vld [vmem:[%s462 + $0x80] sm:$0xff]
        %v472 = vld [vmem:[%s462 + $0x88] sm:$0xff]
        %v473 = vld [vmem:[%s462 + $0xa0] sm:$0xff]
        %v474 = vld [vmem:[%s462 + $0xa8] sm:$0xff]
        %v475 = vld [vmem:[%s462 + $0xc0] sm:$0xff]
        %v476 = vld [vmem:[%s462 + $0xc8] sm:$0xff]
        %v477 = vld [vmem:[%s462 + $0xe0] sm:$0xff]
        %v478 = vld [vmem:[%s462 + $0xe8] sm:$0xff]
        %v479 = vld [vmem:[%s462 + $0x100] sm:$0xff]
        %v480 = vld [vmem:[%s462 + $0x108] sm:$0xff]
        %v481 = vld [vmem:[%s462 + $0x120] sm:$0xff]
        %v482 = vld [vmem:[%s462 + $0x128] sm:$0xff]
        %v483 = vld [vmem:[%s462 + $0x140] sm:$0xff]
        %v484 = vld [vmem:[%s462 + $0x148] sm:$0xff]
        %v485 = vld [vmem:[%s462 + $0x160] sm:$0xff]
        %v486 = vld [vmem:[%s462 + $0x168] sm:$0xff]
        %v487 = vadd.f32 %v463, %v465
        %v488 = vadd.f32 %v487, %v467
        %v489 = vadd.f32 %v488, %v469
        %v490 = vadd.f32 %v489, %v471
        %v491 = vadd.f32 %v490, %v473
        %v492 = vadd.f32 %v491, %v475
        %v493 = vadd.f32 %v492, %v477
        %v494 = vadd.f32 %v493, %v479
        %v495 = vadd.f32 %v494, %v481
        %v496 = vadd.f32 %v495, %v483
        %v497 = vadd.f32 %v496, %v485
        %v498 = vadd.f32 %v464, %v466
        %v499 = vadd.f32 %v498, %v468
        %v500 = vadd.f32 %v499, %v470
        %v501 = vadd.f32 %v500, %v472
        %v502 = vadd.f32 %v501, %v474
        %v503 = vadd.f32 %v502, %v476
        %v504 = vadd.f32 %v503, %v478
        %v505 = vadd.f32 %v504, %v480
        %v506 = vadd.f32 %v505, %v482
        %v507 = vadd.f32 %v506, %v484
        %v508 = vadd.f32 %v507, %v486
        %v509 = vrot.slane %v497, 4
        %v510 = vadd.f32 %v497, %v509
        %v511 = vrot.slane %v510, 2
        %v512 = vadd.f32 %v510, %v511
        %v513 = vrot.slane %v512, 1
        %v514 = vadd.f32 %v512, %v513
        %v515 = vrot.slane %v508, 4
        %v516 = vadd.f32 %v508, %v515
        %v517 = vrot.slane %v516, 2
        %v518 = vadd.f32 %v516, %v517
        %v519 = vrot.slane %v518, 1
        %v520 = vadd.f32 %v518, %v519
        %v521 = vld [vmem:[%s462 + $0x10] sm:$0xff]
        %v522 = vld [vmem:[%s462 + $0x18] sm:$0xff]
        %v523 = vld [vmem:[%s462 + $0x30] sm:$0xff]
        %v524 = vld [vmem:[%s462 + $0x38] sm:$0xff]
        %v525 = vld [vmem:[%s462 + $0x50] sm:$0xff]
        %v526 = vld [vmem:[%s462 + $0x58] sm:$0xff]
        %v527 = vld [vmem:[%s462 + $0x70] sm:$0xff]
        %v528 = vld [vmem:[%s462 + $0x78] sm:$0xff]
        %v529 = vld [vmem:[%s462 + $0x90] sm:$0xff]
        %v530 = vld [vmem:[%s462 + $0x98] sm:$0xff]
        %v531 = vld [vmem:[%s462 + $0xb0] sm:$0xff]
        %v532 = vld [vmem:[%s462 + $0xb8] sm:$0xff]
        %v533 = vld [vmem:[%s462 + $0xd0] sm:$0xff]
        %v534 = vld [vmem:[%s462 + $0xd8] sm:$0xff]
        %v535 = vld [vmem:[%s462 + $0xf0] sm:$0xff]
        %v536 = vld [vmem:[%s462 + $0xf8] sm:$0xff]
        %v537 = vld [vmem:[%s462 + $0x110] sm:$0xff]
        %v538 = vld [vmem:[%s462 + $0x118] sm:$0xff]
        %v539 = vld [vmem:[%s462 + $0x130] sm:$0xff]
        %v540 = vld [vmem:[%s462 + $0x138] sm:$0xff]
        %v541 = vld [vmem:[%s462 + $0x150] sm:$0xff]
        %v542 = vld [vmem:[%s462 + $0x158] sm:$0xff]
        %v543 = vld [vmem:[%s462 + $0x170] sm:$0xff]
        %v544 = vld [vmem:[%s462 + $0x178] sm:$0xff]
        %v545 = vadd.f32 %v521, %v523
        %v546 = vadd.f32 %v545, %v525
        %v547 = vadd.f32 %v546, %v527
        %v548 = vadd.f32 %v547, %v529
        %v549 = vadd.f32 %v548, %v531
        %v550 = vadd.f32 %v549, %v533
        %v551 = vadd.f32 %v550, %v535
        %v552 = vadd.f32 %v551, %v537
        %v553 = vadd.f32 %v552, %v539
        %v554 = vadd.f32 %v553, %v541
        %v555 = vadd.f32 %v554, %v543
        %v556 = vadd.f32 %v522, %v524
        %v557 = vadd.f32 %v556, %v526
        %v558 = vadd.f32 %v557, %v528
        %v559 = vadd.f32 %v558, %v530
        %v560 = vadd.f32 %v559, %v532
        %v561 = vadd.f32 %v560, %v534
        %v562 = vadd.f32 %v561, %v536
        %v563 = vadd.f32 %v562, %v538
        %v564 = vadd.f32 %v563, %v540
        %v565 = vadd.f32 %v564, %v542
        %v566 = vadd.f32 %v565, %v544
        %v567 = vrot.slane %v555, 4
        %v568 = vadd.f32 %v555, %v567
        %v569 = vrot.slane %v568, 2
        %v570 = vadd.f32 %v568, %v569
        %v571 = vrot.slane %v570, 1
        %v572 = vadd.f32 %v570, %v571
        %v573 = vrot.slane %v566, 4
        %v574 = vadd.f32 %v566, %v573
        %v575 = vrot.slane %v574, 2
        %v576 = vadd.f32 %v574, %v575
        %v577 = vrot.slane %v576, 1
        %v578 = vadd.f32 %v576, %v577
        %v579 = vadd.f32 %v397, %v455
        %v580 = vadd.f32 %v403, %v461
        %v581 = vadd.f32 %v579, %v514
        %v582 = vadd.f32 %v580, %v520
        %v583 = vadd.f32 %v581, %v572
        %v584 = vadd.f32 %v582, %v578
        %v585 = vmul.f32 %v583, 0.0026041667
        %v586 = vmul.f32 %v584, 0.0026041667
        %v587 = vmul.f32 %v397, 0.010416667
        %v588 = vmul.f32 %v403, 0.010416667
        %v589 = vmul.f32 %v455, 0.010416667
        %v590 = vmul.f32 %v461, 0.010416667
        %v591 = vmul.f32 %v514, 0.010416667
        %v592 = vmul.f32 %v520, 0.010416667
        %v593 = vmul.f32 %v572, 0.010416667
        %v594 = vmul.f32 %v578, 0.010416667
        %s595 = scalar_lea.vmem %s293, 128 [#allocation5]
        %v596 = vld [vmem:[%s595] sm:$0xff]
        %v597 = vld [vmem:[%s595 + $0x8] sm:$0xff]
        %v598 = vld [vmem:[%s595 + $0x20] sm:$0xff]
        %v599 = vld [vmem:[%s595 + $0x28] sm:$0xff]
        %v600 = vld [vmem:[%s595 + $0x40] sm:$0xff]
        %v601 = vld [vmem:[%s595 + $0x48] sm:$0xff]
        %v602 = vld [vmem:[%s595 + $0x60] sm:$0xff]
        %v603 = vld [vmem:[%s595 + $0x68] sm:$0xff]
        %v604 = vld [vmem:[%s595 + $0x80] sm:$0xff]
        %v605 = vld [vmem:[%s595 + $0x88] sm:$0xff]
        %v606 = vld [vmem:[%s595 + $0xa0] sm:$0xff]
        %v607 = vld [vmem:[%s595 + $0xa8] sm:$0xff]
        %v608 = vld [vmem:[%s595 + $0xc0] sm:$0xff]
        %v609 = vld [vmem:[%s595 + $0xc8] sm:$0xff]
        %v610 = vld [vmem:[%s595 + $0xe0] sm:$0xff]
        %v611 = vld [vmem:[%s595 + $0xe8] sm:$0xff]
        %v612 = vadd.f32 %v596, %v598
        %v613 = vadd.f32 %v612, %v600
        %v614 = vadd.f32 %v613, %v602
        %v615 = vadd.f32 %v614, %v604
        %v616 = vadd.f32 %v615, %v606
        %v617 = vadd.f32 %v616, %v608
        %v618 = vadd.f32 %v617, %v610
        %v619 = vadd.f32 %v597, %v599
        %v620 = vadd.f32 %v619, %v601
        %v621 = vadd.f32 %v620, %v603
        %v622 = vadd.f32 %v621, %v605
        %v623 = vadd.f32 %v622, %v607
        %v624 = vadd.f32 %v623, %v609
        %v625 = vadd.f32 %v624, %v611
        %v626 = vrot.slane %v618, 4
        %v627 = vadd.f32 %v618, %v626
        %v628 = vrot.slane %v627, 2
        %v629 = vadd.f32 %v627, %v628
        %v630 = vrot.slane %v629, 1
        %v631 = vadd.f32 %v629, %v630
        %v632 = vrot.slane %v625, 4
        %v633 = vadd.f32 %v625, %v632
        %v634 = vrot.slane %v633, 2
        %v635 = vadd.f32 %v633, %v634
        %v636 = vrot.slane %v635, 1
        %v637 = vadd.f32 %v635, %v636
        %v638 = vld [vmem:[%s595 + $0x10] sm:$0xff]
        %v639 = vld [vmem:[%s595 + $0x18] sm:$0xff]
        %v640 = vld [vmem:[%s595 + $0x30] sm:$0xff]
        %v641 = vld [vmem:[%s595 + $0x38] sm:$0xff]
        %v642 = vld [vmem:[%s595 + $0x50] sm:$0xff]
        %v643 = vld [vmem:[%s595 + $0x58] sm:$0xff]
        %v644 = vld [vmem:[%s595 + $0x70] sm:$0xff]
        %v645 = vld [vmem:[%s595 + $0x78] sm:$0xff]
        %v646 = vld [vmem:[%s595 + $0x90] sm:$0xff]
        %v647 = vld [vmem:[%s595 + $0x98] sm:$0xff]
        %v648 = vld [vmem:[%s595 + $0xb0] sm:$0xff]
        %v649 = vld [vmem:[%s595 + $0xb8] sm:$0xff]
        %v650 = vld [vmem:[%s595 + $0xd0] sm:$0xff]
        %v651 = vld [vmem:[%s595 + $0xd8] sm:$0xff]
        %v652 = vld [vmem:[%s595 + $0xf0] sm:$0xff]
        %v653 = vld [vmem:[%s595 + $0xf8] sm:$0xff]
        %v654 = vadd.f32 %v638, %v640
        %v655 = vadd.f32 %v654, %v642
        %v656 = vadd.f32 %v655, %v644
        %v657 = vadd.f32 %v656, %v646
        %v658 = vadd.f32 %v657, %v648
        %v659 = vadd.f32 %v658, %v650
        %v660 = vadd.f32 %v659, %v652
        %v661 = vadd.f32 %v639, %v641
        %v662 = vadd.f32 %v661, %v643
        %v663 = vadd.f32 %v662, %v645
        %v664 = vadd.f32 %v663, %v647
        %v665 = vadd.f32 %v664, %v649
        %v666 = vadd.f32 %v665, %v651
        %v667 = vadd.f32 %v666, %v653
        %v668 = vrot.slane %v660, 4
        %v669 = vadd.f32 %v660, %v668
        %v670 = vrot.slane %v669, 2
        %v671 = vadd.f32 %v669, %v670
        %v672 = vrot.slane %v671, 1
        %v673 = vadd.f32 %v671, %v672
        %v674 = vrot.slane %v667, 4
        %v675 = vadd.f32 %v667, %v674
        %v676 = vrot.slane %v675, 2
        %v677 = vadd.f32 %v675, %v676
        %v678 = vrot.slane %v677, 1
        %v679 = vadd.f32 %v677, %v678
        %s680 = scalar_lea.vmem %s293, 384 [#allocation5]
        %v681 = vld [vmem:[%s680] sm:$0xff]
        %v682 = vld [vmem:[%s680 + $0x8] sm:$0xff]
        %v683 = vld [vmem:[%s680 + $0x20] sm:$0xff]
        %v684 = vld [vmem:[%s680 + $0x28] sm:$0xff]
        %v685 = vld [vmem:[%s680 + $0x40] sm:$0xff]
        %v686 = vld [vmem:[%s680 + $0x48] sm:$0xff]
        %v687 = vld [vmem:[%s680 + $0x60] sm:$0xff]
        %v688 = vld [vmem:[%s680 + $0x68] sm:$0xff]
        %v689 = vld [vmem:[%s680 + $0x80] sm:$0xff]
        %v690 = vld [vmem:[%s680 + $0x88] sm:$0xff]
        %v691 = vld [vmem:[%s680 + $0xa0] sm:$0xff]
        %v692 = vld [vmem:[%s680 + $0xa8] sm:$0xff]
        %v693 = vld [vmem:[%s680 + $0xc0] sm:$0xff]
        %v694 = vld [vmem:[%s680 + $0xc8] sm:$0xff]
        %v695 = vld [vmem:[%s680 + $0xe0] sm:$0xff]
        %v696 = vld [vmem:[%s680 + $0xe8] sm:$0xff]
        %v697 = vadd.f32 %v681, %v683
        %v698 = vadd.f32 %v697, %v685
        %v699 = vadd.f32 %v698, %v687
        %v700 = vadd.f32 %v699, %v689
        %v701 = vadd.f32 %v700, %v691
        %v702 = vadd.f32 %v701, %v693
        %v703 = vadd.f32 %v702, %v695
        %v704 = vadd.f32 %v682, %v684
        %v705 = vadd.f32 %v704, %v686
        %v706 = vadd.f32 %v705, %v688
        %v707 = vadd.f32 %v706, %v690
        %v708 = vadd.f32 %v707, %v692
        %v709 = vadd.f32 %v708, %v694
        %v710 = vadd.f32 %v709, %v696
        %v711 = vrot.slane %v703, 4
        %v712 = vadd.f32 %v703, %v711
        %v713 = vrot.slane %v712, 2
        %v714 = vadd.f32 %v712, %v713
        %v715 = vrot.slane %v714, 1
        %v716 = vadd.f32 %v714, %v715
        %v717 = vrot.slane %v710, 4
        %v718 = vadd.f32 %v710, %v717
        %v719 = vrot.slane %v718, 2
        %v720 = vadd.f32 %v718, %v719
        %v721 = vrot.slane %v720, 1
        %v722 = vadd.f32 %v720, %v721
        %v723 = vld [vmem:[%s680 + $0x10] sm:$0xff]
        %v724 = vld [vmem:[%s680 + $0x18] sm:$0xff]
        %v725 = vld [vmem:[%s680 + $0x30] sm:$0xff]
        %v726 = vld [vmem:[%s680 + $0x38] sm:$0xff]
        %v727 = vld [vmem:[%s680 + $0x50] sm:$0xff]
        %v728 = vld [vmem:[%s680 + $0x58] sm:$0xff]
        %v729 = vld [vmem:[%s680 + $0x70] sm:$0xff]
        %v730 = vld [vmem:[%s680 + $0x78] sm:$0xff]
        %v731 = vld [vmem:[%s680 + $0x90] sm:$0xff]
        %v732 = vld [vmem:[%s680 + $0x98] sm:$0xff]
        %v733 = vld [vmem:[%s680 + $0xb0] sm:$0xff]
        %v734 = vld [vmem:[%s680 + $0xb8] sm:$0xff]
        %v735 = vld [vmem:[%s680 + $0xd0] sm:$0xff]
        %v736 = vld [vmem:[%s680 + $0xd8] sm:$0xff]
        %v737 = vld [vmem:[%s680 + $0xf0] sm:$0xff]
        %v738 = vld [vmem:[%s680 + $0xf8] sm:$0xff]
        %v739 = vadd.f32 %v723, %v725
        %v740 = vadd.f32 %v739, %v727
        %v741 = vadd.f32 %v740, %v729
        %v742 = vadd.f32 %v741, %v731
        %v743 = vadd.f32 %v742, %v733
        %v744 = vadd.f32 %v743, %v735
        %v745 = vadd.f32 %v744, %v737
        %v746 = vadd.f32 %v724, %v726
        %v747 = vadd.f32 %v746, %v728
        %v748 = vadd.f32 %v747, %v730
        %v749 = vadd.f32 %v748, %v732
        %v750 = vadd.f32 %v749, %v734
        %v751 = vadd.f32 %v750, %v736
        %v752 = vadd.f32 %v751, %v738
        %v753 = vrot.slane %v745, 4
        %v754 = vadd.f32 %v745, %v753
        %v755 = vrot.slane %v754, 2
        %v756 = vadd.f32 %v754, %v755
        %v757 = vrot.slane %v756, 1
        %v758 = vadd.f32 %v756, %v757
        %v759 = vrot.slane %v752, 4
        %v760 = vadd.f32 %v752, %v759
        %v761 = vrot.slane %v760, 2
        %v762 = vadd.f32 %v760, %v761
        %v763 = vrot.slane %v762, 1
        %v764 = vadd.f32 %v762, %v763
        %v765 = vadd.f32 %v631, %v673
        %v766 = vadd.f32 %v637, %v679
        %v767 = vadd.f32 %v765, %v716
        %v768 = vadd.f32 %v766, %v722
        %v769 = vadd.f32 %v767, %v758
        %v770 = vadd.f32 %v768, %v764
        %v771 = vmul.f32 %v769, 0.00390625
        %v772 = vmul.f32 %v770, 0.00390625
        %v773 = vmul.f32 %v631, 0.015625
        %v774 = vmul.f32 %v637, 0.015625
        %v775 = vmul.f32 %v673, 0.015625
        %v776 = vmul.f32 %v679, 0.015625
        %v777 = vmul.f32 %v716, 0.015625
        %v778 = vmul.f32 %v722, 0.015625
        %v779 = vmul.f32 %v758, 0.015625
        %v780 = vmul.f32 %v764, 0.015625
        %s781 = scalar_lea.vmem %s293, 512 [#allocation5]
        %v782 = vld [vmem:[%s781] sm:$0xff]
        %v783 = vld [vmem:[%s781 + $0x8] sm:$0xff]
        %v784 = vld [vmem:[%s781 + $0x20] sm:$0xff]
        %v785 = vld [vmem:[%s781 + $0x28] sm:$0xff]
        %v786 = vld [vmem:[%s781 + $0x40] sm:$0xff]
        %v787 = vld [vmem:[%s781 + $0x48] sm:$0xff]
        %v788 = vld [vmem:[%s781 + $0x60] sm:$0xff]
        %v789 = vld [vmem:[%s781 + $0x68] sm:$0xff]
        %v790 = vadd.f32 %v782, %v784
        %v791 = vadd.f32 %v790, %v786
        %v792 = vadd.f32 %v791, %v788
        %v793 = vadd.f32 %v783, %v785
        %v794 = vadd.f32 %v793, %v787
        %v795 = vadd.f32 %v794, %v789
        %v796 = vrot.slane %v792, 4
        %v797 = vadd.f32 %v792, %v796
        %v798 = vrot.slane %v797, 2
        %v799 = vadd.f32 %v797, %v798
        %v800 = vrot.slane %v799, 1
        %v801 = vadd.f32 %v799, %v800
        %v802 = vrot.slane %v795, 4
        %v803 = vadd.f32 %v795, %v802
        %v804 = vrot.slane %v803, 2
        %v805 = vadd.f32 %v803, %v804
        %v806 = vrot.slane %v805, 1
        %v807 = vadd.f32 %v805, %v806
        %v808 = vld [vmem:[%s781 + $0x10] sm:$0xff]
        %v809 = vld [vmem:[%s781 + $0x18] sm:$0xff]
        %v810 = vld [vmem:[%s781 + $0x30] sm:$0xff]
        %v811 = vld [vmem:[%s781 + $0x38] sm:$0xff]
        %v812 = vld [vmem:[%s781 + $0x50] sm:$0xff]
        %v813 = vld [vmem:[%s781 + $0x58] sm:$0xff]
        %v814 = vld [vmem:[%s781 + $0x70] sm:$0xff]
        %v815 = vld [vmem:[%s781 + $0x78] sm:$0xff]
        %v816 = vadd.f32 %v808, %v810
        %v817 = vadd.f32 %v816, %v812
        %v818 = vadd.f32 %v817, %v814
        %v819 = vadd.f32 %v809, %v811
        %v820 = vadd.f32 %v819, %v813
        %v821 = vadd.f32 %v820, %v815
        %v822 = vrot.slane %v818, 4
        %v823 = vadd.f32 %v818, %v822
        %v824 = vrot.slane %v823, 2
        %v825 = vadd.f32 %v823, %v824
        %v826 = vrot.slane %v825, 1
        %v827 = vadd.f32 %v825, %v826
        %v828 = vrot.slane %v821, 4
        %v829 = vadd.f32 %v821, %v828
        %v830 = vrot.slane %v829, 2
        %v831 = vadd.f32 %v829, %v830
        %v832 = vrot.slane %v831, 1
        %v833 = vadd.f32 %v831, %v832
        %s834 = scalar_lea.vmem %s293, 640 [#allocation5]
        %v835 = vld [vmem:[%s834] sm:$0xff]
        %v836 = vld [vmem:[%s834 + $0x8] sm:$0xff]
        %v837 = vld [vmem:[%s834 + $0x20] sm:$0xff]
        %v838 = vld [vmem:[%s834 + $0x28] sm:$0xff]
        %v839 = vld [vmem:[%s834 + $0x40] sm:$0xff]
        %v840 = vld [vmem:[%s834 + $0x48] sm:$0xff]
        %v841 = vld [vmem:[%s834 + $0x60] sm:$0xff]
        %v842 = vld [vmem:[%s834 + $0x68] sm:$0xff]
        %v843 = vadd.f32 %v835, %v837
        %v844 = vadd.f32 %v843, %v839
        %v845 = vadd.f32 %v844, %v841
        %v846 = vadd.f32 %v836, %v838
        %v847 = vadd.f32 %v846, %v840
        %v848 = vadd.f32 %v847, %v842
        %v849 = vrot.slane %v845, 4
        %v850 = vadd.f32 %v845, %v849
        %v851 = vrot.slane %v850, 2
        %v852 = vadd.f32 %v850, %v851
        %v853 = vrot.slane %v852, 1
        %v854 = vadd.f32 %v852, %v853
        %v855 = vrot.slane %v848, 4
        %v856 = vadd.f32 %v848, %v855
        %v857 = vrot.slane %v856, 2
        %v858 = vadd.f32 %v856, %v857
        %v859 = vrot.slane %v858, 1
        %v860 = vadd.f32 %v858, %v859
        %v861 = vld [vmem:[%s834 + $0x10] sm:$0xff]
        %v862 = vld [vmem:[%s834 + $0x18] sm:$0xff]
        %v863 = vld [vmem:[%s834 + $0x30] sm:$0xff]
        %v864 = vld [vmem:[%s834 + $0x38] sm:$0xff]
        %v865 = vld [vmem:[%s834 + $0x50] sm:$0xff]
        %v866 = vld [vmem:[%s834 + $0x58] sm:$0xff]
        %v867 = vld [vmem:[%s834 + $0x70] sm:$0xff]
        %v868 = vld [vmem:[%s834 + $0x78] sm:$0xff]
        %v869 = vadd.f32 %v861, %v863
        %v870 = vadd.f32 %v869, %v865
        %v871 = vadd.f32 %v870, %v867
        %v872 = vadd.f32 %v862, %v864
        %v873 = vadd.f32 %v872, %v866
        %v874 = vadd.f32 %v873, %v868
        %v875 = vrot.slane %v871, 4
        %v876 = vadd.f32 %v871, %v875
        %v877 = vrot.slane %v876, 2
        %v878 = vadd.f32 %v876, %v877
        %v879 = vrot.slane %v878, 1
        %v880 = vadd.f32 %v878, %v879
        %v881 = vrot.slane %v874, 4
        %v882 = vadd.f32 %v874, %v881
        %v883 = vrot.slane %v882, 2
        %v884 = vadd.f32 %v882, %v883
        %v885 = vrot.slane %v884, 1
        %v886 = vadd.f32 %v884, %v885
        %v887 = vadd.f32 %v801, %v827
        %v888 = vadd.f32 %v807, %v833
        %v889 = vadd.f32 %v887, %v854
        %v890 = vadd.f32 %v888, %v860
        %v891 = vadd.f32 %v889, %v880
        %v892 = vadd.f32 %v890, %v886
        %v893 = vmul.f32 %v891, 0.0078125
        %v894 = vmul.f32 %v892, 0.0078125
        %v895 = vmul.f32 %v801, 0.03125
        %v896 = vmul.f32 %v807, 0.03125
        %v897 = vmul.f32 %v827, 0.03125
        %v898 = vmul.f32 %v833, 0.03125
        %v899 = vmul.f32 %v854, 0.03125
        %v900 = vmul.f32 %v860, 0.03125
        %v901 = vmul.f32 %v880, 0.03125
        %v902 = vmul.f32 %v886, 0.03125
        %v903 = vld [vmem:[%s302] sm:$0xff]
        %v904 = vld [vmem:[%s302 + $0x8] sm:$0xff]
        %v905 = vld [vmem:[%s302 + $0x20] sm:$0xff]
        %v906 = vld [vmem:[%s302 + $0x28] sm:$0xff]
        %v907 = vld [vmem:[%s302 + $0x40] sm:$0xff]
        %v908 = vld [vmem:[%s302 + $0x48] sm:$0xff]
        %v909 = vld [vmem:[%s302 + $0x60] sm:$0xff]
        %v910 = vld [vmem:[%s302 + $0x68] sm:$0xff]
        %v911 = vld [vmem:[%s302 + $0x80] sm:$0xff]
        %v912 = vld [vmem:[%s302 + $0x88] sm:$0xff]
        %v913 = vld [vmem:[%s302 + $0xa0] sm:$0xff]
        %v914 = vld [vmem:[%s302 + $0xa8] sm:$0xff]
        %v915 = vadd.f32 %v903, %v905
        %v916 = vadd.f32 %v915, %v907
        %v917 = vadd.f32 %v916, %v909
        %v918 = vadd.f32 %v917, %v911
        %v919 = vadd.f32 %v918, %v913
        %v920 = vadd.f32 %v904, %v906
        %v921 = vadd.f32 %v920, %v908
        %v922 = vadd.f32 %v921, %v910
        %v923 = vadd.f32 %v922, %v912
        %v924 = vadd.f32 %v923, %v914
        %v925 = vrot.slane %v919, 4
        %v926 = vadd.f32 %v919, %v925
        %v927 = vrot.slane %v926, 2
        %v928 = vadd.f32 %v926, %v927
        %v929 = vrot.slane %v928, 1
        %v930 = vadd.f32 %v928, %v929
        %v931 = vrot.slane %v924, 4
        %v932 = vadd.f32 %v924, %v931
        %v933 = vrot.slane %v932, 2
        %v934 = vadd.f32 %v932, %v933
        %v935 = vrot.slane %v934, 1
        %v936 = vadd.f32 %v934, %v935
        %v937 = vld [vmem:[%s302 + $0x10] sm:$0xff]
        %v938 = vld [vmem:[%s302 + $0x18] sm:$0xff]
        %v939 = vld [vmem:[%s302 + $0x30] sm:$0xff]
        %v940 = vld [vmem:[%s302 + $0x38] sm:$0xff]
        %v941 = vld [vmem:[%s302 + $0x50] sm:$0xff]
        %v942 = vld [vmem:[%s302 + $0x58] sm:$0xff]
        %v943 = vld [vmem:[%s302 + $0x70] sm:$0xff]
        %v944 = vld [vmem:[%s302 + $0x78] sm:$0xff]
        %v945 = vld [vmem:[%s302 + $0x90] sm:$0xff]
        %v946 = vld [vmem:[%s302 + $0x98] sm:$0xff]
        %v947 = vld [vmem:[%s302 + $0xb0] sm:$0xff]
        %v948 = vld [vmem:[%s302 + $0xb8] sm:$0xff]
        %v949 = vadd.f32 %v937, %v939
        %v950 = vadd.f32 %v949, %v941
        %v951 = vadd.f32 %v950, %v943
        %v952 = vadd.f32 %v951, %v945
        %v953 = vadd.f32 %v952, %v947
        %v954 = vadd.f32 %v938, %v940
        %v955 = vadd.f32 %v954, %v942
        %v956 = vadd.f32 %v955, %v944
        %v957 = vadd.f32 %v956, %v946
        %v958 = vadd.f32 %v957, %v948
        %v959 = vrot.slane %v953, 4
        %v960 = vadd.f32 %v953, %v959
        %v961 = vrot.slane %v960, 2
        %v962 = vadd.f32 %v960, %v961
        %v963 = vrot.slane %v962, 1
        %v964 = vadd.f32 %v962, %v963
        %v965 = vrot.slane %v958, 4
        %v966 = vadd.f32 %v958, %v965
        %v967 = vrot.slane %v966, 2
        %v968 = vadd.f32 %v966, %v967
        %v969 = vrot.slane %v968, 1
        %v970 = vadd.f32 %v968, %v969
        %s971 = scalar_lea.vmem %s302, 192 [#allocation7]
        %v972 = vld [vmem:[%s971] sm:$0xff]
        %v973 = vld [vmem:[%s971 + $0x8] sm:$0xff]
        %v974 = vld [vmem:[%s971 + $0x20] sm:$0xff]
        %v975 = vld [vmem:[%s971 + $0x28] sm:$0xff]
        %v976 = vld [vmem:[%s971 + $0x40] sm:$0xff]
        %v977 = vld [vmem:[%s971 + $0x48] sm:$0xff]
        %v978 = vld [vmem:[%s971 + $0x60] sm:$0xff]
        %v979 = vld [vmem:[%s971 + $0x68] sm:$0xff]
        %v980 = vld [vmem:[%s971 + $0x80] sm:$0xff]
        %v981 = vld [vmem:[%s971 + $0x88] sm:$0xff]
        %v982 = vld [vmem:[%s971 + $0xa0] sm:$0xff]
        %v983 = vld [vmem:[%s971 + $0xa8] sm:$0xff]
        %v984 = vadd.f32 %v972, %v974
        %v985 = vadd.f32 %v984, %v976
        %v986 = vadd.f32 %v985, %v978
        %v987 = vadd.f32 %v986, %v980
        %v988 = vadd.f32 %v987, %v982
        %v989 = vadd.f32 %v973, %v975
        %v990 = vadd.f32 %v989, %v977
        %v991 = vadd.f32 %v990, %v979
        %v992 = vadd.f32 %v991, %v981
        %v993 = vadd.f32 %v992, %v983
        %v994 = vrot.slane %v988, 4
        %v995 = vadd.f32 %v988, %v994
        %v996 = vrot.slane %v995, 2
        %v997 = vadd.f32 %v995, %v996
        %v998 = vrot.slane %v997, 1
        %v999 = vadd.f32 %v997, %v998
        %v1000 = vrot.slane %v993, 4
        %v1001 = vadd.f32 %v993, %v1000
        %v1002 = vrot.slane %v1001, 2
        %v1003 = vadd.f32 %v1001, %v1002
        %v1004 = vrot.slane %v1003, 1
        %v1005 = vadd.f32 %v1003, %v1004
        %v1006 = vld [vmem:[%s971 + $0x10] sm:$0xff]
        %v1007 = vld [vmem:[%s971 + $0x18] sm:$0xff]
        %v1008 = vld [vmem:[%s971 + $0x30] sm:$0xff]
        %v1009 = vld [vmem:[%s971 + $0x38] sm:$0xff]
        %v1010 = vld [vmem:[%s971 + $0x50] sm:$0xff]
        %v1011 = vld [vmem:[%s971 + $0x58] sm:$0xff]
        %v1012 = vld [vmem:[%s971 + $0x70] sm:$0xff]
        %v1013 = vld [vmem:[%s971 + $0x78] sm:$0xff]
        %v1014 = vld [vmem:[%s971 + $0x90] sm:$0xff]
        %v1015 = vld [vmem:[%s971 + $0x98] sm:$0xff]
        %v1016 = vld [vmem:[%s971 + $0xb0] sm:$0xff]
        %v1017 = vld [vmem:[%s971 + $0xb8] sm:$0xff]
        %v1018 = vadd.f32 %v1006, %v1008
        %v1019 = vadd.f32 %v1018, %v1010
        %v1020 = vadd.f32 %v1019, %v1012
        %v1021 = vadd.f32 %v1020, %v1014
        %v1022 = vadd.f32 %v1021, %v1016
        %v1023 = vadd.f32 %v1007, %v1009
        %v1024 = vadd.f32 %v1023, %v1011
        %v1025 = vadd.f32 %v1024, %v1013
        %v1026 = vadd.f32 %v1025, %v1015
        %v1027 = vadd.f32 %v1026, %v1017
        %v1028 = vrot.slane %v1022, 4
        %v1029 = vadd.f32 %v1022, %v1028
        %v1030 = vrot.slane %v1029, 2
        %v1031 = vadd.f32 %v1029, %v1030
        %v1032 = vrot.slane %v1031, 1
        %v1033 = vadd.f32 %v1031, %v1032
        %v1034 = vrot.slane %v1027, 4
        %v1035 = vadd.f32 %v1027, %v1034
        %v1036 = vrot.slane %v1035, 2
        %v1037 = vadd.f32 %v1035, %v1036
        %v1038 = vrot.slane %v1037, 1
        %v1039 = vadd.f32 %v1037, %v1038
        %v1040 = vadd.f32 %v930, %v964
        %v1041 = vadd.f32 %v936, %v970
        %v1042 = vadd.f32 %v1040, %v999
        %v1043 = vadd.f32 %v1041, %v1005
        %v1044 = vadd.f32 %v1042, %v1033
        %v1045 = vadd.f32 %v1043, %v1039
        %v1046 = vmul.f32 %v1044, 0.0052083335
        %v1047 = vmul.f32 %v1045, 0.0052083335
        %v1048 = vmul.f32 %v930, 0.020833334
        %v1049 = vmul.f32 %v936, 0.020833334
        %v1050 = vmul.f32 %v964, 0.020833334
        %v1051 = vmul.f32 %v970, 0.020833334
        %v1052 = vmul.f32 %v999, 0.020833334
        %v1053 = vmul.f32 %v1005, 0.020833334
        %v1054 = vmul.f32 %v1033, 0.020833334
        %v1055 = vmul.f32 %v1039, 0.020833334
        %v1056 = vld [vmem:[#allocation8] sm:$0xff]
        %v1057 = vld [vmem:[#allocation8 + $0x8] sm:$0xff]
        %v1058 = vld [vmem:[#allocation8 + $0x10] sm:$0xff]
        %v1059 = vld [vmem:[#allocation8 + $0x18] sm:$0xff]
        %v1060 = vld [vmem:[#allocation8 + $0x20] sm:$0xff]
        %v1061 = vld [vmem:[#allocation8 + $0x28] sm:$0xff]
        %v1062 = vld [vmem:[#allocation8 + $0x30] sm:$0xff]
        %v1063 = vld [vmem:[#allocation8 + $0x38] sm:$0xff]
        %v1064 = vld [vmem:[#allocation8 + $0x40] sm:$0xff]
        %v1065 = vld [vmem:[#allocation8 + $0x48] sm:$0xff]
        %v1066 = vld [vmem:[#allocation8 + $0x50] sm:$0xff]
        %v1067 = vld [vmem:[#allocation8 + $0x58] sm:$0xff]
        %v1068 = vld [vmem:[#allocation8 + $0x60] sm:$0xff]
        %v1069 = vld [vmem:[#allocation8 + $0x68] sm:$0xff]
        %v1070 = vld [vmem:[#allocation8 + $0x70] sm:$0xff]
        %v1071 = vld [vmem:[#allocation8 + $0x78] sm:$0xff]
        %v1072 = vld [vmem:[#allocation8 + $0x80] sm:$0xff]
        %v1073 = vld [vmem:[#allocation8 + $0x88] sm:$0xff]
        %v1074 = vld [vmem:[#allocation8 + $0x90] sm:$0xff]
        %v1075 = vld [vmem:[#allocation8 + $0x98] sm:$0xff]
        %v1076 = vld [vmem:[#allocation8 + $0xa0] sm:$0xff]
        %v1077 = vld [vmem:[#allocation8 + $0xa8] sm:$0xff]
        %v1078 = vld [vmem:[#allocation8 + $0xb0] sm:$0xff]
        %v1079 = vld [vmem:[#allocation8 + $0xb8] sm:$0xff]
        %v1080 = vld [vmem:[#allocation8 + $0xc0] sm:$0xff]
        %v1081 = vld [vmem:[#allocation8 + $0xc8] sm:$0xff]
        %v1082 = vld [vmem:[#allocation8 + $0xd0] sm:$0xff]
        %v1083 = vld [vmem:[#allocation8 + $0xd8] sm:$0xff]
        %v1084 = vld [vmem:[#allocation8 + $0xe0] sm:$0xff]
        %v1085 = vld [vmem:[#allocation8 + $0xe8] sm:$0xff]
        %v1086 = vld [vmem:[#allocation8 + $0xf0] sm:$0xff]
        %v1087 = vld [vmem:[#allocation8 + $0xf8] sm:$0xff]
        %v1088 = vld [vmem:[#allocation8 + $0x100] sm:$0xff]
        %v1089 = vld [vmem:[#allocation8 + $0x108] sm:$0xff]
        %v1090 = vld [vmem:[#allocation8 + $0x110] sm:$0xff]
        %v1091 = vld [vmem:[#allocation8 + $0x118] sm:$0xff]
        %v1092 = vld [vmem:[#allocation8 + $0x120] sm:$0xff]
        %v1093 = vld [vmem:[#allocation8 + $0x128] sm:$0xff]
        %v1094 = vld [vmem:[#allocation8 + $0x130] sm:$0xff]
        %v1095 = vld [vmem:[#allocation8 + $0x138] sm:$0xff]
        %v1096 = vld [vmem:[#allocation8 + $0x140] sm:$0xff]
        %v1097 = vld [vmem:[#allocation8 + $0x148] sm:$0xff]
        %v1098 = vld [vmem:[#allocation8 + $0x150] sm:$0xff]
        %v1099 = vld [vmem:[#allocation8 + $0x158] sm:$0xff]
        %v1100 = vld [vmem:[#allocation8 + $0x160] sm:$0xff]
        %v1101 = vld [vmem:[#allocation8 + $0x168] sm:$0xff]
        %v1102 = vld [vmem:[#allocation8 + $0x170] sm:$0xff]
        %v1103 = vld [vmem:[#allocation8 + $0x178] sm:$0xff]
        %v1104 = vld [vmem:[#allocation8 + $0x180] sm:$0xff]
        %v1105 = vld [vmem:[#allocation8 + $0x188] sm:$0xff]
        %v1106 = vld [vmem:[#allocation8 + $0x190] sm:$0xff]
        %v1107 = vld [vmem:[#allocation8 + $0x198] sm:$0xff]
        %v1108 = vld [vmem:[#allocation8 + $0x1a0] sm:$0xff]
        %v1109 = vld [vmem:[#allocation8 + $0x1a8] sm:$0xff]
        %v1110 = vld [vmem:[#allocation8 + $0x1b0] sm:$0xff]
        %v1111 = vld [vmem:[#allocation8 + $0x1b8] sm:$0xff]
        %v1112 = vld [vmem:[#allocation8 + $0x1c0] sm:$0xff]
        %v1113 = vld [vmem:[#allocation8 + $0x1c8] sm:$0xff]
        %v1114 = vld [vmem:[#allocation8 + $0x1d0] sm:$0xff]
        %v1115 = vld [vmem:[#allocation8 + $0x1d8] sm:$0xff]
        %v1116 = vld [vmem:[#allocation8 + $0x1e0] sm:$0xff]
        %v1117 = vld [vmem:[#allocation8 + $0x1e8] sm:$0xff]
        %v1118 = vld [vmem:[#allocation8 + $0x1f0] sm:$0xff]
        %v1119 = vld [vmem:[#allocation8 + $0x1f8] sm:$0xff]
        %v1120 = vld [vmem:[#allocation8 + $0x200] sm:$0xff]
        %v1121 = vld [vmem:[#allocation8 + $0x208] sm:$0xff]
        %v1122 = vld [vmem:[#allocation8 + $0x210] sm:$0xff]
        %v1123 = vld [vmem:[#allocation8 + $0x218] sm:$0xff]
        %v1124 = vld [vmem:[#allocation8 + $0x220] sm:$0xff]
        %v1125 = vld [vmem:[#allocation8 + $0x228] sm:$0xff]
        %v1126 = vld [vmem:[#allocation8 + $0x230] sm:$0xff]
        %v1127 = vld [vmem:[#allocation8 + $0x238] sm:$0xff]
        %v1128 = vld [vmem:[#allocation8 + $0x240] sm:$0xff]
        %v1129 = vld [vmem:[#allocation8 + $0x248] sm:$0xff]
        %v1130 = vld [vmem:[#allocation8 + $0x250] sm:$0xff]
        %v1131 = vld [vmem:[#allocation8 + $0x258] sm:$0xff]
        %v1132 = vld [vmem:[#allocation8 + $0x260] sm:$0xff]
        %v1133 = vld [vmem:[#allocation8 + $0x268] sm:$0xff]
        %v1134 = vld [vmem:[#allocation8 + $0x270] sm:$0xff]
        %v1135 = vld [vmem:[#allocation8 + $0x278] sm:$0xff]
        %v1136 = vld [vmem:[#allocation8 + $0x280] sm:$0xff]
        %v1137 = vld [vmem:[#allocation8 + $0x288] sm:$0xff]
        %v1138 = vld [vmem:[#allocation8 + $0x290] sm:$0xff]
        %v1139 = vld [vmem:[#allocation8 + $0x298] sm:$0xff]
        %v1140 = vld [vmem:[#allocation8 + $0x2a0] sm:$0xff]
        %v1141 = vld [vmem:[#allocation8 + $0x2a8] sm:$0xff]
        %v1142 = vld [vmem:[#allocation8 + $0x2b0] sm:$0xff]
        %v1143 = vld [vmem:[#allocation8 + $0x2b8] sm:$0xff]
        %v1144 = vld [vmem:[#allocation8 + $0x2c0] sm:$0xff]
        %v1145 = vld [vmem:[#allocation8 + $0x2c8] sm:$0xff]
        %v1146 = vld [vmem:[#allocation8 + $0x2d0] sm:$0xff]
        %v1147 = vld [vmem:[#allocation8 + $0x2d8] sm:$0xff]
        %v1148 = vld [vmem:[#allocation8 + $0x2e0] sm:$0xff]
        %v1149 = vld [vmem:[#allocation8 + $0x2e8] sm:$0xff]
        %v1150 = vld [vmem:[#allocation8 + $0x2f0] sm:$0xff]
        %v1151 = vld [vmem:[#allocation8 + $0x2f8] sm:$0xff]
        %v1152 = vld [vmem:[#allocation8 + $0x300] sm:$0xff]
        %v1153 = vld [vmem:[#allocation8 + $0x308] sm:$0xff]
        %v1154 = vld [vmem:[#allocation8 + $0x310] sm:$0xff]
        %v1155 = vld [vmem:[#allocation8 + $0x318] sm:$0xff]
        %v1156 = vld [vmem:[#allocation8 + $0x320] sm:$0xff]
        %v1157 = vld [vmem:[#allocation8 + $0x328] sm:$0xff]
        %v1158 = vld [vmem:[#allocation8 + $0x330] sm:$0xff]
        %v1159 = vld [vmem:[#allocation8 + $0x338] sm:$0xff]
        %v1160 = vld [vmem:[#allocation8 + $0x340] sm:$0xff]
        %v1161 = vld [vmem:[#allocation8 + $0x348] sm:$0xff]
        %v1162 = vld [vmem:[#allocation8 + $0x350] sm:$0xff]
        %v1163 = vld [vmem:[#allocation8 + $0x358] sm:$0xff]
        %v1164 = vld [vmem:[#allocation8 + $0x360] sm:$0xff]
        %v1165 = vld [vmem:[#allocation8 + $0x368] sm:$0xff]
        %v1166 = vld [vmem:[#allocation8 + $0x370] sm:$0xff]
        %v1167 = vld [vmem:[#allocation8 + $0x378] sm:$0xff]
        %v1168 = vld [vmem:[#allocation8 + $0x380] sm:$0xff]
        %v1169 = vld [vmem:[#allocation8 + $0x388] sm:$0xff]
        %v1170 = vld [vmem:[#allocation8 + $0x390] sm:$0xff]
        %v1171 = vld [vmem:[#allocation8 + $0x398] sm:$0xff]
        %v1172 = vld [vmem:[#allocation8 + $0x3a0] sm:$0xff]
        %v1173 = vld [vmem:[#allocation8 + $0x3a8] sm:$0xff]
        %v1174 = vld [vmem:[#allocation8 + $0x3b0] sm:$0xff]
        %v1175 = vld [vmem:[#allocation8 + $0x3b8] sm:$0xff]
        %v1176 = vld [vmem:[#allocation8 + $0x3c0] sm:$0xff]
        %v1177 = vld [vmem:[#allocation8 + $0x3c8] sm:$0xff]
        %v1178 = vld [vmem:[#allocation8 + $0x3d0] sm:$0xff]
        %v1179 = vld [vmem:[#allocation8 + $0x3d8] sm:$0xff]
        %v1180 = vld [vmem:[#allocation8 + $0x3e0] sm:$0xff]
        %v1181 = vld [vmem:[#allocation8 + $0x3e8] sm:$0xff]
        %v1182 = vld [vmem:[#allocation8 + $0x3f0] sm:$0xff]
        %v1183 = vld [vmem:[#allocation8 + $0x3f8] sm:$0xff]
        %v1184 = vld [vmem:[#allocation8 + $0x400] sm:$0xff]
        %v1185 = vld [vmem:[#allocation8 + $0x408] sm:$0xff]
        %v1186 = vld [vmem:[#allocation8 + $0x410] sm:$0xff]
        %v1187 = vld [vmem:[#allocation8 + $0x418] sm:$0xff]
        %v1188 = vld [vmem:[#allocation8 + $0x420] sm:$0xff]
        %v1189 = vld [vmem:[#allocation8 + $0x428] sm:$0xff]
        %v1190 = vld [vmem:[#allocation8 + $0x430] sm:$0xff]
        %v1191 = vld [vmem:[#allocation8 + $0x438] sm:$0xff]
        %v1192 = vld [vmem:[#allocation8 + $0x440] sm:$0xff]
        %v1193 = vld [vmem:[#allocation8 + $0x448] sm:$0xff]
        %v1194 = vld [vmem:[#allocation8 + $0x450] sm:$0xff]
        %v1195 = vld [vmem:[#allocation8 + $0x458] sm:$0xff]
        %v1196 = vld [vmem:[#allocation8 + $0x460] sm:$0xff]
        %v1197 = vld [vmem:[#allocation8 + $0x468] sm:$0xff]
        %v1198 = vld [vmem:[#allocation8 + $0x470] sm:$0xff]
        %v1199 = vld [vmem:[#allocation8 + $0x478] sm:$0xff]
        %v1200 = vld [vmem:[#allocation8 + $0x480] sm:$0xff]
        %v1201 = vld [vmem:[#allocation8 + $0x488] sm:$0xff]
        %v1202 = vld [vmem:[#allocation8 + $0x490] sm:$0xff]
        %v1203 = vld [vmem:[#allocation8 + $0x498] sm:$0xff]
        %v1204 = vld [vmem:[#allocation8 + $0x4a0] sm:$0xff]
        %v1205 = vld [vmem:[#allocation8 + $0x4a8] sm:$0xff]
        %v1206 = vld [vmem:[#allocation8 + $0x4b0] sm:$0xff]
        %v1207 = vld [vmem:[#allocation8 + $0x4b8] sm:$0xff]
        %v1208 = vld [vmem:[#allocation8 + $0x4c0] sm:$0xff]
        %v1209 = vld [vmem:[#allocation8 + $0x4c8] sm:$0xff]
        %v1210 = vld [vmem:[#allocation8 + $0x4d0] sm:$0xff]
        %v1211 = vld [vmem:[#allocation8 + $0x4d8] sm:$0xff]
        %v1212 = vld [vmem:[#allocation8 + $0x4e0] sm:$0xff]
        %v1213 = vld [vmem:[#allocation8 + $0x4e8] sm:$0xff]
        %v1214 = vld [vmem:[#allocation8 + $0x4f0] sm:$0xff]
        %v1215 = vld [vmem:[#allocation8 + $0x4f8] sm:$0xff]
        %v1216 = vld [vmem:[#allocation8 + $0x500] sm:$0xff]
        %v1217 = vld [vmem:[#allocation8 + $0x508] sm:$0xff]
        %v1218 = vld [vmem:[#allocation8 + $0x510] sm:$0xff]
        %v1219 = vld [vmem:[#allocation8 + $0x518] sm:$0xff]
        %v1220 = vld [vmem:[#allocation8 + $0x520] sm:$0xff]
        %v1221 = vld [vmem:[#allocation8 + $0x528] sm:$0xff]
        %v1222 = vld [vmem:[#allocation8 + $0x530] sm:$0xff]
        %v1223 = vld [vmem:[#allocation8 + $0x538] sm:$0xff]
        %v1224 = vld [vmem:[#allocation8 + $0x540] sm:$0xff]
        %v1225 = vld [vmem:[#allocation8 + $0x548] sm:$0xff]
        %v1226 = vld [vmem:[#allocation8 + $0x550] sm:$0xff]
        %v1227 = vld [vmem:[#allocation8 + $0x558] sm:$0xff]
        %v1228 = vld [vmem:[#allocation8 + $0x560] sm:$0xff]
        %v1229 = vld [vmem:[#allocation8 + $0x568] sm:$0xff]
        %v1230 = vld [vmem:[#allocation8 + $0x570] sm:$0xff]
        %v1231 = vld [vmem:[#allocation8 + $0x578] sm:$0xff]
        %v1232 = vld [vmem:[#allocation8 + $0x580] sm:$0xff]
        %v1233 = vld [vmem:[#allocation8 + $0x588] sm:$0xff]
        %v1234 = vld [vmem:[#allocation8 + $0x590] sm:$0xff]
        %v1235 = vld [vmem:[#allocation8 + $0x598] sm:$0xff]
        %v1236 = vld [vmem:[#allocation8 + $0x5a0] sm:$0xff]
        %v1237 = vld [vmem:[#allocation8 + $0x5a8] sm:$0xff]
        %v1238 = vld [vmem:[#allocation8 + $0x5b0] sm:$0xff]
        %v1239 = vld [vmem:[#allocation8 + $0x5b8] sm:$0xff]
        %v1240 = vld [vmem:[#allocation8 + $0x5c0] sm:$0xff]
        %v1241 = vld [vmem:[#allocation8 + $0x5c8] sm:$0xff]
        %v1242 = vld [vmem:[#allocation8 + $0x5d0] sm:$0xff]
        %v1243 = vld [vmem:[#allocation8 + $0x5d8] sm:$0xff]
        %v1244 = vld [vmem:[#allocation8 + $0x5e0] sm:$0xff]
        %v1245 = vld [vmem:[#allocation8 + $0x5e8] sm:$0xff]
        %v1246 = vld [vmem:[#allocation8 + $0x5f0] sm:$0xff]
        %v1247 = vld [vmem:[#allocation8 + $0x5f8] sm:$0xff]
        %v1248 = vld [vmem:[#allocation8 + $0x600] sm:$0xff]
        %v1249 = vld [vmem:[#allocation8 + $0x608] sm:$0xff]
        %v1250 = vld [vmem:[#allocation8 + $0x610] sm:$0xff]
        %v1251 = vld [vmem:[#allocation8 + $0x618] sm:$0xff]
        %v1252 = vld [vmem:[#allocation8 + $0x620] sm:$0xff]
        %v1253 = vld [vmem:[#allocation8 + $0x628] sm:$0xff]
        %v1254 = vld [vmem:[#allocation8 + $0x630] sm:$0xff]
        %v1255 = vld [vmem:[#allocation8 + $0x638] sm:$0xff]
        %v1256 = vld [vmem:[#allocation8 + $0x640] sm:$0xff]
        %v1257 = vld [vmem:[#allocation8 + $0x648] sm:$0xff]
        %v1258 = vld [vmem:[#allocation8 + $0x650] sm:$0xff]
        %v1259 = vld [vmem:[#allocation8 + $0x658] sm:$0xff]
        %v1260 = vld [vmem:[#allocation8 + $0x660] sm:$0xff]
        %v1261 = vld [vmem:[#allocation8 + $0x668] sm:$0xff]
        %v1262 = vld [vmem:[#allocation8 + $0x670] sm:$0xff]
        %v1263 = vld [vmem:[#allocation8 + $0x678] sm:$0xff]
        %v1264 = vld [vmem:[#allocation8 + $0x680] sm:$0xff]
        %v1265 = vld [vmem:[#allocation8 + $0x688] sm:$0xff]
        %v1266 = vld [vmem:[#allocation8 + $0x690] sm:$0xff]
        %v1267 = vld [vmem:[#allocation8 + $0x698] sm:$0xff]
        %v1268 = vld [vmem:[#allocation8 + $0x6a0] sm:$0xff]
        %v1269 = vld [vmem:[#allocation8 + $0x6a8] sm:$0xff]
        %v1270 = vld [vmem:[#allocation8 + $0x6b0] sm:$0xff]
        %v1271 = vld [vmem:[#allocation8 + $0x6b8] sm:$0xff]
        %v1272 = vld [vmem:[#allocation8 + $0x6c0] sm:$0xff]
        %v1273 = vld [vmem:[#allocation8 + $0x6c8] sm:$0xff]
        %v1274 = vld [vmem:[#allocation8 + $0x6d0] sm:$0xff]
        %v1275 = vld [vmem:[#allocation8 + $0x6d8] sm:$0xff]
        %v1276 = vld [vmem:[#allocation8 + $0x6e0] sm:$0xff]
        %v1277 = vld [vmem:[#allocation8 + $0x6e8] sm:$0xff]
        %v1278 = vld [vmem:[#allocation8 + $0x6f0] sm:$0xff]
        %v1279 = vld [vmem:[#allocation8 + $0x6f8] sm:$0xff]
        %v1280 = vld [vmem:[#allocation8 + $0x700] sm:$0xff]
        %v1281 = vld [vmem:[#allocation8 + $0x708] sm:$0xff]
        %v1282 = vld [vmem:[#allocation8 + $0x710] sm:$0xff]
        %v1283 = vld [vmem:[#allocation8 + $0x718] sm:$0xff]
        %v1284 = vld [vmem:[#allocation8 + $0x720] sm:$0xff]
        %v1285 = vld [vmem:[#allocation8 + $0x728] sm:$0xff]
        %v1286 = vld [vmem:[#allocation8 + $0x730] sm:$0xff]
        %v1287 = vld [vmem:[#allocation8 + $0x738] sm:$0xff]
        %v1288 = vld [vmem:[#allocation8 + $0x740] sm:$0xff]
        %v1289 = vld [vmem:[#allocation8 + $0x748] sm:$0xff]
        %v1290 = vld [vmem:[#allocation8 + $0x750] sm:$0xff]
        %v1291 = vld [vmem:[#allocation8 + $0x758] sm:$0xff]
        %v1292 = vld [vmem:[#allocation8 + $0x760] sm:$0xff]
        %v1293 = vld [vmem:[#allocation8 + $0x768] sm:$0xff]
        %v1294 = vld [vmem:[#allocation8 + $0x770] sm:$0xff]
        %v1295 = vld [vmem:[#allocation8 + $0x778] sm:$0xff]
        %v1296 = vld [vmem:[#allocation8 + $0x780] sm:$0xff]
        %v1297 = vld [vmem:[#allocation8 + $0x788] sm:$0xff]
        %v1298 = vld [vmem:[#allocation8 + $0x790] sm:$0xff]
        %v1299 = vld [vmem:[#allocation8 + $0x798] sm:$0xff]
        %v1300 = vld [vmem:[#allocation8 + $0x7a0] sm:$0xff]
        %v1301 = vld [vmem:[#allocation8 + $0x7a8] sm:$0xff]
        %v1302 = vld [vmem:[#allocation8 + $0x7b0] sm:$0xff]
        %v1303 = vld [vmem:[#allocation8 + $0x7b8] sm:$0xff]
        %v1304 = vld [vmem:[#allocation8 + $0x7c0] sm:$0xff]
        %v1305 = vld [vmem:[#allocation8 + $0x7c8] sm:$0xff]
        %v1306 = vld [vmem:[#allocation8 + $0x7d0] sm:$0xff]
        %v1307 = vld [vmem:[#allocation8 + $0x7d8] sm:$0xff]
        %v1308 = vld [vmem:[#allocation8 + $0x7e0] sm:$0xff]
        %v1309 = vld [vmem:[#allocation8 + $0x7e8] sm:$0xff]
        %v1310 = vld [vmem:[#allocation8 + $0x7f0] sm:$0xff]
        %v1311 = vld [vmem:[#allocation8 + $0x7f8] sm:$0xff]
        %v1312 = vld [vmem:[#allocation8 + $0x800] sm:$0xff]
        %v1313 = vld [vmem:[#allocation8 + $0x808] sm:$0xff]
        %v1314 = vld [vmem:[#allocation8 + $0x810] sm:$0xff]
        %v1315 = vld [vmem:[#allocation8 + $0x818] sm:$0xff]
        %v1316 = vld [vmem:[#allocation8 + $0x820] sm:$0xff]
        %v1317 = vld [vmem:[#allocation8 + $0x828] sm:$0xff]
        %v1318 = vld [vmem:[#allocation8 + $0x830] sm:$0xff]
        %v1319 = vld [vmem:[#allocation8 + $0x838] sm:$0xff]
        %v1320 = vld [vmem:[#allocation8 + $0x840] sm:$0xff]
        %v1321 = vld [vmem:[#allocation8 + $0x848] sm:$0xff]
        %v1322 = vld [vmem:[#allocation8 + $0x850] sm:$0xff]
        %v1323 = vld [vmem:[#allocation8 + $0x858] sm:$0xff]
        %v1324 = vld [vmem:[#allocation8 + $0x860] sm:$0xff]
        %v1325 = vld [vmem:[#allocation8 + $0x868] sm:$0xff]
        %v1326 = vld [vmem:[#allocation8 + $0x870] sm:$0xff]
        %v1327 = vld [vmem:[#allocation8 + $0x878] sm:$0xff]
        %v1328 = vld [vmem:[#allocation8 + $0x880] sm:$0xff]
        %v1329 = vld [vmem:[#allocation8 + $0x888] sm:$0xff]
        %v1330 = vld [vmem:[#allocation8 + $0x890] sm:$0xff]
        %v1331 = vld [vmem:[#allocation8 + $0x898] sm:$0xff]
        %v1332 = vld [vmem:[#allocation8 + $0x8a0] sm:$0xff]
        %v1333 = vld [vmem:[#allocation8 + $0x8a8] sm:$0xff]
        %v1334 = vld [vmem:[#allocation8 + $0x8b0] sm:$0xff]
        %v1335 = vld [vmem:[#allocation8 + $0x8b8] sm:$0xff]
        %v1336 = vld [vmem:[#allocation8 + $0x8c0] sm:$0xff]
        %v1337 = vld [vmem:[#allocation8 + $0x8c8] sm:$0xff]
        %v1338 = vld [vmem:[#allocation8 + $0x8d0] sm:$0xff]
        %v1339 = vld [vmem:[#allocation8 + $0x8d8] sm:$0xff]
        %v1340 = vld [vmem:[#allocation8 + $0x8e0] sm:$0xff]
        %v1341 = vld [vmem:[#allocation8 + $0x8e8] sm:$0xff]
        %v1342 = vld [vmem:[#allocation8 + $0x8f0] sm:$0xff]
        %v1343 = vld [vmem:[#allocation8 + $0x8f8] sm:$0xff]
        %v1344 = vld [vmem:[#allocation8 + $0x900] sm:$0xff]
        %v1345 = vld [vmem:[#allocation8 + $0x908] sm:$0xff]
        %v1346 = vld [vmem:[#allocation8 + $0x910] sm:$0xff]
        %v1347 = vld [vmem:[#allocation8 + $0x918] sm:$0xff]
        %v1348 = vld [vmem:[#allocation8 + $0x920] sm:$0xff]
        %v1349 = vld [vmem:[#allocation8 + $0x928] sm:$0xff]
        %v1350 = vld [vmem:[#allocation8 + $0x930] sm:$0xff]
        %v1351 = vld [vmem:[#allocation8 + $0x938] sm:$0xff]
        %v1352 = vld [vmem:[#allocation8 + $0x940] sm:$0xff]
        %v1353 = vld [vmem:[#allocation8 + $0x948] sm:$0xff]
        %v1354 = vld [vmem:[#allocation8 + $0x950] sm:$0xff]
        %v1355 = vld [vmem:[#allocation8 + $0x958] sm:$0xff]
        %v1356 = vld [vmem:[#allocation8 + $0x960] sm:$0xff]
        %v1357 = vld [vmem:[#allocation8 + $0x968] sm:$0xff]
        %v1358 = vld [vmem:[#allocation8 + $0x970] sm:$0xff]
        %v1359 = vld [vmem:[#allocation8 + $0x978] sm:$0xff]
        %v1360 = vld [vmem:[#allocation8 + $0x980] sm:$0xff]
        %v1361 = vld [vmem:[#allocation8 + $0x988] sm:$0xff]
        %v1362 = vld [vmem:[#allocation8 + $0x990] sm:$0xff]
        %v1363 = vld [vmem:[#allocation8 + $0x998] sm:$0xff]
        %v1364 = vld [vmem:[#allocation8 + $0x9a0] sm:$0xff]
        %v1365 = vld [vmem:[#allocation8 + $0x9a8] sm:$0xff]
        %v1366 = vld [vmem:[#allocation8 + $0x9b0] sm:$0xff]
        %v1367 = vld [vmem:[#allocation8 + $0x9b8] sm:$0xff]
        %v1368 = vld [vmem:[#allocation8 + $0x9c0] sm:$0xff]
        %v1369 = vld [vmem:[#allocation8 + $0x9c8] sm:$0xff]
        %v1370 = vld [vmem:[#allocation8 + $0x9d0] sm:$0xff]
        %v1371 = vld [vmem:[#allocation8 + $0x9d8] sm:$0xff]
        %v1372 = vld [vmem:[#allocation8 + $0x9e0] sm:$0xff]
        %v1373 = vld [vmem:[#allocation8 + $0x9e8] sm:$0xff]
        %v1374 = vld [vmem:[#allocation8 + $0x9f0] sm:$0xff]
        %v1375 = vld [vmem:[#allocation8 + $0x9f8] sm:$0xff]
        %v1376 = vld [vmem:[#allocation8 + $0xa00] sm:$0xff]
        %v1377 = vld [vmem:[#allocation8 + $0xa08] sm:$0xff]
        %v1378 = vld [vmem:[#allocation8 + $0xa10] sm:$0xff]
        %v1379 = vld [vmem:[#allocation8 + $0xa18] sm:$0xff]
        %v1380 = vld [vmem:[#allocation8 + $0xa20] sm:$0xff]
        %v1381 = vld [vmem:[#allocation8 + $0xa28] sm:$0xff]
        %v1382 = vld [vmem:[#allocation8 + $0xa30] sm:$0xff]
        %v1383 = vld [vmem:[#allocation8 + $0xa38] sm:$0xff]
        %v1384 = vld [vmem:[#allocation8 + $0xa40] sm:$0xff]
        %v1385 = vld [vmem:[#allocation8 + $0xa48] sm:$0xff]
        %v1386 = vld [vmem:[#allocation8 + $0xa50] sm:$0xff]
        %v1387 = vld [vmem:[#allocation8 + $0xa58] sm:$0xff]
        %v1388 = vld [vmem:[#allocation8 + $0xa60] sm:$0xff]
        %v1389 = vld [vmem:[#allocation8 + $0xa68] sm:$0xff]
        %v1390 = vld [vmem:[#allocation8 + $0xa70] sm:$0xff]
        %v1391 = vld [vmem:[#allocation8 + $0xa78] sm:$0xff]
        %v1392 = vld [vmem:[#allocation8 + $0xa80] sm:$0xff]
        %v1393 = vld [vmem:[#allocation8 + $0xa88] sm:$0xff]
        %v1394 = vld [vmem:[#allocation8 + $0xa90] sm:$0xff]
        %v1395 = vld [vmem:[#allocation8 + $0xa98] sm:$0xff]
        %v1396 = vld [vmem:[#allocation8 + $0xaa0] sm:$0xff]
        %v1397 = vld [vmem:[#allocation8 + $0xaa8] sm:$0xff]
        %v1398 = vld [vmem:[#allocation8 + $0xab0] sm:$0xff]
        %v1399 = vld [vmem:[#allocation8 + $0xab8] sm:$0xff]
        %v1400 = vld [vmem:[#allocation8 + $0xac0] sm:$0xff]
        %v1401 = vld [vmem:[#allocation8 + $0xac8] sm:$0xff]
        %v1402 = vld [vmem:[#allocation8 + $0xad0] sm:$0xff]
        %v1403 = vld [vmem:[#allocation8 + $0xad8] sm:$0xff]
        %v1404 = vld [vmem:[#allocation8 + $0xae0] sm:$0xff]
        %v1405 = vld [vmem:[#allocation8 + $0xae8] sm:$0xff]
        %v1406 = vld [vmem:[#allocation8 + $0xaf0] sm:$0xff]
        %v1407 = vld [vmem:[#allocation8 + $0xaf8] sm:$0xff]
        %v1408 = vld [vmem:[#allocation8 + $0xb00] sm:$0xff]
        %v1409 = vld [vmem:[#allocation8 + $0xb08] sm:$0xff]
        %v1410 = vld [vmem:[#allocation8 + $0xb10] sm:$0xff]
        %v1411 = vld [vmem:[#allocation8 + $0xb18] sm:$0xff]
        %v1412 = vld [vmem:[#allocation8 + $0xb20] sm:$0xff]
        %v1413 = vld [vmem:[#allocation8 + $0xb28] sm:$0xff]
        %v1414 = vld [vmem:[#allocation8 + $0xb30] sm:$0xff]
        %v1415 = vld [vmem:[#allocation8 + $0xb38] sm:$0xff]
        %v1416 = vld [vmem:[#allocation8 + $0xb40] sm:$0xff]
        %v1417 = vld [vmem:[#allocation8 + $0xb48] sm:$0xff]
        %v1418 = vld [vmem:[#allocation8 + $0xb50] sm:$0xff]
        %v1419 = vld [vmem:[#allocation8 + $0xb58] sm:$0xff]
        %v1420 = vld [vmem:[#allocation8 + $0xb60] sm:$0xff]
        %v1421 = vld [vmem:[#allocation8 + $0xb68] sm:$0xff]
        %v1422 = vld [vmem:[#allocation8 + $0xb70] sm:$0xff]
        %v1423 = vld [vmem:[#allocation8 + $0xb78] sm:$0xff]
        %v1424 = vld [vmem:[#allocation8 + $0xb80] sm:$0xff]
        %v1425 = vld [vmem:[#allocation8 + $0xb88] sm:$0xff]
        %v1426 = vld [vmem:[#allocation8 + $0xb90] sm:$0xff]
        %v1427 = vld [vmem:[#allocation8 + $0xb98] sm:$0xff]
        %v1428 = vld [vmem:[#allocation8 + $0xba0] sm:$0xff]
        %v1429 = vld [vmem:[#allocation8 + $0xba8] sm:$0xff]
        %v1430 = vld [vmem:[#allocation8 + $0xbb0] sm:$0xff]
        %v1431 = vld [vmem:[#allocation8 + $0xbb8] sm:$0xff]
        %v1432 = vld [vmem:[#allocation8 + $0xbc0] sm:$0xff]
        %v1433 = vld [vmem:[#allocation8 + $0xbc8] sm:$0xff]
        %v1434 = vld [vmem:[#allocation8 + $0xbd0] sm:$0xff]
        %v1435 = vld [vmem:[#allocation8 + $0xbd8] sm:$0xff]
        %v1436 = vld [vmem:[#allocation8 + $0xbe0] sm:$0xff]
        %v1437 = vld [vmem:[#allocation8 + $0xbe8] sm:$0xff]
        %v1438 = vld [vmem:[#allocation8 + $0xbf0] sm:$0xff]
        %v1439 = vld [vmem:[#allocation8 + $0xbf8] sm:$0xff]
        %v1440 = vld [vmem:[#allocation8 + $0xc00] sm:$0xff]
        %v1441 = vld [vmem:[#allocation8 + $0xc08] sm:$0xff]
        %v1442 = vld [vmem:[#allocation8 + $0xc10] sm:$0xff]
        %v1443 = vld [vmem:[#allocation8 + $0xc18] sm:$0xff]
        %v1444 = vld [vmem:[#allocation8 + $0xc20] sm:$0xff]
        %v1445 = vld [vmem:[#allocation8 + $0xc28] sm:$0xff]
        %v1446 = vld [vmem:[#allocation8 + $0xc30] sm:$0xff]
        %v1447 = vld [vmem:[#allocation8 + $0xc38] sm:$0xff]
        %v1448 = vld [vmem:[#allocation8 + $0xc40] sm:$0xff]
        %v1449 = vld [vmem:[#allocation8 + $0xc48] sm:$0xff]
        %v1450 = vld [vmem:[#allocation8 + $0xc50] sm:$0xff]
        %v1451 = vld [vmem:[#allocation8 + $0xc58] sm:$0xff]
        %v1452 = vld [vmem:[#allocation8 + $0xc60] sm:$0xff]
        %v1453 = vld [vmem:[#allocation8 + $0xc68] sm:$0xff]
        %v1454 = vld [vmem:[#allocation8 + $0xc70] sm:$0xff]
        %v1455 = vld [vmem:[#allocation8 + $0xc78] sm:$0xff]
        %v1456 = vld [vmem:[#allocation8 + $0xc80] sm:$0xff]
        %v1457 = vld [vmem:[#allocation8 + $0xc88] sm:$0xff]
        %v1458 = vld [vmem:[#allocation8 + $0xc90] sm:$0xff]
        %v1459 = vld [vmem:[#allocation8 + $0xc98] sm:$0xff]
        %v1460 = vld [vmem:[#allocation8 + $0xca0] sm:$0xff]
        %v1461 = vld [vmem:[#allocation8 + $0xca8] sm:$0xff]
        %v1462 = vld [vmem:[#allocation8 + $0xcb0] sm:$0xff]
        %v1463 = vld [vmem:[#allocation8 + $0xcb8] sm:$0xff]
        %v1464 = vld [vmem:[#allocation8 + $0xcc0] sm:$0xff]
        %v1465 = vld [vmem:[#allocation8 + $0xcc8] sm:$0xff]
        %v1466 = vld [vmem:[#allocation8 + $0xcd0] sm:$0xff]
        %v1467 = vld [vmem:[#allocation8 + $0xcd8] sm:$0xff]
        %v1468 = vld [vmem:[#allocation8 + $0xce0] sm:$0xff]
        %v1469 = vld [vmem:[#allocation8 + $0xce8] sm:$0xff]
        %v1470 = vld [vmem:[#allocation8 + $0xcf0] sm:$0xff]
        %v1471 = vld [vmem:[#allocation8 + $0xcf8] sm:$0xff]
        %v1472 = vld [vmem:[#allocation8 + $0xd00] sm:$0xff]
        %v1473 = vld [vmem:[#allocation8 + $0xd08] sm:$0xff]
        %v1474 = vld [vmem:[#allocation8 + $0xd10] sm:$0xff]
        %v1475 = vld [vmem:[#allocation8 + $0xd18] sm:$0xff]
        %v1476 = vld [vmem:[#allocation8 + $0xd20] sm:$0xff]
        %v1477 = vld [vmem:[#allocation8 + $0xd28] sm:$0xff]
        %v1478 = vld [vmem:[#allocation8 + $0xd30] sm:$0xff]
        %v1479 = vld [vmem:[#allocation8 + $0xd38] sm:$0xff]
        %v1480 = vld [vmem:[#allocation8 + $0xd40] sm:$0xff]
        %v1481 = vld [vmem:[#allocation8 + $0xd48] sm:$0xff]
        %v1482 = vld [vmem:[#allocation8 + $0xd50] sm:$0xff]
        %v1483 = vld [vmem:[#allocation8 + $0xd58] sm:$0xff]
        %v1484 = vld [vmem:[#allocation8 + $0xd60] sm:$0xff]
        %v1485 = vld [vmem:[#allocation8 + $0xd68] sm:$0xff]
        %v1486 = vld [vmem:[#allocation8 + $0xd70] sm:$0xff]
        %v1487 = vld [vmem:[#allocation8 + $0xd78] sm:$0xff]
        %v1488 = vld [vmem:[#allocation8 + $0xd80] sm:$0xff]
        %v1489 = vld [vmem:[#allocation8 + $0xd88] sm:$0xff]
        %v1490 = vld [vmem:[#allocation8 + $0xd90] sm:$0xff]
        %v1491 = vld [vmem:[#allocation8 + $0xd98] sm:$0xff]
        %v1492 = vld [vmem:[#allocation8 + $0xda0] sm:$0xff]
        %v1493 = vld [vmem:[#allocation8 + $0xda8] sm:$0xff]
        %v1494 = vld [vmem:[#allocation8 + $0xdb0] sm:$0xff]
        %v1495 = vld [vmem:[#allocation8 + $0xdb8] sm:$0xff]
        %v1496 = vld [vmem:[#allocation8 + $0xdc0] sm:$0xff]
        %v1497 = vld [vmem:[#allocation8 + $0xdc8] sm:$0xff]
        %v1498 = vld [vmem:[#allocation8 + $0xdd0] sm:$0xff]
        %v1499 = vld [vmem:[#allocation8 + $0xdd8] sm:$0xff]
        %v1500 = vld [vmem:[#allocation8 + $0xde0] sm:$0xff]
        %v1501 = vld [vmem:[#allocation8 + $0xde8] sm:$0xff]
        %v1502 = vld [vmem:[#allocation8 + $0xdf0] sm:$0xff]
        %v1503 = vld [vmem:[#allocation8 + $0xdf8] sm:$0xff]
        %v1504 = vld [vmem:[#allocation8 + $0xe00] sm:$0xff]
        %v1505 = vld [vmem:[#allocation8 + $0xe08] sm:$0xff]
        %v1506 = vld [vmem:[#allocation8 + $0xe10] sm:$0xff]
        %v1507 = vld [vmem:[#allocation8 + $0xe18] sm:$0xff]
        %v1508 = vld [vmem:[#allocation8 + $0xe20] sm:$0xff]
        %v1509 = vld [vmem:[#allocation8 + $0xe28] sm:$0xff]
        %v1510 = vld [vmem:[#allocation8 + $0xe30] sm:$0xff]
        %v1511 = vld [vmem:[#allocation8 + $0xe38] sm:$0xff]
        %v1512 = vld [vmem:[#allocation8 + $0xe40] sm:$0xff]
        %v1513 = vld [vmem:[#allocation8 + $0xe48] sm:$0xff]
        %v1514 = vld [vmem:[#allocation8 + $0xe50] sm:$0xff]
        %v1515 = vld [vmem:[#allocation8 + $0xe58] sm:$0xff]
        %v1516 = vld [vmem:[#allocation8 + $0xe60] sm:$0xff]
        %v1517 = vld [vmem:[#allocation8 + $0xe68] sm:$0xff]
        %v1518 = vld [vmem:[#allocation8 + $0xe70] sm:$0xff]
        %v1519 = vld [vmem:[#allocation8 + $0xe78] sm:$0xff]
        %v1520 = vld [vmem:[#allocation8 + $0xe80] sm:$0xff]
        %v1521 = vld [vmem:[#allocation8 + $0xe88] sm:$0xff]
        %v1522 = vld [vmem:[#allocation8 + $0xe90] sm:$0xff]
        %v1523 = vld [vmem:[#allocation8 + $0xe98] sm:$0xff]
        %v1524 = vld [vmem:[#allocation8 + $0xea0] sm:$0xff]
        %v1525 = vld [vmem:[#allocation8 + $0xea8] sm:$0xff]
        %v1526 = vld [vmem:[#allocation8 + $0xeb0] sm:$0xff]
        %v1527 = vld [vmem:[#allocation8 + $0xeb8] sm:$0xff]
        %v1528 = vld [vmem:[#allocation8 + $0xec0] sm:$0xff]
        %v1529 = vld [vmem:[#allocation8 + $0xec8] sm:$0xff]
        %v1530 = vld [vmem:[#allocation8 + $0xed0] sm:$0xff]
        %v1531 = vld [vmem:[#allocation8 + $0xed8] sm:$0xff]
        %v1532 = vld [vmem:[#allocation8 + $0xee0] sm:$0xff]
        %v1533 = vld [vmem:[#allocation8 + $0xee8] sm:$0xff]
        %v1534 = vld [vmem:[#allocation8 + $0xef0] sm:$0xff]
        %v1535 = vld [vmem:[#allocation8 + $0xef8] sm:$0xff]
        %v1536 = vld [vmem:[#allocation8 + $0xf00] sm:$0xff]
        %v1537 = vld [vmem:[#allocation8 + $0xf08] sm:$0xff]
        %v1538 = vld [vmem:[#allocation8 + $0xf10] sm:$0xff]
        %v1539 = vld [vmem:[#allocation8 + $0xf18] sm:$0xff]
        %v1540 = vld [vmem:[#allocation8 + $0xf20] sm:$0xff]
        %v1541 = vld [vmem:[#allocation8 + $0xf28] sm:$0xff]
        %v1542 = vld [vmem:[#allocation8 + $0xf30] sm:$0xff]
        %v1543 = vld [vmem:[#allocation8 + $0xf38] sm:$0xff]
        %v1544 = vld [vmem:[#allocation8 + $0xf40] sm:$0xff]
        %v1545 = vld [vmem:[#allocation8 + $0xf48] sm:$0xff]
        %v1546 = vld [vmem:[#allocation8 + $0xf50] sm:$0xff]
        %v1547 = vld [vmem:[#allocation8 + $0xf58] sm:$0xff]
        %v1548 = vld [vmem:[#allocation8 + $0xf60] sm:$0xff]
        %v1549 = vld [vmem:[#allocation8 + $0xf68] sm:$0xff]
        %v1550 = vld [vmem:[#allocation8 + $0xf70] sm:$0xff]
        %v1551 = vld [vmem:[#allocation8 + $0xf78] sm:$0xff]
        %v1552 = vld [vmem:[#allocation8 + $0xf80] sm:$0xff]
        %v1553 = vld [vmem:[#allocation8 + $0xf88] sm:$0xff]
        %v1554 = vld [vmem:[#allocation8 + $0xf90] sm:$0xff]
        %v1555 = vld [vmem:[#allocation8 + $0xf98] sm:$0xff]
        %v1556 = vld [vmem:[#allocation8 + $0xfa0] sm:$0xff]
        %v1557 = vld [vmem:[#allocation8 + $0xfa8] sm:$0xff]
        %v1558 = vld [vmem:[#allocation8 + $0xfb0] sm:$0xff]
        %v1559 = vld [vmem:[#allocation8 + $0xfb8] sm:$0xff]
        %v1560 = vld [vmem:[#allocation8 + $0xfc0] sm:$0xff]
        %v1561 = vld [vmem:[#allocation8 + $0xfc8] sm:$0xff]
        %v1562 = vld [vmem:[#allocation8 + $0xfd0] sm:$0xff]
        %v1563 = vld [vmem:[#allocation8 + $0xfd8] sm:$0xff]
        %v1564 = vld [vmem:[#allocation8 + $0xfe0] sm:$0xff]
        %v1565 = vld [vmem:[#allocation8 + $0xfe8] sm:$0xff]
        %v1566 = vld [vmem:[#allocation8 + $0xff0] sm:$0xff]
        %v1567 = vld [vmem:[#allocation8 + $0xff8] sm:$0xff]
        %v1568 = vld [vmem:[#allocation8 + $0x1000] sm:$0xff]
        %v1569 = vld [vmem:[#allocation8 + $0x1008] sm:$0xff]
        %v1570 = vld [vmem:[#allocation8 + $0x1010] sm:$0xff]
        %v1571 = vld [vmem:[#allocation8 + $0x1018] sm:$0xff]
        %v1572 = vld [vmem:[#allocation8 + $0x1020] sm:$0xff]
        %v1573 = vld [vmem:[#allocation8 + $0x1028] sm:$0xff]
        %v1574 = vld [vmem:[#allocation8 + $0x1030] sm:$0xff]
        %v1575 = vld [vmem:[#allocation8 + $0x1038] sm:$0xff]
        %v1576 = vld [vmem:[#allocation8 + $0x1040] sm:$0xff]
        %v1577 = vld [vmem:[#allocation8 + $0x1048] sm:$0xff]
        %v1578 = vld [vmem:[#allocation8 + $0x1050] sm:$0xff]
        %v1579 = vld [vmem:[#allocation8 + $0x1058] sm:$0xff]
        %v1580 = vld [vmem:[#allocation8 + $0x1060] sm:$0xff]
        %v1581 = vld [vmem:[#allocation8 + $0x1068] sm:$0xff]
        %v1582 = vld [vmem:[#allocation8 + $0x1070] sm:$0xff]
        %v1583 = vld [vmem:[#allocation8 + $0x1078] sm:$0xff]
        %v1584 = vld [vmem:[#allocation8 + $0x1080] sm:$0xff]
        %v1585 = vld [vmem:[#allocation8 + $0x1088] sm:$0xff]
        %v1586 = vld [vmem:[#allocation8 + $0x1090] sm:$0xff]
        %v1587 = vld [vmem:[#allocation8 + $0x1098] sm:$0xff]
        %v1588 = vld [vmem:[#allocation8 + $0x10a0] sm:$0xff]
        %v1589 = vld [vmem:[#allocation8 + $0x10a8] sm:$0xff]
        %v1590 = vld [vmem:[#allocation8 + $0x10b0] sm:$0xff]
        %v1591 = vld [vmem:[#allocation8 + $0x10b8] sm:$0xff]
        %v1592 = vld [vmem:[#allocation8 + $0x10c0] sm:$0xff]
        %v1593 = vld [vmem:[#allocation8 + $0x10c8] sm:$0xff]
        %v1594 = vld [vmem:[#allocation8 + $0x10d0] sm:$0xff]
        %v1595 = vld [vmem:[#allocation8 + $0x10d8] sm:$0xff]
        %v1596 = vld [vmem:[#allocation8 + $0x10e0] sm:$0xff]
        %v1597 = vld [vmem:[#allocation8 + $0x10e8] sm:$0xff]
        %v1598 = vld [vmem:[#allocation8 + $0x10f0] sm:$0xff]
        %v1599 = vld [vmem:[#allocation8 + $0x10f8] sm:$0xff]
        %v1600 = vld [vmem:[#allocation8 + $0x1100] sm:$0xff]
        %v1601 = vld [vmem:[#allocation8 + $0x1108] sm:$0xff]
        %v1602 = vld [vmem:[#allocation8 + $0x1110] sm:$0xff]
        %v1603 = vld [vmem:[#allocation8 + $0x1118] sm:$0xff]
        %v1604 = vld [vmem:[#allocation8 + $0x1120] sm:$0xff]
        %v1605 = vld [vmem:[#allocation8 + $0x1128] sm:$0xff]
        %v1606 = vld [vmem:[#allocation8 + $0x1130] sm:$0xff]
        %v1607 = vld [vmem:[#allocation8 + $0x1138] sm:$0xff]
        %v1608 = vld [vmem:[#allocation8 + $0x1140] sm:$0xff]
        %v1609 = vld [vmem:[#allocation8 + $0x1148] sm:$0xff]
        %v1610 = vld [vmem:[#allocation8 + $0x1150] sm:$0xff]
        %v1611 = vld [vmem:[#allocation8 + $0x1158] sm:$0xff]
        %v1612 = vld [vmem:[#allocation8 + $0x1160] sm:$0xff]
        %v1613 = vld [vmem:[#allocation8 + $0x1168] sm:$0xff]
        %v1614 = vld [vmem:[#allocation8 + $0x1170] sm:$0xff]
        %v1615 = vld [vmem:[#allocation8 + $0x1178] sm:$0xff]
        %v1616 = vld [vmem:[#allocation8 + $0x1180] sm:$0xff]
        %v1617 = vld [vmem:[#allocation8 + $0x1188] sm:$0xff]
        %v1618 = vld [vmem:[#allocation8 + $0x1190] sm:$0xff]
        %v1619 = vld [vmem:[#allocation8 + $0x1198] sm:$0xff]
        %v1620 = vld [vmem:[#allocation8 + $0x11a0] sm:$0xff]
        %v1621 = vld [vmem:[#allocation8 + $0x11a8] sm:$0xff]
        %v1622 = vld [vmem:[#allocation8 + $0x11b0] sm:$0xff]
        %v1623 = vld [vmem:[#allocation8 + $0x11b8] sm:$0xff]
        %v1624 = vld [vmem:[#allocation8 + $0x11c0] sm:$0xff]
        %v1625 = vld [vmem:[#allocation8 + $0x11c8] sm:$0xff]
        %v1626 = vld [vmem:[#allocation8 + $0x11d0] sm:$0xff]
        %v1627 = vld [vmem:[#allocation8 + $0x11d8] sm:$0xff]
        %v1628 = vld [vmem:[#allocation8 + $0x11e0] sm:$0xff]
        %v1629 = vld [vmem:[#allocation8 + $0x11e8] sm:$0xff]
        %v1630 = vld [vmem:[#allocation8 + $0x11f0] sm:$0xff]
        %v1631 = vld [vmem:[#allocation8 + $0x11f8] sm:$0xff]
        %v1632 = vld [vmem:[#allocation8 + $0x1200] sm:$0xff]
        %v1633 = vld [vmem:[#allocation8 + $0x1208] sm:$0xff]
        %v1634 = vld [vmem:[#allocation8 + $0x1210] sm:$0xff]
        %v1635 = vld [vmem:[#allocation8 + $0x1218] sm:$0xff]
        %v1636 = vld [vmem:[#allocation8 + $0x1220] sm:$0xff]
        %v1637 = vld [vmem:[#allocation8 + $0x1228] sm:$0xff]
        %v1638 = vld [vmem:[#allocation8 + $0x1230] sm:$0xff]
        %v1639 = vld [vmem:[#allocation8 + $0x1238] sm:$0xff]
        %v1640 = vld [vmem:[#allocation8 + $0x1240] sm:$0xff]
        %v1641 = vld [vmem:[#allocation8 + $0x1248] sm:$0xff]
        %v1642 = vld [vmem:[#allocation8 + $0x1250] sm:$0xff]
        %v1643 = vld [vmem:[#allocation8 + $0x1258] sm:$0xff]
        %v1644 = vld [vmem:[#allocation8 + $0x1260] sm:$0xff]
        %v1645 = vld [vmem:[#allocation8 + $0x1268] sm:$0xff]
        %v1646 = vld [vmem:[#allocation8 + $0x1270] sm:$0xff]
        %v1647 = vld [vmem:[#allocation8 + $0x1278] sm:$0xff]
        %v1648 = vld [vmem:[#allocation8 + $0x1280] sm:$0xff]
        %v1649 = vld [vmem:[#allocation8 + $0x1288] sm:$0xff]
        %v1650 = vld [vmem:[#allocation8 + $0x1290] sm:$0xff]
        %v1651 = vld [vmem:[#allocation8 + $0x1298] sm:$0xff]
        %v1652 = vld [vmem:[#allocation8 + $0x12a0] sm:$0xff]
        %v1653 = vld [vmem:[#allocation8 + $0x12a8] sm:$0xff]
        %v1654 = vld [vmem:[#allocation8 + $0x12b0] sm:$0xff]
        %v1655 = vld [vmem:[#allocation8 + $0x12b8] sm:$0xff]
        %v1656 = vld [vmem:[#allocation8 + $0x12c0] sm:$0xff]
        %v1657 = vld [vmem:[#allocation8 + $0x12c8] sm:$0xff]
        %v1658 = vld [vmem:[#allocation8 + $0x12d0] sm:$0xff]
        %v1659 = vld [vmem:[#allocation8 + $0x12d8] sm:$0xff]
        %v1660 = vld [vmem:[#allocation8 + $0x12e0] sm:$0xff]
        %v1661 = vld [vmem:[#allocation8 + $0x12e8] sm:$0xff]
        %v1662 = vld [vmem:[#allocation8 + $0x12f0] sm:$0xff]
        %v1663 = vld [vmem:[#allocation8 + $0x12f8] sm:$0xff]
        %v1664 = vld [vmem:[#allocation8 + $0x1300] sm:$0xff]
        %v1665 = vld [vmem:[#allocation8 + $0x1308] sm:$0xff]
        %v1666 = vld [vmem:[#allocation8 + $0x1310] sm:$0xff]
        %v1667 = vld [vmem:[#allocation8 + $0x1318] sm:$0xff]
        %v1668 = vld [vmem:[#allocation8 + $0x1320] sm:$0xff]
        %v1669 = vld [vmem:[#allocation8 + $0x1328] sm:$0xff]
        %v1670 = vld [vmem:[#allocation8 + $0x1330] sm:$0xff]
        %v1671 = vld [vmem:[#allocation8 + $0x1338] sm:$0xff]
        %v1672 = vld [vmem:[#allocation8 + $0x1340] sm:$0xff]
        %v1673 = vld [vmem:[#allocation8 + $0x1348] sm:$0xff]
        %v1674 = vld [vmem:[#allocation8 + $0x1350] sm:$0xff]
        %v1675 = vld [vmem:[#allocation8 + $0x1358] sm:$0xff]
        %v1676 = vld [vmem:[#allocation8 + $0x1360] sm:$0xff]
        %v1677 = vld [vmem:[#allocation8 + $0x1368] sm:$0xff]
        %v1678 = vld [vmem:[#allocation8 + $0x1370] sm:$0xff]
        %v1679 = vld [vmem:[#allocation8 + $0x1378] sm:$0xff]
        %v1680 = vld [vmem:[#allocation8 + $0x1380] sm:$0xff]
        %v1681 = vld [vmem:[#allocation8 + $0x1388] sm:$0xff]
        %v1682 = vld [vmem:[#allocation8 + $0x1390] sm:$0xff]
        %v1683 = vld [vmem:[#allocation8 + $0x1398] sm:$0xff]
        %v1684 = vld [vmem:[#allocation8 + $0x13a0] sm:$0xff]
        %v1685 = vld [vmem:[#allocation8 + $0x13a8] sm:$0xff]
        %v1686 = vld [vmem:[#allocation8 + $0x13b0] sm:$0xff]
        %v1687 = vld [vmem:[#allocation8 + $0x13b8] sm:$0xff]
        %v1688 = vld [vmem:[#allocation8 + $0x13c0] sm:$0xff]
        %v1689 = vld [vmem:[#allocation8 + $0x13c8] sm:$0xff]
        %v1690 = vld [vmem:[#allocation8 + $0x13d0] sm:$0xff]
        %v1691 = vld [vmem:[#allocation8 + $0x13d8] sm:$0xff]
        %v1692 = vld [vmem:[#allocation8 + $0x13e0] sm:$0xff]
        %v1693 = vld [vmem:[#allocation8 + $0x13e8] sm:$0xff]
        %v1694 = vld [vmem:[#allocation8 + $0x13f0] sm:$0xff]
        %v1695 = vld [vmem:[#allocation8 + $0x13f8] sm:$0xff]
        %v1696 = vld [vmem:[#allocation10] sm:$0x1]
        %1697 = vmatprep.subr.mxu0 0.0
        %1698 = vmatpush1.msra.mxu0 %v1056
        %1699 = vmatprep.subr.mxu0 0.0
        %1700 = vmatpush1.msra.mxu0 %v1057
        %1701 = vmatprep.subr.mxu0 0.0
        %1702 = vmatpush1.msra.mxu0 %v1058
        %1703 = vmatprep.subr.mxu0 0.0
        %1704 = vmatpush1.msra.mxu0 %v1059
        %1705 = vmatprep.subr.mxu0 0.0
        %1706 = vmatpush1.msra.mxu0 %v1060
        %1707 = vmatprep.subr.mxu0 0.0
        %1708 = vmatpush1.msra.mxu0 %v1061
        %1709 = vmatprep.subr.mxu0 0.0
        %1710 = vmatpush1.msra.mxu0 %v1062
        %1711 = vmatprep.subr.mxu0 0.0
        %1712 = vmatpush1.msra.mxu0 %v1063
        %1713 = vmatprep.subr.mxu0 0.0
        %1714 = vmatpush1.msra.mxu0 %v1064
        %1715 = vmatprep.subr.mxu0 0.0
        %1716 = vmatpush1.msra.mxu0 %v1065
        %1717 = vmatprep.subr.mxu0 0.0
        %1718 = vmatpush1.msra.mxu0 %v1066
        %1719 = vmatprep.subr.mxu0 0.0
        %1720 = vmatpush1.msra.mxu0 %v1067
        %1721 = vmatprep.subr.mxu0 0.0
        %1722 = vmatpush1.msra.mxu0 %v1068
        %1723 = vmatprep.subr.mxu0 0.0
        %1724 = vmatpush1.msra.mxu0 %v1069
        %1725 = vmatprep.subr.mxu0 0.0
        %1726 = vmatpush1.msra.mxu0 %v1070
        %1727 = vmatprep.subr.mxu0 0.0
        %1728 = vmatpush1.msra.mxu0 %v1071
        %1729 = vmatprep.subr.mxu0 0.0
        %1730 = vmatpush1.msra.mxu0 %v1072
        %1731 = vmatprep.subr.mxu0 0.0
        %1732 = vmatpush1.msra.mxu0 %v1073
        %1733 = vmatprep.subr.mxu0 0.0
        %1734 = vmatpush1.msra.mxu0 %v1074
        %1735 = vmatprep.subr.mxu0 0.0
        %1736 = vmatpush1.msra.mxu0 %v1075
        %1737 = vmatprep.subr.mxu0 0.0
        %1738 = vmatpush1.msra.mxu0 %v1076
        %1739 = vmatprep.subr.mxu0 0.0
        %1740 = vmatpush1.msra.mxu0 %v1077
        %1741 = vmatprep.subr.mxu0 0.0
        %1742 = vmatpush1.msra.mxu0 %v1078
        %1743 = vmatprep.subr.mxu0 0.0
        %1744 = vmatpush1.msra.mxu0 %v1079
        %1745 = vmatprep.subr.mxu0 0.0
        %1746 = vmatpush1.msra.mxu0 %v1080
        %1747 = vmatprep.subr.mxu0 0.0
        %1748 = vmatpush1.msra.mxu0 %v1081
        %1749 = vmatprep.subr.mxu0 0.0
        %1750 = vmatpush1.msra.mxu0 %v1082
        %1751 = vmatprep.subr.mxu0 0.0
        %1752 = vmatpush1.msra.mxu0 %v1083
        %1753 = vmatprep.subr.mxu0 0.0
        %1754 = vmatpush1.msra.mxu0 %v1084
        %1755 = vmatprep.subr.mxu0 0.0
        %1756 = vmatpush1.msra.mxu0 %v1085
        %1757 = vmatprep.subr.mxu0 0.0
        %1758 = vmatpush1.msra.mxu0 %v1086
        %1759 = vmatprep.subr.mxu0 0.0
        %1760 = vmatpush1.msra.mxu0 %v1087
        %1761 = vmatprep.mubr.f32.mxu0 %v586
        %1762 = vmatmul.mubr.f32.gmra.mrb[0].mxu0 %v585
        %v1763 = vpop.f32.mrb[0].mxu0
        %v1764 = vadd.f32 %v1696, %v1763
        %v1765 = vpop.f32.mrb[0].mxu0
        %1766 = vdwg.mxu0
        %1767 = vmatprep.subr.mxu0 0.0
        %1768 = vmatpush1.msra.mxu0 %v1088
        %1769 = vmatprep.subr.mxu0 0.0
        %1770 = vmatpush1.msra.mxu0 %v1089
        %1771 = vmatprep.subr.mxu0 0.0
        %1772 = vmatpush1.msra.mxu0 %v1090
        %1773 = vmatprep.subr.mxu0 0.0
        %1774 = vmatpush1.msra.mxu0 %v1091
        %1775 = vmatprep.subr.mxu0 0.0
        %1776 = vmatpush1.msra.mxu0 %v1092
        %1777 = vmatprep.subr.mxu0 0.0
        %1778 = vmatpush1.msra.mxu0 %v1093
        %1779 = vmatprep.subr.mxu0 0.0
        %1780 = vmatpush1.msra.mxu0 %v1094
        %1781 = vmatprep.subr.mxu0 0.0
        %1782 = vmatpush1.msra.mxu0 %v1095
        %1783 = vmatprep.subr.mxu0 0.0
        %1784 = vmatpush1.msra.mxu0 %v1096
        %1785 = vmatprep.subr.mxu0 0.0
        %1786 = vmatpush1.msra.mxu0 %v1097
        %1787 = vmatprep.subr.mxu0 0.0
        %1788 = vmatpush1.msra.mxu0 %v1098
        %1789 = vmatprep.subr.mxu0 0.0
        %1790 = vmatpush1.msra.mxu0 %v1099
        %1791 = vmatprep.subr.mxu0 0.0
        %1792 = vmatpush1.msra.mxu0 %v1100
        %1793 = vmatprep.subr.mxu0 0.0
        %1794 = vmatpush1.msra.mxu0 %v1101
        %1795 = vmatprep.subr.mxu0 0.0
        %1796 = vmatpush1.msra.mxu0 %v1102
        %1797 = vmatprep.subr.mxu0 0.0
        %1798 = vmatpush1.msra.mxu0 %v1103
        %1799 = vmatprep.subr.mxu0 0.0
        %1800 = vmatpush1.msra.mxu0 %v1104
        %1801 = vmatprep.subr.mxu0 0.0
        %1802 = vmatpush1.msra.mxu0 %v1105
        %1803 = vmatprep.subr.mxu0 0.0
        %1804 = vmatpush1.msra.mxu0 %v1106
        %1805 = vmatprep.subr.mxu0 0.0
        %1806 = vmatpush1.msra.mxu0 %v1107
        %1807 = vmatprep.subr.mxu0 0.0
        %1808 = vmatpush1.msra.mxu0 %v1108
        %1809 = vmatprep.subr.mxu0 0.0
        %1810 = vmatpush1.msra.mxu0 %v1109
        %1811 = vmatprep.subr.mxu0 0.0
        %1812 = vmatpush1.msra.mxu0 %v1110
        %1813 = vmatprep.subr.mxu0 0.0
        %1814 = vmatpush1.msra.mxu0 %v1111
        %1815 = vmatprep.subr.mxu0 0.0
        %1816 = vmatpush1.msra.mxu0 %v1112
        %1817 = vmatprep.subr.mxu0 0.0
        %1818 = vmatpush1.msra.mxu0 %v1113
        %1819 = vmatprep.subr.mxu0 0.0
        %1820 = vmatpush1.msra.mxu0 %v1114
        %1821 = vmatprep.subr.mxu0 0.0
        %1822 = vmatpush1.msra.mxu0 %v1115
        %1823 = vmatprep.subr.mxu0 0.0
        %1824 = vmatpush1.msra.mxu0 %v1116
        %1825 = vmatprep.subr.mxu0 0.0
        %1826 = vmatpush1.msra.mxu0 %v1117
        %1827 = vmatprep.subr.mxu0 0.0
        %1828 = vmatpush1.msra.mxu0 %v1118
        %1829 = vmatprep.subr.mxu0 0.0
        %1830 = vmatpush1.msra.mxu0 %v1119
        %1831 = vmatprep.mubr.f32.mxu0 %v588
        %1832 = vmatmul.mubr.f32.gmra.mrb[0].mxu0 %v587
        %v1833 = vpop.f32.mrb[0].mxu0
        %v1834 = vadd.f32 %v1764, %v1833
        %v1835 = vpop.f32.mrb[0].mxu0
        %1836 = vdwg.mxu0
        %1837 = vmatprep.subr.mxu0 0.0
        %1838 = vmatpush1.msra.mxu0 %v1120
        %1839 = vmatprep.subr.mxu0 0.0
        %1840 = vmatpush1.msra.mxu0 %v1121
        %1841 = vmatprep.subr.mxu0 0.0
        %1842 = vmatpush1.msra.mxu0 %v1122
        %1843 = vmatprep.subr.mxu0 0.0
        %1844 = vmatpush1.msra.mxu0 %v1123
        %1845 = vmatprep.subr.mxu0 0.0
        %1846 = vmatpush1.msra.mxu0 %v1124
        %1847 = vmatprep.subr.mxu0 0.0
        %1848 = vmatpush1.msra.mxu0 %v1125
        %1849 = vmatprep.subr.mxu0 0.0
        %1850 = vmatpush1.msra.mxu0 %v1126
        %1851 = vmatprep.subr.mxu0 0.0
        %1852 = vmatpush1.msra.mxu0 %v1127
        %1853 = vmatprep.subr.mxu0 0.0
        %1854 = vmatpush1.msra.mxu0 %v1128
        %1855 = vmatprep.subr.mxu0 0.0
        %1856 = vmatpush1.msra.mxu0 %v1129
        %1857 = vmatprep.subr.mxu0 0.0
        %1858 = vmatpush1.msra.mxu0 %v1130
        %1859 = vmatprep.subr.mxu0 0.0
        %1860 = vmatpush1.msra.mxu0 %v1131
        %1861 = vmatprep.subr.mxu0 0.0
        %1862 = vmatpush1.msra.mxu0 %v1132
        %1863 = vmatprep.subr.mxu0 0.0
        %1864 = vmatpush1.msra.mxu0 %v1133
        %1865 = vmatprep.subr.mxu0 0.0
        %1866 = vmatpush1.msra.mxu0 %v1134
        %1867 = vmatprep.subr.mxu0 0.0
        %1868 = vmatpush1.msra.mxu0 %v1135
        %1869 = vmatprep.subr.mxu0 0.0
        %1870 = vmatpush1.msra.mxu0 %v1136
        %1871 = vmatprep.subr.mxu0 0.0
        %1872 = vmatpush1.msra.mxu0 %v1137
        %1873 = vmatprep.subr.mxu0 0.0
        %1874 = vmatpush1.msra.mxu0 %v1138
        %1875 = vmatprep.subr.mxu0 0.0
        %1876 = vmatpush1.msra.mxu0 %v1139
        %1877 = vmatprep.subr.mxu0 0.0
        %1878 = vmatpush1.msra.mxu0 %v1140
        %1879 = vmatprep.subr.mxu0 0.0
        %1880 = vmatpush1.msra.mxu0 %v1141
        %1881 = vmatprep.subr.mxu0 0.0
        %1882 = vmatpush1.msra.mxu0 %v1142
        %1883 = vmatprep.subr.mxu0 0.0
        %1884 = vmatpush1.msra.mxu0 %v1143
        %1885 = vmatprep.subr.mxu0 0.0
        %1886 = vmatpush1.msra.mxu0 %v1144
        %1887 = vmatprep.subr.mxu0 0.0
        %1888 = vmatpush1.msra.mxu0 %v1145
        %1889 = vmatprep.subr.mxu0 0.0
        %1890 = vmatpush1.msra.mxu0 %v1146
        %1891 = vmatprep.subr.mxu0 0.0
        %1892 = vmatpush1.msra.mxu0 %v1147
        %1893 = vmatprep.subr.mxu0 0.0
        %1894 = vmatpush1.msra.mxu0 %v1148
        %1895 = vmatprep.subr.mxu0 0.0
        %1896 = vmatpush1.msra.mxu0 %v1149
        %1897 = vmatprep.subr.mxu0 0.0
        %1898 = vmatpush1.msra.mxu0 %v1150
        %1899 = vmatprep.subr.mxu0 0.0
        %1900 = vmatpush1.msra.mxu0 %v1151
        %1901 = vmatprep.mubr.f32.mxu0 %v590
        %1902 = vmatmul.mubr.f32.gmra.mrb[0].mxu0 %v589
        %v1903 = vpop.f32.mrb[0].mxu0
        %v1904 = vadd.f32 %v1834, %v1903
        %v1905 = vpop.f32.mrb[0].mxu0
        %1906 = vdwg.mxu0
        %1907 = vmatprep.subr.mxu0 0.0
        %1908 = vmatpush1.msra.mxu0 %v1152
        %1909 = vmatprep.subr.mxu0 0.0
        %1910 = vmatpush1.msra.mxu0 %v1153
        %1911 = vmatprep.subr.mxu0 0.0
        %1912 = vmatpush1.msra.mxu0 %v1154
        %1913 = vmatprep.subr.mxu0 0.0
        %1914 = vmatpush1.msra.mxu0 %v1155
        %1915 = vmatprep.subr.mxu0 0.0
        %1916 = vmatpush1.msra.mxu0 %v1156
        %1917 = vmatprep.subr.mxu0 0.0
        %1918 = vmatpush1.msra.mxu0 %v1157
        %1919 = vmatprep.subr.mxu0 0.0
        %1920 = vmatpush1.msra.mxu0 %v1158
        %1921 = vmatprep.subr.mxu0 0.0
        %1922 = vmatpush1.msra.mxu0 %v1159
        %1923 = vmatprep.subr.mxu0 0.0
        %1924 = vmatpush1.msra.mxu0 %v1160
        %1925 = vmatprep.subr.mxu0 0.0
        %1926 = vmatpush1.msra.mxu0 %v1161
        %1927 = vmatprep.subr.mxu0 0.0
        %1928 = vmatpush1.msra.mxu0 %v1162
        %1929 = vmatprep.subr.mxu0 0.0
        %1930 = vmatpush1.msra.mxu0 %v1163
        %1931 = vmatprep.subr.mxu0 0.0
        %1932 = vmatpush1.msra.mxu0 %v1164
        %1933 = vmatprep.subr.mxu0 0.0
        %1934 = vmatpush1.msra.mxu0 %v1165
        %1935 = vmatprep.subr.mxu0 0.0
        %1936 = vmatpush1.msra.mxu0 %v1166
        %1937 = vmatprep.subr.mxu0 0.0
        %1938 = vmatpush1.msra.mxu0 %v1167
        %1939 = vmatprep.subr.mxu0 0.0
        %1940 = vmatpush1.msra.mxu0 %v1168
        %1941 = vmatprep.subr.mxu0 0.0
        %1942 = vmatpush1.msra.mxu0 %v1169
        %1943 = vmatprep.subr.mxu0 0.0
        %1944 = vmatpush1.msra.mxu0 %v1170
        %1945 = vmatprep.subr.mxu0 0.0
        %1946 = vmatpush1.msra.mxu0 %v1171
        %1947 = vmatprep.subr.mxu0 0.0
        %1948 = vmatpush1.msra.mxu0 %v1172
        %1949 = vmatprep.subr.mxu0 0.0
        %1950 = vmatpush1.msra.mxu0 %v1173
        %1951 = vmatprep.subr.mxu0 0.0
        %1952 = vmatpush1.msra.mxu0 %v1174
        %1953 = vmatprep.subr.mxu0 0.0
        %1954 = vmatpush1.msra.mxu0 %v1175
        %1955 = vmatprep.subr.mxu0 0.0
        %1956 = vmatpush1.msra.mxu0 %v1176
        %1957 = vmatprep.subr.mxu0 0.0
        %1958 = vmatpush1.msra.mxu0 %v1177
        %1959 = vmatprep.subr.mxu0 0.0
        %1960 = vmatpush1.msra.mxu0 %v1178
        %1961 = vmatprep.subr.mxu0 0.0
        %1962 = vmatpush1.msra.mxu0 %v1179
        %1963 = vmatprep.subr.mxu0 0.0
        %1964 = vmatpush1.msra.mxu0 %v1180
        %1965 = vmatprep.subr.mxu0 0.0
        %1966 = vmatpush1.msra.mxu0 %v1181
        %1967 = vmatprep.subr.mxu0 0.0
        %1968 = vmatpush1.msra.mxu0 %v1182
        %1969 = vmatprep.subr.mxu0 0.0
        %1970 = vmatpush1.msra.mxu0 %v1183
        %1971 = vmatprep.mubr.f32.mxu0 %v592
        %1972 = vmatmul.mubr.f32.gmra.mrb[0].mxu0 %v591
        %v1973 = vpop.f32.mrb[0].mxu0
        %v1974 = vadd.f32 %v1904, %v1973
        %v1975 = vpop.f32.mrb[0].mxu0
        %1976 = vdwg.mxu0
        %1977 = vmatprep.subr.mxu0 0.0
        %1978 = vmatpush1.msra.mxu0 %v1184
        %1979 = vmatprep.subr.mxu0 0.0
        %1980 = vmatpush1.msra.mxu0 %v1185
        %1981 = vmatprep.subr.mxu0 0.0
        %1982 = vmatpush1.msra.mxu0 %v1186
        %1983 = vmatprep.subr.mxu0 0.0
        %1984 = vmatpush1.msra.mxu0 %v1187
        %1985 = vmatprep.subr.mxu0 0.0
        %1986 = vmatpush1.msra.mxu0 %v1188
        %1987 = vmatprep.subr.mxu0 0.0
        %1988 = vmatpush1.msra.mxu0 %v1189
        %1989 = vmatprep.subr.mxu0 0.0
        %1990 = vmatpush1.msra.mxu0 %v1190
        %1991 = vmatprep.subr.mxu0 0.0
        %1992 = vmatpush1.msra.mxu0 %v1191
        %1993 = vmatprep.subr.mxu0 0.0
        %1994 = vmatpush1.msra.mxu0 %v1192
        %1995 = vmatprep.subr.mxu0 0.0
        %1996 = vmatpush1.msra.mxu0 %v1193
        %1997 = vmatprep.subr.mxu0 0.0
        %1998 = vmatpush1.msra.mxu0 %v1194
        %1999 = vmatprep.subr.mxu0 0.0
        %2000 = vmatpush1.msra.mxu0 %v1195
        %2001 = vmatprep.subr.mxu0 0.0
        %2002 = vmatpush1.msra.mxu0 %v1196
        %2003 = vmatprep.subr.mxu0 0.0
        %2004 = vmatpush1.msra.mxu0 %v1197
        %2005 = vmatprep.subr.mxu0 0.0
        %2006 = vmatpush1.msra.mxu0 %v1198
        %2007 = vmatprep.subr.mxu0 0.0
        %2008 = vmatpush1.msra.mxu0 %v1199
        %2009 = vmatprep.subr.mxu0 0.0
        %2010 = vmatpush1.msra.mxu0 %v1200
        %2011 = vmatprep.subr.mxu0 0.0
        %2012 = vmatpush1.msra.mxu0 %v1201
        %2013 = vmatprep.subr.mxu0 0.0
        %2014 = vmatpush1.msra.mxu0 %v1202
        %2015 = vmatprep.subr.mxu0 0.0
        %2016 = vmatpush1.msra.mxu0 %v1203
        %2017 = vmatprep.subr.mxu0 0.0
        %2018 = vmatpush1.msra.mxu0 %v1204
        %2019 = vmatprep.subr.mxu0 0.0
        %2020 = vmatpush1.msra.mxu0 %v1205
        %2021 = vmatprep.subr.mxu0 0.0
        %2022 = vmatpush1.msra.mxu0 %v1206
        %2023 = vmatprep.subr.mxu0 0.0
        %2024 = vmatpush1.msra.mxu0 %v1207
        %2025 = vmatprep.subr.mxu0 0.0
        %2026 = vmatpush1.msra.mxu0 %v1208
        %2027 = vmatprep.subr.mxu0 0.0
        %2028 = vmatpush1.msra.mxu0 %v1209
        %2029 = vmatprep.subr.mxu0 0.0
        %2030 = vmatpush1.msra.mxu0 %v1210
        %2031 = vmatprep.subr.mxu0 0.0
        %2032 = vmatpush1.msra.mxu0 %v1211
        %2033 = vmatprep.subr.mxu0 0.0
        %2034 = vmatpush1.msra.mxu0 %v1212
        %2035 = vmatprep.subr.mxu0 0.0
        %2036 = vmatpush1.msra.mxu0 %v1213
        %2037 = vmatprep.subr.mxu0 0.0
        %2038 = vmatpush1.msra.mxu0 %v1214
        %2039 = vmatprep.subr.mxu0 0.0
        %2040 = vmatpush1.msra.mxu0 %v1215
        %2041 = vmatprep.mubr.f32.mxu0 %v594
        %2042 = vmatmul.mubr.f32.gmra.mrb[0].mxu0 %v593
        %v2043 = vpop.f32.mrb[0].mxu0
        %v2044 = vadd.f32 %v1974, %v2043
        %v2045 = vpop.f32.mrb[0].mxu0
        %2046 = vdwg.mxu0
        %2047 = vmatprep.subr.mxu0 0.0
        %2048 = vmatpush1.msra.mxu0 %v1216
        %2049 = vmatprep.subr.mxu0 0.0
        %2050 = vmatpush1.msra.mxu0 %v1217
        %2051 = vmatprep.subr.mxu0 0.0
        %2052 = vmatpush1.msra.mxu0 %v1218
        %2053 = vmatprep.subr.mxu0 0.0
        %2054 = vmatpush1.msra.mxu0 %v1219
        %2055 = vmatprep.subr.mxu0 0.0
        %2056 = vmatpush1.msra.mxu0 %v1220
        %2057 = vmatprep.subr.mxu0 0.0
        %2058 = vmatpush1.msra.mxu0 %v1221
        %2059 = vmatprep.subr.mxu0 0.0
        %2060 = vmatpush1.msra.mxu0 %v1222
        %2061 = vmatprep.subr.mxu0 0.0
        %2062 = vmatpush1.msra.mxu0 %v1223
        %2063 = vmatprep.subr.mxu0 0.0
        %2064 = vmatpush1.msra.mxu0 %v1224
        %2065 = vmatprep.subr.mxu0 0.0
        %2066 = vmatpush1.msra.mxu0 %v1225
        %2067 = vmatprep.subr.mxu0 0.0
        %2068 = vmatpush1.msra.mxu0 %v1226
        %2069 = vmatprep.subr.mxu0 0.0
        %2070 = vmatpush1.msra.mxu0 %v1227
        %2071 = vmatprep.subr.mxu0 0.0
        %2072 = vmatpush1.msra.mxu0 %v1228
        %2073 = vmatprep.subr.mxu0 0.0
        %2074 = vmatpush1.msra.mxu0 %v1229
        %2075 = vmatprep.subr.mxu0 0.0
        %2076 = vmatpush1.msra.mxu0 %v1230
        %2077 = vmatprep.subr.mxu0 0.0
        %2078 = vmatpush1.msra.mxu0 %v1231
        %2079 = vmatprep.subr.mxu0 0.0
        %2080 = vmatpush1.msra.mxu0 %v1232
        %2081 = vmatprep.subr.mxu0 0.0
        %2082 = vmatpush1.msra.mxu0 %v1233
        %2083 = vmatprep.subr.mxu0 0.0
        %2084 = vmatpush1.msra.mxu0 %v1234
        %2085 = vmatprep.subr.mxu0 0.0
        %2086 = vmatpush1.msra.mxu0 %v1235
        %2087 = vmatprep.subr.mxu0 0.0
        %2088 = vmatpush1.msra.mxu0 %v1236
        %2089 = vmatprep.subr.mxu0 0.0
        %2090 = vmatpush1.msra.mxu0 %v1237
        %2091 = vmatprep.subr.mxu0 0.0
        %2092 = vmatpush1.msra.mxu0 %v1238
        %2093 = vmatprep.subr.mxu0 0.0
        %2094 = vmatpush1.msra.mxu0 %v1239
        %2095 = vmatprep.subr.mxu0 0.0
        %2096 = vmatpush1.msra.mxu0 %v1240
        %2097 = vmatprep.subr.mxu0 0.0
        %2098 = vmatpush1.msra.mxu0 %v1241
        %2099 = vmatprep.subr.mxu0 0.0
        %2100 = vmatpush1.msra.mxu0 %v1242
        %2101 = vmatprep.subr.mxu0 0.0
        %2102 = vmatpush1.msra.mxu0 %v1243
        %2103 = vmatprep.subr.mxu0 0.0
        %2104 = vmatpush1.msra.mxu0 %v1244
        %2105 = vmatprep.subr.mxu0 0.0
        %2106 = vmatpush1.msra.mxu0 %v1245
        %2107 = vmatprep.subr.mxu0 0.0
        %2108 = vmatpush1.msra.mxu0 %v1246
        %2109 = vmatprep.subr.mxu0 0.0
        %2110 = vmatpush1.msra.mxu0 %v1247
        %2111 = vmatprep.mubr.f32.mxu0 %v772
        %2112 = vmatmul.mubr.f32.gmra.mrb[0].mxu0 %v771
        %v2113 = vpop.f32.mrb[0].mxu0
        %v2114 = vadd.f32 %v2044, %v2113
        %v2115 = vpop.f32.mrb[0].mxu0
        %2116 = vdwg.mxu0
        %2117 = vmatprep.subr.mxu0 0.0
        %2118 = vmatpush1.msra.mxu0 %v1248
        %2119 = vmatprep.subr.mxu0 0.0
        %2120 = vmatpush1.msra.mxu0 %v1249
        %2121 = vmatprep.subr.mxu0 0.0
        %2122 = vmatpush1.msra.mxu0 %v1250
        %2123 = vmatprep.subr.mxu0 0.0
        %2124 = vmatpush1.msra.mxu0 %v1251
        %2125 = vmatprep.subr.mxu0 0.0
        %2126 = vmatpush1.msra.mxu0 %v1252
        %2127 = vmatprep.subr.mxu0 0.0
        %2128 = vmatpush1.msra.mxu0 %v1253
        %2129 = vmatprep.subr.mxu0 0.0
        %2130 = vmatpush1.msra.mxu0 %v1254
        %2131 = vmatprep.subr.mxu0 0.0
        %2132 = vmatpush1.msra.mxu0 %v1255
        %2133 = vmatprep.subr.mxu0 0.0
        %2134 = vmatpush1.msra.mxu0 %v1256
        %2135 = vmatprep.subr.mxu0 0.0
        %2136 = vmatpush1.msra.mxu0 %v1257
        %2137 = vmatprep.subr.mxu0 0.0
        %2138 = vmatpush1.msra.mxu0 %v1258
        %2139 = vmatprep.subr.mxu0 0.0
        %2140 = vmatpush1.msra.mxu0 %v1259
        %2141 = vmatprep.subr.mxu0 0.0
        %2142 = vmatpush1.msra.mxu0 %v1260
        %2143 = vmatprep.subr.mxu0 0.0
        %2144 = vmatpush1.msra.mxu0 %v1261
        %2145 = vmatprep.subr.mxu0 0.0
        %2146 = vmatpush1.msra.mxu0 %v1262
        %2147 = vmatprep.subr.mxu0 0.0
        %2148 = vmatpush1.msra.mxu0 %v1263
        %2149 = vmatprep.subr.mxu0 0.0
        %2150 = vmatpush1.msra.mxu0 %v1264
        %2151 = vmatprep.subr.mxu0 0.0
        %2152 = vmatpush1.msra.mxu0 %v1265
        %2153 = vmatprep.subr.mxu0 0.0
        %2154 = vmatpush1.msra.mxu0 %v1266
        %2155 = vmatprep.subr.mxu0 0.0
        %2156 = vmatpush1.msra.mxu0 %v1267
        %2157 = vmatprep.subr.mxu0 0.0
        %2158 = vmatpush1.msra.mxu0 %v1268
        %2159 = vmatprep.subr.mxu0 0.0
        %2160 = vmatpush1.msra.mxu0 %v1269
        %2161 = vmatprep.subr.mxu0 0.0
        %2162 = vmatpush1.msra.mxu0 %v1270
        %2163 = vmatprep.subr.mxu0 0.0
        %2164 = vmatpush1.msra.mxu0 %v1271
        %2165 = vmatprep.subr.mxu0 0.0
        %2166 = vmatpush1.msra.mxu0 %v1272
        %2167 = vmatprep.subr.mxu0 0.0
        %2168 = vmatpush1.msra.mxu0 %v1273
        %2169 = vmatprep.subr.mxu0 0.0
        %2170 = vmatpush1.msra.mxu0 %v1274
        %2171 = vmatprep.subr.mxu0 0.0
        %2172 = vmatpush1.msra.mxu0 %v1275
        %2173 = vmatprep.subr.mxu0 0.0
        %2174 = vmatpush1.msra.mxu0 %v1276
        %2175 = vmatprep.subr.mxu0 0.0
        %2176 = vmatpush1.msra.mxu0 %v1277
        %2177 = vmatprep.subr.mxu0 0.0
        %2178 = vmatpush1.msra.mxu0 %v1278
        %2179 = vmatprep.subr.mxu0 0.0
        %2180 = vmatpush1.msra.mxu0 %v1279
        %2181 = vmatprep.mubr.f32.mxu0 %v774
        %2182 = vmatmul.mubr.f32.gmra.mrb[0].mxu0 %v773
        %v2183 = vpop.f32.mrb[0].mxu0
        %v2184 = vadd.f32 %v2114, %v2183
        %v2185 = vpop.f32.mrb[0].mxu0
        %2186 = vdwg.mxu0
        %2187 = vmatprep.subr.mxu0 0.0
        %2188 = vmatpush1.msra.mxu0 %v1280
        %2189 = vmatprep.subr.mxu0 0.0
        %2190 = vmatpush1.msra.mxu0 %v1281
        %2191 = vmatprep.subr.mxu0 0.0
        %2192 = vmatpush1.msra.mxu0 %v1282
        %2193 = vmatprep.subr.mxu0 0.0
        %2194 = vmatpush1.msra.mxu0 %v1283
        %2195 = vmatprep.subr.mxu0 0.0
        %2196 = vmatpush1.msra.mxu0 %v1284
        %2197 = vmatprep.subr.mxu0 0.0
        %2198 = vmatpush1.msra.mxu0 %v1285
        %2199 = vmatprep.subr.mxu0 0.0
        %2200 = vmatpush1.msra.mxu0 %v1286
        %2201 = vmatprep.subr.mxu0 0.0
        %2202 = vmatpush1.msra.mxu0 %v1287
        %2203 = vmatprep.subr.mxu0 0.0
        %2204 = vmatpush1.msra.mxu0 %v1288
        %2205 = vmatprep.subr.mxu0 0.0
        %2206 = vmatpush1.msra.mxu0 %v1289
        %2207 = vmatprep.subr.mxu0 0.0
        %2208 = vmatpush1.msra.mxu0 %v1290
        %2209 = vmatprep.subr.mxu0 0.0
        %2210 = vmatpush1.msra.mxu0 %v1291
        %2211 = vmatprep.subr.mxu0 0.0
        %2212 = vmatpush1.msra.mxu0 %v1292
        %2213 = vmatprep.subr.mxu0 0.0
        %2214 = vmatpush1.msra.mxu0 %v1293
        %2215 = vmatprep.subr.mxu0 0.0
        %2216 = vmatpush1.msra.mxu0 %v1294
        %2217 = vmatprep.subr.mxu0 0.0
        %2218 = vmatpush1.msra.mxu0 %v1295
        %2219 = vmatprep.subr.mxu0 0.0
        %2220 = vmatpush1.msra.mxu0 %v1296
        %2221 = vmatprep.subr.mxu0 0.0
        %2222 = vmatpush1.msra.mxu0 %v1297
        %2223 = vmatprep.subr.mxu0 0.0
        %2224 = vmatpush1.msra.mxu0 %v1298
        %2225 = vmatprep.subr.mxu0 0.0
        %2226 = vmatpush1.msra.mxu0 %v1299
        %2227 = vmatprep.subr.mxu0 0.0
        %2228 = vmatpush1.msra.mxu0 %v1300
        %2229 = vmatprep.subr.mxu0 0.0
        %2230 = vmatpush1.msra.mxu0 %v1301
        %2231 = vmatprep.subr.mxu0 0.0
        %2232 = vmatpush1.msra.mxu0 %v1302
        %2233 = vmatprep.subr.mxu0 0.0
        %2234 = vmatpush1.msra.mxu0 %v1303
        %2235 = vmatprep.subr.mxu0 0.0
        %2236 = vmatpush1.msra.mxu0 %v1304
        %2237 = vmatprep.subr.mxu0 0.0
        %2238 = vmatpush1.msra.mxu0 %v1305
        %2239 = vmatprep.subr.mxu0 0.0
        %2240 = vmatpush1.msra.mxu0 %v1306
        %2241 = vmatprep.subr.mxu0 0.0
        %2242 = vmatpush1.msra.mxu0 %v1307
        %2243 = vmatprep.subr.mxu0 0.0
        %2244 = vmatpush1.msra.mxu0 %v1308
        %2245 = vmatprep.subr.mxu0 0.0
        %2246 = vmatpush1.msra.mxu0 %v1309
        %2247 = vmatprep.subr.mxu0 0.0
        %2248 = vmatpush1.msra.mxu0 %v1310
        %2249 = vmatprep.subr.mxu0 0.0
        %2250 = vmatpush1.msra.mxu0 %v1311
        %2251 = vmatprep.mubr.f32.mxu0 %v776
        %2252 = vmatmul.mubr.f32.gmra.mrb[0].mxu0 %v775
        %v2253 = vpop.f32.mrb[0].mxu0
        %v2254 = vadd.f32 %v2184, %v2253
        %v2255 = vpop.f32.mrb[0].mxu0
        %2256 = vdwg.mxu0
        %2257 = vmatprep.subr.mxu0 0.0
        %2258 = vmatpush1.msra.mxu0 %v1312
        %2259 = vmatprep.subr.mxu0 0.0
        %2260 = vmatpush1.msra.mxu0 %v1313
        %2261 = vmatprep.subr.mxu0 0.0
        %2262 = vmatpush1.msra.mxu0 %v1314
        %2263 = vmatprep.subr.mxu0 0.0
        %2264 = vmatpush1.msra.mxu0 %v1315
        %2265 = vmatprep.subr.mxu0 0.0
        %2266 = vmatpush1.msra.mxu0 %v1316
        %2267 = vmatprep.subr.mxu0 0.0
        %2268 = vmatpush1.msra.mxu0 %v1317
        %2269 = vmatprep.subr.mxu0 0.0
        %2270 = vmatpush1.msra.mxu0 %v1318
        %2271 = vmatprep.subr.mxu0 0.0
        %2272 = vmatpush1.msra.mxu0 %v1319
        %2273 = vmatprep.subr.mxu0 0.0
        %2274 = vmatpush1.msra.mxu0 %v1320
        %2275 = vmatprep.subr.mxu0 0.0
        %2276 = vmatpush1.msra.mxu0 %v1321
        %2277 = vmatprep.subr.mxu0 0.0
        %2278 = vmatpush1.msra.mxu0 %v1322
        %2279 = vmatprep.subr.mxu0 0.0
        %2280 = vmatpush1.msra.mxu0 %v1323
        %2281 = vmatprep.subr.mxu0 0.0
        %2282 = vmatpush1.msra.mxu0 %v1324
        %2283 = vmatprep.subr.mxu0 0.0
        %2284 = vmatpush1.msra.mxu0 %v1325
        %2285 = vmatprep.subr.mxu0 0.0
        %2286 = vmatpush1.msra.mxu0 %v1326
        %2287 = vmatprep.subr.mxu0 0.0
        %2288 = vmatpush1.msra.mxu0 %v1327
        %2289 = vmatprep.subr.mxu0 0.0
        %2290 = vmatpush1.msra.mxu0 %v1328
        %2291 = vmatprep.subr.mxu0 0.0
        %2292 = vmatpush1.msra.mxu0 %v1329
        %2293 = vmatprep.subr.mxu0 0.0
        %2294 = vmatpush1.msra.mxu0 %v1330
        %2295 = vmatprep.subr.mxu0 0.0
        %2296 = vmatpush1.msra.mxu0 %v1331
        %2297 = vmatprep.subr.mxu0 0.0
        %2298 = vmatpush1.msra.mxu0 %v1332
        %2299 = vmatprep.subr.mxu0 0.0
        %2300 = vmatpush1.msra.mxu0 %v1333
        %2301 = vmatprep.subr.mxu0 0.0
        %2302 = vmatpush1.msra.mxu0 %v1334
        %2303 = vmatprep.subr.mxu0 0.0
        %2304 = vmatpush1.msra.mxu0 %v1335
        %2305 = vmatprep.subr.mxu0 0.0
        %2306 = vmatpush1.msra.mxu0 %v1336
        %2307 = vmatprep.subr.mxu0 0.0
        %2308 = vmatpush1.msra.mxu0 %v1337
        %2309 = vmatprep.subr.mxu0 0.0
        %2310 = vmatpush1.msra.mxu0 %v1338
        %2311 = vmatprep.subr.mxu0 0.0
        %2312 = vmatpush1.msra.mxu0 %v1339
        %2313 = vmatprep.subr.mxu0 0.0
        %2314 = vmatpush1.msra.mxu0 %v1340
        %2315 = vmatprep.subr.mxu0 0.0
        %2316 = vmatpush1.msra.mxu0 %v1341
        %2317 = vmatprep.subr.mxu0 0.0
        %2318 = vmatpush1.msra.mxu0 %v1342
        %2319 = vmatprep.subr.mxu0 0.0
        %2320 = vmatpush1.msra.mxu0 %v1343
        %2321 = vmatprep.mubr.f32.mxu0 %v778
        %2322 = vmatmul.mubr.f32.gmra.mrb[0].mxu0 %v777
        %v2323 = vpop.f32.mrb[0].mxu0
        %v2324 = vadd.f32 %v2254, %v2323
        %v2325 = vpop.f32.mrb[0].mxu0
        %2326 = vdwg.mxu0
        %2327 = vmatprep.subr.mxu0 0.0
        %2328 = vmatpush1.msra.mxu0 %v1344
        %2329 = vmatprep.subr.mxu0 0.0
        %2330 = vmatpush1.msra.mxu0 %v1345
        %2331 = vmatprep.subr.mxu0 0.0
        %2332 = vmatpush1.msra.mxu0 %v1346
        %2333 = vmatprep.subr.mxu0 0.0
        %2334 = vmatpush1.msra.mxu0 %v1347
        %2335 = vmatprep.subr.mxu0 0.0
        %2336 = vmatpush1.msra.mxu0 %v1348
        %2337 = vmatprep.subr.mxu0 0.0
        %2338 = vmatpush1.msra.mxu0 %v1349
        %2339 = vmatprep.subr.mxu0 0.0
        %2340 = vmatpush1.msra.mxu0 %v1350
        %2341 = vmatprep.subr.mxu0 0.0
        %2342 = vmatpush1.msra.mxu0 %v1351
        %2343 = vmatprep.subr.mxu0 0.0
        %2344 = vmatpush1.msra.mxu0 %v1352
        %2345 = vmatprep.subr.mxu0 0.0
        %2346 = vmatpush1.msra.mxu0 %v1353
        %2347 = vmatprep.subr.mxu0 0.0
        %2348 = vmatpush1.msra.mxu0 %v1354
        %2349 = vmatprep.subr.mxu0 0.0
        %2350 = vmatpush1.msra.mxu0 %v1355
        %2351 = vmatprep.subr.mxu0 0.0
        %2352 = vmatpush1.msra.mxu0 %v1356
        %2353 = vmatprep.subr.mxu0 0.0
        %2354 = vmatpush1.msra.mxu0 %v1357
        %2355 = vmatprep.subr.mxu0 0.0
        %2356 = vmatpush1.msra.mxu0 %v1358
        %2357 = vmatprep.subr.mxu0 0.0
        %2358 = vmatpush1.msra.mxu0 %v1359
        %2359 = vmatprep.subr.mxu0 0.0
        %2360 = vmatpush1.msra.mxu0 %v1360
        %2361 = vmatprep.subr.mxu0 0.0
        %2362 = vmatpush1.msra.mxu0 %v1361
        %2363 = vmatprep.subr.mxu0 0.0
        %2364 = vmatpush1.msra.mxu0 %v1362
        %2365 = vmatprep.subr.mxu0 0.0
        %2366 = vmatpush1.msra.mxu0 %v1363
        %2367 = vmatprep.subr.mxu0 0.0
        %2368 = vmatpush1.msra.mxu0 %v1364
        %2369 = vmatprep.subr.mxu0 0.0
        %2370 = vmatpush1.msra.mxu0 %v1365
        %2371 = vmatprep.subr.mxu0 0.0
        %2372 = vmatpush1.msra.mxu0 %v1366
        %2373 = vmatprep.subr.mxu0 0.0
        %2374 = vmatpush1.msra.mxu0 %v1367
        %2375 = vmatprep.subr.mxu0 0.0
        %2376 = vmatpush1.msra.mxu0 %v1368
        %2377 = vmatprep.subr.mxu0 0.0
        %2378 = vmatpush1.msra.mxu0 %v1369
        %2379 = vmatprep.subr.mxu0 0.0
        %2380 = vmatpush1.msra.mxu0 %v1370
        %2381 = vmatprep.subr.mxu0 0.0
        %2382 = vmatpush1.msra.mxu0 %v1371
        %2383 = vmatprep.subr.mxu0 0.0
        %2384 = vmatpush1.msra.mxu0 %v1372
        %2385 = vmatprep.subr.mxu0 0.0
        %2386 = vmatpush1.msra.mxu0 %v1373
        %2387 = vmatprep.subr.mxu0 0.0
        %2388 = vmatpush1.msra.mxu0 %v1374
        %2389 = vmatprep.subr.mxu0 0.0
        %2390 = vmatpush1.msra.mxu0 %v1375
        %2391 = vmatprep.mubr.f32.mxu0 %v780
        %2392 = vmatmul.mubr.f32.gmra.mrb[0].mxu0 %v779
        %v2393 = vpop.f32.mrb[0].mxu0
        %v2394 = vadd.f32 %v2324, %v2393
        %v2395 = vpop.f32.mrb[0].mxu0
        %2396 = vdwg.mxu0
        %2397 = vmatprep.subr.mxu0 0.0
        %2398 = vmatpush1.msra.mxu0 %v1376
        %2399 = vmatprep.subr.mxu0 0.0
        %2400 = vmatpush1.msra.mxu0 %v1377
        %2401 = vmatprep.subr.mxu0 0.0
        %2402 = vmatpush1.msra.mxu0 %v1378
        %2403 = vmatprep.subr.mxu0 0.0
        %2404 = vmatpush1.msra.mxu0 %v1379
        %2405 = vmatprep.subr.mxu0 0.0
        %2406 = vmatpush1.msra.mxu0 %v1380
        %2407 = vmatprep.subr.mxu0 0.0
        %2408 = vmatpush1.msra.mxu0 %v1381
        %2409 = vmatprep.subr.mxu0 0.0
        %2410 = vmatpush1.msra.mxu0 %v1382
        %2411 = vmatprep.subr.mxu0 0.0
        %2412 = vmatpush1.msra.mxu0 %v1383
        %2413 = vmatprep.subr.mxu0 0.0
        %2414 = vmatpush1.msra.mxu0 %v1384
        %2415 = vmatprep.subr.mxu0 0.0
        %2416 = vmatpush1.msra.mxu0 %v1385
        %2417 = vmatprep.subr.mxu0 0.0
        %2418 = vmatpush1.msra.mxu0 %v1386
        %2419 = vmatprep.subr.mxu0 0.0
        %2420 = vmatpush1.msra.mxu0 %v1387
        %2421 = vmatprep.subr.mxu0 0.0
        %2422 = vmatpush1.msra.mxu0 %v1388
        %2423 = vmatprep.subr.mxu0 0.0
        %2424 = vmatpush1.msra.mxu0 %v1389
        %2425 = vmatprep.subr.mxu0 0.0
        %2426 = vmatpush1.msra.mxu0 %v1390
        %2427 = vmatprep.subr.mxu0 0.0
        %2428 = vmatpush1.msra.mxu0 %v1391
        %2429 = vmatprep.subr.mxu0 0.0
        %2430 = vmatpush1.msra.mxu0 %v1392
        %2431 = vmatprep.subr.mxu0 0.0
        %2432 = vmatpush1.msra.mxu0 %v1393
        %2433 = vmatprep.subr.mxu0 0.0
        %2434 = vmatpush1.msra.mxu0 %v1394
        %2435 = vmatprep.subr.mxu0 0.0
        %2436 = vmatpush1.msra.mxu0 %v1395
        %2437 = vmatprep.subr.mxu0 0.0
        %2438 = vmatpush1.msra.mxu0 %v1396
        %2439 = vmatprep.subr.mxu0 0.0
        %2440 = vmatpush1.msra.mxu0 %v1397
        %2441 = vmatprep.subr.mxu0 0.0
        %2442 = vmatpush1.msra.mxu0 %v1398
        %2443 = vmatprep.subr.mxu0 0.0
        %2444 = vmatpush1.msra.mxu0 %v1399
        %2445 = vmatprep.subr.mxu0 0.0
        %2446 = vmatpush1.msra.mxu0 %v1400
        %2447 = vmatprep.subr.mxu0 0.0
        %2448 = vmatpush1.msra.mxu0 %v1401
        %2449 = vmatprep.subr.mxu0 0.0
        %2450 = vmatpush1.msra.mxu0 %v1402
        %2451 = vmatprep.subr.mxu0 0.0
        %2452 = vmatpush1.msra.mxu0 %v1403
        %2453 = vmatprep.subr.mxu0 0.0
        %2454 = vmatpush1.msra.mxu0 %v1404
        %2455 = vmatprep.subr.mxu0 0.0
        %2456 = vmatpush1.msra.mxu0 %v1405
        %2457 = vmatprep.subr.mxu0 0.0
        %2458 = vmatpush1.msra.mxu0 %v1406
        %2459 = vmatprep.subr.mxu0 0.0
        %2460 = vmatpush1.msra.mxu0 %v1407
        %2461 = vmatprep.mubr.f32.mxu0 %v894
        %2462 = vmatmul.mubr.f32.gmra.mrb[0].mxu0 %v893
        %v2463 = vpop.f32.mrb[0].mxu0
        %v2464 = vadd.f32 %v2394, %v2463
        %v2465 = vpop.f32.mrb[0].mxu0
        %2466 = vdwg.mxu0
        %2467 = vmatprep.subr.mxu0 0.0
        %2468 = vmatpush1.msra.mxu0 %v1408
        %2469 = vmatprep.subr.mxu0 0.0
        %2470 = vmatpush1.msra.mxu0 %v1409
        %2471 = vmatprep.subr.mxu0 0.0
        %2472 = vmatpush1.msra.mxu0 %v1410
        %2473 = vmatprep.subr.mxu0 0.0
        %2474 = vmatpush1.msra.mxu0 %v1411
        %2475 = vmatprep.subr.mxu0 0.0
        %2476 = vmatpush1.msra.mxu0 %v1412
        %2477 = vmatprep.subr.mxu0 0.0
        %2478 = vmatpush1.msra.mxu0 %v1413
        %2479 = vmatprep.subr.mxu0 0.0
        %2480 = vmatpush1.msra.mxu0 %v1414
        %2481 = vmatprep.subr.mxu0 0.0
        %2482 = vmatpush1.msra.mxu0 %v1415
        %2483 = vmatprep.subr.mxu0 0.0
        %2484 = vmatpush1.msra.mxu0 %v1416
        %2485 = vmatprep.subr.mxu0 0.0
        %2486 = vmatpush1.msra.mxu0 %v1417
        %2487 = vmatprep.subr.mxu0 0.0
        %2488 = vmatpush1.msra.mxu0 %v1418
        %2489 = vmatprep.subr.mxu0 0.0
        %2490 = vmatpush1.msra.mxu0 %v1419
        %2491 = vmatprep.subr.mxu0 0.0
        %2492 = vmatpush1.msra.mxu0 %v1420
        %2493 = vmatprep.subr.mxu0 0.0
        %2494 = vmatpush1.msra.mxu0 %v1421
        %2495 = vmatprep.subr.mxu0 0.0
        %2496 = vmatpush1.msra.mxu0 %v1422
        %2497 = vmatprep.subr.mxu0 0.0
        %2498 = vmatpush1.msra.mxu0 %v1423
        %2499 = vmatprep.subr.mxu0 0.0
        %2500 = vmatpush1.msra.mxu0 %v1424
        %2501 = vmatprep.subr.mxu0 0.0
        %2502 = vmatpush1.msra.mxu0 %v1425
        %2503 = vmatprep.subr.mxu0 0.0
        %2504 = vmatpush1.msra.mxu0 %v1426
        %2505 = vmatprep.subr.mxu0 0.0
        %2506 = vmatpush1.msra.mxu0 %v1427
        %2507 = vmatprep.subr.mxu0 0.0
        %2508 = vmatpush1.msra.mxu0 %v1428
        %2509 = vmatprep.subr.mxu0 0.0
        %2510 = vmatpush1.msra.mxu0 %v1429
        %2511 = vmatprep.subr.mxu0 0.0
        %2512 = vmatpush1.msra.mxu0 %v1430
        %2513 = vmatprep.subr.mxu0 0.0
        %2514 = vmatpush1.msra.mxu0 %v1431
        %2515 = vmatprep.subr.mxu0 0.0
        %2516 = vmatpush1.msra.mxu0 %v1432
        %2517 = vmatprep.subr.mxu0 0.0
        %2518 = vmatpush1.msra.mxu0 %v1433
        %2519 = vmatprep.subr.mxu0 0.0
        %2520 = vmatpush1.msra.mxu0 %v1434
        %2521 = vmatprep.subr.mxu0 0.0
        %2522 = vmatpush1.msra.mxu0 %v1435
        %2523 = vmatprep.subr.mxu0 0.0
        %2524 = vmatpush1.msra.mxu0 %v1436
        %2525 = vmatprep.subr.mxu0 0.0
        %2526 = vmatpush1.msra.mxu0 %v1437
        %2527 = vmatprep.subr.mxu0 0.0
        %2528 = vmatpush1.msra.mxu0 %v1438
        %2529 = vmatprep.subr.mxu0 0.0
        %2530 = vmatpush1.msra.mxu0 %v1439
        %2531 = vmatprep.mubr.f32.mxu0 %v896
        %2532 = vmatmul.mubr.f32.gmra.mrb[0].mxu0 %v895
        %v2533 = vpop.f32.mrb[0].mxu0
        %v2534 = vadd.f32 %v2464, %v2533
        %v2535 = vpop.f32.mrb[0].mxu0
        %2536 = vdwg.mxu0
        %2537 = vmatprep.subr.mxu0 0.0
        %2538 = vmatpush1.msra.mxu0 %v1440
        %2539 = vmatprep.subr.mxu0 0.0
        %2540 = vmatpush1.msra.mxu0 %v1441
        %2541 = vmatprep.subr.mxu0 0.0
        %2542 = vmatpush1.msra.mxu0 %v1442
        %2543 = vmatprep.subr.mxu0 0.0
        %2544 = vmatpush1.msra.mxu0 %v1443
        %2545 = vmatprep.subr.mxu0 0.0
        %2546 = vmatpush1.msra.mxu0 %v1444
        %2547 = vmatprep.subr.mxu0 0.0
        %2548 = vmatpush1.msra.mxu0 %v1445
        %2549 = vmatprep.subr.mxu0 0.0
        %2550 = vmatpush1.msra.mxu0 %v1446
        %2551 = vmatprep.subr.mxu0 0.0
        %2552 = vmatpush1.msra.mxu0 %v1447
        %2553 = vmatprep.subr.mxu0 0.0
        %2554 = vmatpush1.msra.mxu0 %v1448
        %2555 = vmatprep.subr.mxu0 0.0
        %2556 = vmatpush1.msra.mxu0 %v1449
        %2557 = vmatprep.subr.mxu0 0.0
        %2558 = vmatpush1.msra.mxu0 %v1450
        %2559 = vmatprep.subr.mxu0 0.0
        %2560 = vmatpush1.msra.mxu0 %v1451
        %2561 = vmatprep.subr.mxu0 0.0
        %2562 = vmatpush1.msra.mxu0 %v1452
        %2563 = vmatprep.subr.mxu0 0.0
        %2564 = vmatpush1.msra.mxu0 %v1453
        %2565 = vmatprep.subr.mxu0 0.0
        %2566 = vmatpush1.msra.mxu0 %v1454
        %2567 = vmatprep.subr.mxu0 0.0
        %2568 = vmatpush1.msra.mxu0 %v1455
        %2569 = vmatprep.subr.mxu0 0.0
        %2570 = vmatpush1.msra.mxu0 %v1456
        %2571 = vmatprep.subr.mxu0 0.0
        %2572 = vmatpush1.msra.mxu0 %v1457
        %2573 = vmatprep.subr.mxu0 0.0
        %2574 = vmatpush1.msra.mxu0 %v1458
        %2575 = vmatprep.subr.mxu0 0.0
        %2576 = vmatpush1.msra.mxu0 %v1459
        %2577 = vmatprep.subr.mxu0 0.0
        %2578 = vmatpush1.msra.mxu0 %v1460
        %2579 = vmatprep.subr.mxu0 0.0
        %2580 = vmatpush1.msra.mxu0 %v1461
        %2581 = vmatprep.subr.mxu0 0.0
        %2582 = vmatpush1.msra.mxu0 %v1462
        %2583 = vmatprep.subr.mxu0 0.0
        %2584 = vmatpush1.msra.mxu0 %v1463
        %2585 = vmatprep.subr.mxu0 0.0
        %2586 = vmatpush1.msra.mxu0 %v1464
        %2587 = vmatprep.subr.mxu0 0.0
        %2588 = vmatpush1.msra.mxu0 %v1465
        %2589 = vmatprep.subr.mxu0 0.0
        %2590 = vmatpush1.msra.mxu0 %v1466
        %2591 = vmatprep.subr.mxu0 0.0
        %2592 = vmatpush1.msra.mxu0 %v1467
        %2593 = vmatprep.subr.mxu0 0.0
        %2594 = vmatpush1.msra.mxu0 %v1468
        %2595 = vmatprep.subr.mxu0 0.0
        %2596 = vmatpush1.msra.mxu0 %v1469
        %2597 = vmatprep.subr.mxu0 0.0
        %2598 = vmatpush1.msra.mxu0 %v1470
        %2599 = vmatprep.subr.mxu0 0.0
        %2600 = vmatpush1.msra.mxu0 %v1471
        %2601 = vmatprep.mubr.f32.mxu0 %v898
        %2602 = vmatmul.mubr.f32.gmra.mrb[0].mxu0 %v897
        %v2603 = vpop.f32.mrb[0].mxu0
        %v2604 = vadd.f32 %v2534, %v2603
        %v2605 = vpop.f32.mrb[0].mxu0
        %2606 = vdwg.mxu0
        %2607 = vmatprep.subr.mxu0 0.0
        %2608 = vmatpush1.msra.mxu0 %v1472
        %2609 = vmatprep.subr.mxu0 0.0
        %2610 = vmatpush1.msra.mxu0 %v1473
        %2611 = vmatprep.subr.mxu0 0.0
        %2612 = vmatpush1.msra.mxu0 %v1474
        %2613 = vmatprep.subr.mxu0 0.0
        %2614 = vmatpush1.msra.mxu0 %v1475
        %2615 = vmatprep.subr.mxu0 0.0
        %2616 = vmatpush1.msra.mxu0 %v1476
        %2617 = vmatprep.subr.mxu0 0.0
        %2618 = vmatpush1.msra.mxu0 %v1477
        %2619 = vmatprep.subr.mxu0 0.0
        %2620 = vmatpush1.msra.mxu0 %v1478
        %2621 = vmatprep.subr.mxu0 0.0
        %2622 = vmatpush1.msra.mxu0 %v1479
        %2623 = vmatprep.subr.mxu0 0.0
        %2624 = vmatpush1.msra.mxu0 %v1480
        %2625 = vmatprep.subr.mxu0 0.0
        %2626 = vmatpush1.msra.mxu0 %v1481
        %2627 = vmatprep.subr.mxu0 0.0
        %2628 = vmatpush1.msra.mxu0 %v1482
        %2629 = vmatprep.subr.mxu0 0.0
        %2630 = vmatpush1.msra.mxu0 %v1483
        %2631 = vmatprep.subr.mxu0 0.0
        %2632 = vmatpush1.msra.mxu0 %v1484
        %2633 = vmatprep.subr.mxu0 0.0
        %2634 = vmatpush1.msra.mxu0 %v1485
        %2635 = vmatprep.subr.mxu0 0.0
        %2636 = vmatpush1.msra.mxu0 %v1486
        %2637 = vmatprep.subr.mxu0 0.0
        %2638 = vmatpush1.msra.mxu0 %v1487
        %2639 = vmatprep.subr.mxu0 0.0
        %2640 = vmatpush1.msra.mxu0 %v1488
        %2641 = vmatprep.subr.mxu0 0.0
        %2642 = vmatpush1.msra.mxu0 %v1489
        %2643 = vmatprep.subr.mxu0 0.0
        %2644 = vmatpush1.msra.mxu0 %v1490
        %2645 = vmatprep.subr.mxu0 0.0
        %2646 = vmatpush1.msra.mxu0 %v1491
        %2647 = vmatprep.subr.mxu0 0.0
        %2648 = vmatpush1.msra.mxu0 %v1492
        %2649 = vmatprep.subr.mxu0 0.0
        %2650 = vmatpush1.msra.mxu0 %v1493
        %2651 = vmatprep.subr.mxu0 0.0
        %2652 = vmatpush1.msra.mxu0 %v1494
        %2653 = vmatprep.subr.mxu0 0.0
        %2654 = vmatpush1.msra.mxu0 %v1495
        %2655 = vmatprep.subr.mxu0 0.0
        %2656 = vmatpush1.msra.mxu0 %v1496
        %2657 = vmatprep.subr.mxu0 0.0
        %2658 = vmatpush1.msra.mxu0 %v1497
        %2659 = vmatprep.subr.mxu0 0.0
        %2660 = vmatpush1.msra.mxu0 %v1498
        %2661 = vmatprep.subr.mxu0 0.0
        %2662 = vmatpush1.msra.mxu0 %v1499
        %2663 = vmatprep.subr.mxu0 0.0
        %2664 = vmatpush1.msra.mxu0 %v1500
        %2665 = vmatprep.subr.mxu0 0.0
        %2666 = vmatpush1.msra.mxu0 %v1501
        %2667 = vmatprep.subr.mxu0 0.0
        %2668 = vmatpush1.msra.mxu0 %v1502
        %2669 = vmatprep.subr.mxu0 0.0
        %2670 = vmatpush1.msra.mxu0 %v1503
        %2671 = vmatprep.mubr.f32.mxu0 %v900
        %2672 = vmatmul.mubr.f32.gmra.mrb[0].mxu0 %v899
        %v2673 = vpop.f32.mrb[0].mxu0
        %v2674 = vadd.f32 %v2604, %v2673
        %v2675 = vpop.f32.mrb[0].mxu0
        %2676 = vdwg.mxu0
        %2677 = vmatprep.subr.mxu0 0.0
        %2678 = vmatpush1.msra.mxu0 %v1504
        %2679 = vmatprep.subr.mxu0 0.0
        %2680 = vmatpush1.msra.mxu0 %v1505
        %2681 = vmatprep.subr.mxu0 0.0
        %2682 = vmatpush1.msra.mxu0 %v1506
        %2683 = vmatprep.subr.mxu0 0.0
        %2684 = vmatpush1.msra.mxu0 %v1507
        %2685 = vmatprep.subr.mxu0 0.0
        %2686 = vmatpush1.msra.mxu0 %v1508
        %2687 = vmatprep.subr.mxu0 0.0
        %2688 = vmatpush1.msra.mxu0 %v1509
        %2689 = vmatprep.subr.mxu0 0.0
        %2690 = vmatpush1.msra.mxu0 %v1510
        %2691 = vmatprep.subr.mxu0 0.0
        %2692 = vmatpush1.msra.mxu0 %v1511
        %2693 = vmatprep.subr.mxu0 0.0
        %2694 = vmatpush1.msra.mxu0 %v1512
        %2695 = vmatprep.subr.mxu0 0.0
        %2696 = vmatpush1.msra.mxu0 %v1513
        %2697 = vmatprep.subr.mxu0 0.0
        %2698 = vmatpush1.msra.mxu0 %v1514
        %2699 = vmatprep.subr.mxu0 0.0
        %2700 = vmatpush1.msra.mxu0 %v1515
        %2701 = vmatprep.subr.mxu0 0.0
        %2702 = vmatpush1.msra.mxu0 %v1516
        %2703 = vmatprep.subr.mxu0 0.0
        %2704 = vmatpush1.msra.mxu0 %v1517
        %2705 = vmatprep.subr.mxu0 0.0
        %2706 = vmatpush1.msra.mxu0 %v1518
        %2707 = vmatprep.subr.mxu0 0.0
        %2708 = vmatpush1.msra.mxu0 %v1519
        %2709 = vmatprep.subr.mxu0 0.0
        %2710 = vmatpush1.msra.mxu0 %v1520
        %2711 = vmatprep.subr.mxu0 0.0
        %2712 = vmatpush1.msra.mxu0 %v1521
        %2713 = vmatprep.subr.mxu0 0.0
        %2714 = vmatpush1.msra.mxu0 %v1522
        %2715 = vmatprep.subr.mxu0 0.0
        %2716 = vmatpush1.msra.mxu0 %v1523
        %2717 = vmatprep.subr.mxu0 0.0
        %2718 = vmatpush1.msra.mxu0 %v1524
        %2719 = vmatprep.subr.mxu0 0.0
        %2720 = vmatpush1.msra.mxu0 %v1525
        %2721 = vmatprep.subr.mxu0 0.0
        %2722 = vmatpush1.msra.mxu0 %v1526
        %2723 = vmatprep.subr.mxu0 0.0
        %2724 = vmatpush1.msra.mxu0 %v1527
        %2725 = vmatprep.subr.mxu0 0.0
        %2726 = vmatpush1.msra.mxu0 %v1528
        %2727 = vmatprep.subr.mxu0 0.0
        %2728 = vmatpush1.msra.mxu0 %v1529
        %2729 = vmatprep.subr.mxu0 0.0
        %2730 = vmatpush1.msra.mxu0 %v1530
        %2731 = vmatprep.subr.mxu0 0.0
        %2732 = vmatpush1.msra.mxu0 %v1531
        %2733 = vmatprep.subr.mxu0 0.0
        %2734 = vmatpush1.msra.mxu0 %v1532
        %2735 = vmatprep.subr.mxu0 0.0
        %2736 = vmatpush1.msra.mxu0 %v1533
        %2737 = vmatprep.subr.mxu0 0.0
        %2738 = vmatpush1.msra.mxu0 %v1534
        %2739 = vmatprep.subr.mxu0 0.0
        %2740 = vmatpush1.msra.mxu0 %v1535
        %2741 = vmatprep.mubr.f32.mxu0 %v902
        %2742 = vmatmul.mubr.f32.gmra.mrb[0].mxu0 %v901
        %v2743 = vpop.f32.mrb[0].mxu0
        %v2744 = vadd.f32 %v2674, %v2743
        %v2745 = vpop.f32.mrb[0].mxu0
        %2746 = vdwg.mxu0
        %2747 = vmatprep.subr.mxu0 0.0
        %2748 = vmatpush1.msra.mxu0 %v1536
        %2749 = vmatprep.subr.mxu0 0.0
        %2750 = vmatpush1.msra.mxu0 %v1537
        %2751 = vmatprep.subr.mxu0 0.0
        %2752 = vmatpush1.msra.mxu0 %v1538
        %2753 = vmatprep.subr.mxu0 0.0
        %2754 = vmatpush1.msra.mxu0 %v1539
        %2755 = vmatprep.subr.mxu0 0.0
        %2756 = vmatpush1.msra.mxu0 %v1540
        %2757 = vmatprep.subr.mxu0 0.0
        %2758 = vmatpush1.msra.mxu0 %v1541
        %2759 = vmatprep.subr.mxu0 0.0
        %2760 = vmatpush1.msra.mxu0 %v1542
        %2761 = vmatprep.subr.mxu0 0.0
        %2762 = vmatpush1.msra.mxu0 %v1543
        %2763 = vmatprep.subr.mxu0 0.0
        %2764 = vmatpush1.msra.mxu0 %v1544
        %2765 = vmatprep.subr.mxu0 0.0
        %2766 = vmatpush1.msra.mxu0 %v1545
        %2767 = vmatprep.subr.mxu0 0.0
        %2768 = vmatpush1.msra.mxu0 %v1546
        %2769 = vmatprep.subr.mxu0 0.0
        %2770 = vmatpush1.msra.mxu0 %v1547
        %2771 = vmatprep.subr.mxu0 0.0
        %2772 = vmatpush1.msra.mxu0 %v1548
        %2773 = vmatprep.subr.mxu0 0.0
        %2774 = vmatpush1.msra.mxu0 %v1549
        %2775 = vmatprep.subr.mxu0 0.0
        %2776 = vmatpush1.msra.mxu0 %v1550
        %2777 = vmatprep.subr.mxu0 0.0
        %2778 = vmatpush1.msra.mxu0 %v1551
        %2779 = vmatprep.subr.mxu0 0.0
        %2780 = vmatpush1.msra.mxu0 %v1552
        %2781 = vmatprep.subr.mxu0 0.0
        %2782 = vmatpush1.msra.mxu0 %v1553
        %2783 = vmatprep.subr.mxu0 0.0
        %2784 = vmatpush1.msra.mxu0 %v1554
        %2785 = vmatprep.subr.mxu0 0.0
        %2786 = vmatpush1.msra.mxu0 %v1555
        %2787 = vmatprep.subr.mxu0 0.0
        %2788 = vmatpush1.msra.mxu0 %v1556
        %2789 = vmatprep.subr.mxu0 0.0
        %2790 = vmatpush1.msra.mxu0 %v1557
        %2791 = vmatprep.subr.mxu0 0.0
        %2792 = vmatpush1.msra.mxu0 %v1558
        %2793 = vmatprep.subr.mxu0 0.0
        %2794 = vmatpush1.msra.mxu0 %v1559
        %2795 = vmatprep.subr.mxu0 0.0
        %2796 = vmatpush1.msra.mxu0 %v1560
        %2797 = vmatprep.subr.mxu0 0.0
        %2798 = vmatpush1.msra.mxu0 %v1561
        %2799 = vmatprep.subr.mxu0 0.0
        %2800 = vmatpush1.msra.mxu0 %v1562
        %2801 = vmatprep.subr.mxu0 0.0
        %2802 = vmatpush1.msra.mxu0 %v1563
        %2803 = vmatprep.subr.mxu0 0.0
        %2804 = vmatpush1.msra.mxu0 %v1564
        %2805 = vmatprep.subr.mxu0 0.0
        %2806 = vmatpush1.msra.mxu0 %v1565
        %2807 = vmatprep.subr.mxu0 0.0
        %2808 = vmatpush1.msra.mxu0 %v1566
        %2809 = vmatprep.subr.mxu0 0.0
        %2810 = vmatpush1.msra.mxu0 %v1567
        %2811 = vmatprep.mubr.f32.mxu0 %v1047
        %2812 = vmatmul.mubr.f32.gmra.mrb[0].mxu0 %v1046
        %v2813 = vpop.f32.mrb[0].mxu0
        %v2814 = vadd.f32 %v2744, %v2813
        %v2815 = vpop.f32.mrb[0].mxu0
        %2816 = vdwg.mxu0
        %2817 = vmatprep.subr.mxu0 0.0
        %2818 = vmatpush1.msra.mxu0 %v1568
        %2819 = vmatprep.subr.mxu0 0.0
        %2820 = vmatpush1.msra.mxu0 %v1569
        %2821 = vmatprep.subr.mxu0 0.0
        %2822 = vmatpush1.msra.mxu0 %v1570
        %2823 = vmatprep.subr.mxu0 0.0
        %2824 = vmatpush1.msra.mxu0 %v1571
        %2825 = vmatprep.subr.mxu0 0.0
        %2826 = vmatpush1.msra.mxu0 %v1572
        %2827 = vmatprep.subr.mxu0 0.0
        %2828 = vmatpush1.msra.mxu0 %v1573
        %2829 = vmatprep.subr.mxu0 0.0
        %2830 = vmatpush1.msra.mxu0 %v1574
        %2831 = vmatprep.subr.mxu0 0.0
        %2832 = vmatpush1.msra.mxu0 %v1575
        %2833 = vmatprep.subr.mxu0 0.0
        %2834 = vmatpush1.msra.mxu0 %v1576
        %2835 = vmatprep.subr.mxu0 0.0
        %2836 = vmatpush1.msra.mxu0 %v1577
        %2837 = vmatprep.subr.mxu0 0.0
        %2838 = vmatpush1.msra.mxu0 %v1578
        %2839 = vmatprep.subr.mxu0 0.0
        %2840 = vmatpush1.msra.mxu0 %v1579
        %2841 = vmatprep.subr.mxu0 0.0
        %2842 = vmatpush1.msra.mxu0 %v1580
        %2843 = vmatprep.subr.mxu0 0.0
        %2844 = vmatpush1.msra.mxu0 %v1581
        %2845 = vmatprep.subr.mxu0 0.0
        %2846 = vmatpush1.msra.mxu0 %v1582
        %2847 = vmatprep.subr.mxu0 0.0
        %2848 = vmatpush1.msra.mxu0 %v1583
        %2849 = vmatprep.subr.mxu0 0.0
        %2850 = vmatpush1.msra.mxu0 %v1584
        %2851 = vmatprep.subr.mxu0 0.0
        %2852 = vmatpush1.msra.mxu0 %v1585
        %2853 = vmatprep.subr.mxu0 0.0
        %2854 = vmatpush1.msra.mxu0 %v1586
        %2855 = vmatprep.subr.mxu0 0.0
        %2856 = vmatpush1.msra.mxu0 %v1587
        %2857 = vmatprep.subr.mxu0 0.0
        %2858 = vmatpush1.msra.mxu0 %v1588
        %2859 = vmatprep.subr.mxu0 0.0
        %2860 = vmatpush1.msra.mxu0 %v1589
        %2861 = vmatprep.subr.mxu0 0.0
        %2862 = vmatpush1.msra.mxu0 %v1590
        %2863 = vmatprep.subr.mxu0 0.0
        %2864 = vmatpush1.msra.mxu0 %v1591
        %2865 = vmatprep.subr.mxu0 0.0
        %2866 = vmatpush1.msra.mxu0 %v1592
        %2867 = vmatprep.subr.mxu0 0.0
        %2868 = vmatpush1.msra.mxu0 %v1593
        %2869 = vmatprep.subr.mxu0 0.0
        %2870 = vmatpush1.msra.mxu0 %v1594
        %2871 = vmatprep.subr.mxu0 0.0
        %2872 = vmatpush1.msra.mxu0 %v1595
        %2873 = vmatprep.subr.mxu0 0.0
        %2874 = vmatpush1.msra.mxu0 %v1596
        %2875 = vmatprep.subr.mxu0 0.0
        %2876 = vmatpush1.msra.mxu0 %v1597
        %2877 = vmatprep.subr.mxu0 0.0
        %2878 = vmatpush1.msra.mxu0 %v1598
        %2879 = vmatprep.subr.mxu0 0.0
        %2880 = vmatpush1.msra.mxu0 %v1599
        %2881 = vmatprep.mubr.f32.mxu0 %v1049
        %2882 = vmatmul.mubr.f32.gmra.mrb[0].mxu0 %v1048
        %v2883 = vpop.f32.mrb[0].mxu0
        %v2884 = vadd.f32 %v2814, %v2883
        %v2885 = vpop.f32.mrb[0].mxu0
        %2886 = vdwg.mxu0
        %2887 = vmatprep.subr.mxu0 0.0
        %2888 = vmatpush1.msra.mxu0 %v1600
        %2889 = vmatprep.subr.mxu0 0.0
        %2890 = vmatpush1.msra.mxu0 %v1601
        %2891 = vmatprep.subr.mxu0 0.0
        %2892 = vmatpush1.msra.mxu0 %v1602
        %2893 = vmatprep.subr.mxu0 0.0
        %2894 = vmatpush1.msra.mxu0 %v1603
        %2895 = vmatprep.subr.mxu0 0.0
        %2896 = vmatpush1.msra.mxu0 %v1604
        %2897 = vmatprep.subr.mxu0 0.0
        %2898 = vmatpush1.msra.mxu0 %v1605
        %2899 = vmatprep.subr.mxu0 0.0
        %2900 = vmatpush1.msra.mxu0 %v1606
        %2901 = vmatprep.subr.mxu0 0.0
        %2902 = vmatpush1.msra.mxu0 %v1607
        %2903 = vmatprep.subr.mxu0 0.0
        %2904 = vmatpush1.msra.mxu0 %v1608
        %2905 = vmatprep.subr.mxu0 0.0
        %2906 = vmatpush1.msra.mxu0 %v1609
        %2907 = vmatprep.subr.mxu0 0.0
        %2908 = vmatpush1.msra.mxu0 %v1610
        %2909 = vmatprep.subr.mxu0 0.0
        %2910 = vmatpush1.msra.mxu0 %v1611
        %2911 = vmatprep.subr.mxu0 0.0
        %2912 = vmatpush1.msra.mxu0 %v1612
        %2913 = vmatprep.subr.mxu0 0.0
        %2914 = vmatpush1.msra.mxu0 %v1613
        %2915 = vmatprep.subr.mxu0 0.0
        %2916 = vmatpush1.msra.mxu0 %v1614
        %2917 = vmatprep.subr.mxu0 0.0
        %2918 = vmatpush1.msra.mxu0 %v1615
        %2919 = vmatprep.subr.mxu0 0.0
        %2920 = vmatpush1.msra.mxu0 %v1616
        %2921 = vmatprep.subr.mxu0 0.0
        %2922 = vmatpush1.msra.mxu0 %v1617
        %2923 = vmatprep.subr.mxu0 0.0
        %2924 = vmatpush1.msra.mxu0 %v1618
        %2925 = vmatprep.subr.mxu0 0.0
        %2926 = vmatpush1.msra.mxu0 %v1619
        %2927 = vmatprep.subr.mxu0 0.0
        %2928 = vmatpush1.msra.mxu0 %v1620
        %2929 = vmatprep.subr.mxu0 0.0
        %2930 = vmatpush1.msra.mxu0 %v1621
        %2931 = vmatprep.subr.mxu0 0.0
        %2932 = vmatpush1.msra.mxu0 %v1622
        %2933 = vmatprep.subr.mxu0 0.0
        %2934 = vmatpush1.msra.mxu0 %v1623
        %2935 = vmatprep.subr.mxu0 0.0
        %2936 = vmatpush1.msra.mxu0 %v1624
        %2937 = vmatprep.subr.mxu0 0.0
        %2938 = vmatpush1.msra.mxu0 %v1625
        %2939 = vmatprep.subr.mxu0 0.0
        %2940 = vmatpush1.msra.mxu0 %v1626
        %2941 = vmatprep.subr.mxu0 0.0
        %2942 = vmatpush1.msra.mxu0 %v1627
        %2943 = vmatprep.subr.mxu0 0.0
        %2944 = vmatpush1.msra.mxu0 %v1628
        %2945 = vmatprep.subr.mxu0 0.0
        %2946 = vmatpush1.msra.mxu0 %v1629
        %2947 = vmatprep.subr.mxu0 0.0
        %2948 = vmatpush1.msra.mxu0 %v1630
        %2949 = vmatprep.subr.mxu0 0.0
        %2950 = vmatpush1.msra.mxu0 %v1631
        %2951 = vmatprep.mubr.f32.mxu0 %v1051
        %2952 = vmatmul.mubr.f32.gmra.mrb[0].mxu0 %v1050
        %v2953 = vpop.f32.mrb[0].mxu0
        %v2954 = vadd.f32 %v2884, %v2953
        %v2955 = vpop.f32.mrb[0].mxu0
        %2956 = vdwg.mxu0
        %2957 = vmatprep.subr.mxu0 0.0
        %2958 = vmatpush1.msra.mxu0 %v1632
        %2959 = vmatprep.subr.mxu0 0.0
        %2960 = vmatpush1.msra.mxu0 %v1633
        %2961 = vmatprep.subr.mxu0 0.0
        %2962 = vmatpush1.msra.mxu0 %v1634
        %2963 = vmatprep.subr.mxu0 0.0
        %2964 = vmatpush1.msra.mxu0 %v1635
        %2965 = vmatprep.subr.mxu0 0.0
        %2966 = vmatpush1.msra.mxu0 %v1636
        %2967 = vmatprep.subr.mxu0 0.0
        %2968 = vmatpush1.msra.mxu0 %v1637
        %2969 = vmatprep.subr.mxu0 0.0
        %2970 = vmatpush1.msra.mxu0 %v1638
        %2971 = vmatprep.subr.mxu0 0.0
        %2972 = vmatpush1.msra.mxu0 %v1639
        %2973 = vmatprep.subr.mxu0 0.0
        %2974 = vmatpush1.msra.mxu0 %v1640
        %2975 = vmatprep.subr.mxu0 0.0
        %2976 = vmatpush1.msra.mxu0 %v1641
        %2977 = vmatprep.subr.mxu0 0.0
        %2978 = vmatpush1.msra.mxu0 %v1642
        %2979 = vmatprep.subr.mxu0 0.0
        %2980 = vmatpush1.msra.mxu0 %v1643
        %2981 = vmatprep.subr.mxu0 0.0
        %2982 = vmatpush1.msra.mxu0 %v1644
        %2983 = vmatprep.subr.mxu0 0.0
        %2984 = vmatpush1.msra.mxu0 %v1645
        %2985 = vmatprep.subr.mxu0 0.0
        %2986 = vmatpush1.msra.mxu0 %v1646
        %2987 = vmatprep.subr.mxu0 0.0
        %2988 = vmatpush1.msra.mxu0 %v1647
        %2989 = vmatprep.subr.mxu0 0.0
        %2990 = vmatpush1.msra.mxu0 %v1648
        %2991 = vmatprep.subr.mxu0 0.0
        %2992 = vmatpush1.msra.mxu0 %v1649
        %2993 = vmatprep.subr.mxu0 0.0
        %2994 = vmatpush1.msra.mxu0 %v1650
        %2995 = vmatprep.subr.mxu0 0.0
        %2996 = vmatpush1.msra.mxu0 %v1651
        %2997 = vmatprep.subr.mxu0 0.0
        %2998 = vmatpush1.msra.mxu0 %v1652
        %2999 = vmatprep.subr.mxu0 0.0
        %3000 = vmatpush1.msra.mxu0 %v1653
        %3001 = vmatprep.subr.mxu0 0.0
        %3002 = vmatpush1.msra.mxu0 %v1654
        %3003 = vmatprep.subr.mxu0 0.0
        %3004 = vmatpush1.msra.mxu0 %v1655
        %3005 = vmatprep.subr.mxu0 0.0
        %3006 = vmatpush1.msra.mxu0 %v1656
        %3007 = vmatprep.subr.mxu0 0.0
        %3008 = vmatpush1.msra.mxu0 %v1657
        %3009 = vmatprep.subr.mxu0 0.0
        %3010 = vmatpush1.msra.mxu0 %v1658
        %3011 = vmatprep.subr.mxu0 0.0
        %3012 = vmatpush1.msra.mxu0 %v1659
        %3013 = vmatprep.subr.mxu0 0.0
        %3014 = vmatpush1.msra.mxu0 %v1660
        %3015 = vmatprep.subr.mxu0 0.0
        %3016 = vmatpush1.msra.mxu0 %v1661
        %3017 = vmatprep.subr.mxu0 0.0
        %3018 = vmatpush1.msra.mxu0 %v1662
        %3019 = vmatprep.subr.mxu0 0.0
        %3020 = vmatpush1.msra.mxu0 %v1663
        %3021 = vmatprep.mubr.f32.mxu0 %v1053
        %3022 = vmatmul.mubr.f32.gmra.mrb[0].mxu0 %v1052
        %v3023 = vpop.f32.mrb[0].mxu0
        %v3024 = vadd.f32 %v2954, %v3023
        %v3025 = vpop.f32.mrb[0].mxu0
        %3026 = vdwg.mxu0
        %3027 = vmatprep.subr.mxu0 0.0
        %3028 = vmatpush1.msra.mxu0 %v1664
        %3029 = vmatprep.subr.mxu0 0.0
        %3030 = vmatpush1.msra.mxu0 %v1665
        %3031 = vmatprep.subr.mxu0 0.0
        %3032 = vmatpush1.msra.mxu0 %v1666
        %3033 = vmatprep.subr.mxu0 0.0
        %3034 = vmatpush1.msra.mxu0 %v1667
        %3035 = vmatprep.subr.mxu0 0.0
        %3036 = vmatpush1.msra.mxu0 %v1668
        %3037 = vmatprep.subr.mxu0 0.0
        %3038 = vmatpush1.msra.mxu0 %v1669
        %3039 = vmatprep.subr.mxu0 0.0
        %3040 = vmatpush1.msra.mxu0 %v1670
        %3041 = vmatprep.subr.mxu0 0.0
        %3042 = vmatpush1.msra.mxu0 %v1671
        %3043 = vmatprep.subr.mxu0 0.0
        %3044 = vmatpush1.msra.mxu0 %v1672
        %3045 = vmatprep.subr.mxu0 0.0
        %3046 = vmatpush1.msra.mxu0 %v1673
        %3047 = vmatprep.subr.mxu0 0.0
        %3048 = vmatpush1.msra.mxu0 %v1674
        %3049 = vmatprep.subr.mxu0 0.0
        %3050 = vmatpush1.msra.mxu0 %v1675
        %3051 = vmatprep.subr.mxu0 0.0
        %3052 = vmatpush1.msra.mxu0 %v1676
        %3053 = vmatprep.subr.mxu0 0.0
        %3054 = vmatpush1.msra.mxu0 %v1677
        %3055 = vmatprep.subr.mxu0 0.0
        %3056 = vmatpush1.msra.mxu0 %v1678
        %3057 = vmatprep.subr.mxu0 0.0
        %3058 = vmatpush1.msra.mxu0 %v1679
        %3059 = vmatprep.subr.mxu0 0.0
        %3060 = vmatpush1.msra.mxu0 %v1680
        %3061 = vmatprep.subr.mxu0 0.0
        %3062 = vmatpush1.msra.mxu0 %v1681
        %3063 = vmatprep.subr.mxu0 0.0
        %3064 = vmatpush1.msra.mxu0 %v1682
        %3065 = vmatprep.subr.mxu0 0.0
        %3066 = vmatpush1.msra.mxu0 %v1683
        %3067 = vmatprep.subr.mxu0 0.0
        %3068 = vmatpush1.msra.mxu0 %v1684
        %3069 = vmatprep.subr.mxu0 0.0
        %3070 = vmatpush1.msra.mxu0 %v1685
        %3071 = vmatprep.subr.mxu0 0.0
        %3072 = vmatpush1.msra.mxu0 %v1686
        %3073 = vmatprep.subr.mxu0 0.0
        %3074 = vmatpush1.msra.mxu0 %v1687
        %3075 = vmatprep.subr.mxu0 0.0
        %3076 = vmatpush1.msra.mxu0 %v1688
        %3077 = vmatprep.subr.mxu0 0.0
        %3078 = vmatpush1.msra.mxu0 %v1689
        %3079 = vmatprep.subr.mxu0 0.0
        %3080 = vmatpush1.msra.mxu0 %v1690
        %3081 = vmatprep.subr.mxu0 0.0
        %3082 = vmatpush1.msra.mxu0 %v1691
        %3083 = vmatprep.subr.mxu0 0.0
        %3084 = vmatpush1.msra.mxu0 %v1692
        %3085 = vmatprep.subr.mxu0 0.0
        %3086 = vmatpush1.msra.mxu0 %v1693
        %3087 = vmatprep.subr.mxu0 0.0
        %3088 = vmatpush1.msra.mxu0 %v1694
        %3089 = vmatprep.subr.mxu0 0.0
        %3090 = vmatpush1.msra.mxu0 %v1695
        %3091 = vmatprep.mubr.f32.mxu0 %v1055
        %3092 = vmatmul.mubr.f32.gmra.mrb[0].mxu0 %v1054
        %v3093 = vpop.f32.mrb[0].mxu0
        %v3094 = vadd.f32 %v3024, %v3093
        %v3095 = vpop.f32.mrb[0].mxu0
        %3096 = vdwg.mxu0
        %3097 = vst [vmem:[%s345] sm:$0x1] %v3094
        %s3098 = sand.u32 %s154, 1
        %s3099 = scalar_lea.sflag [#allocation4], %s3098
        %s3100 = sand.u32 %s154, 1
        %s3101 = scalar_lea.vmem [#allocation11], %s3100
        // Predicated region
        $region61: #{sspnet_classifier_forward.1} parent=39 // pred_check
          %p3102 = pneg %p164
        $region62: #{sspnet_classifier_forward.1} parent=39 // pred_check_branch
          %3104 = sbr.rel (%p3102) target = $region64
        $region63: #{sspnet_classifier_forward.1} parent=39 // pred_region
          %s3106 = ssub.s32 16, 16
          %3107 = vsyncadd %s3099, %s3106
          %s3108 = smul.addr %s26, 16
          %s3109 = scalar_lea.hbm %s5, %s3108
          %s3111 = sshll.u32 %s3101, 4
          %s3112 = int_to_ptr.vmem [resolvable:$true] %s3111
          %3114 = dma.vmem_to_hbm [thread:$0]  %s3112, 16, %s3109, %s3099
        $region64: #{sspnet_classifier_forward.1} parent=39 // pred_fallthru
          _
      $region40: #{sspnet_classifier_forward.1} parent=5 // pred_fallthru
        _
      %p3115 = scmp.le.s32.totalorder 2, %s21
      // Predicated region
      $region65: #{sspnet_classifier_forward.1} parent=5 // pred_check
        %p3116 = pneg %p3115
      $region66: #{sspnet_classifier_forward.1} parent=5 // pred_check_branch
        %3118 = sbr.rel (%p3116) target = $region68
      $region67: #{sspnet_classifier_forward.1} parent=5 // pred_region
        %s3119 = ssub.s32 %s21, 2
        // Predicated region
        $region69: #{sspnet_classifier_forward.1} parent=67 // pred_check
          %p3120 = pneg %p170
        $region70: #{sspnet_classifier_forward.1} parent=67 // pred_check_branch
          %3122 = sbr.rel (%p3120) target = $region72
        $region71: #{sspnet_classifier_forward.1} parent=67 // pred_region
          %s3123 = sand.u32 %s155, 1
          %s3124 = scalar_lea.sflag [#allocation4], %s3123
          %s3125 = sand.u32 %s155, 1
          %s3126 = scalar_lea.vmem [#allocation11], %s3125
          %3127 = dma.done %s3124, 16
        $region72: #{sspnet_classifier_forward.1} parent=67 // pred_fallthru
          _
      $region68: #{sspnet_classifier_forward.1} parent=5 // pred_fallthru
        _
    $region6: #{sspnet_classifier_forward.1} parent=1 // loop_footer
      %s25 = sadd.s32 1, %s21
    $region7: #{sspnet_classifier_forward.1} parent=1 // loop_footer_branch
      %20 = sbr.rel target = $region3
    $region8: #{sspnet_classifier_forward.1} parent=1 // loop_exit
      _
    %3128 = vsyncpa [#allocation3], 1
    %s3129 = scalar_lea.sflag [#allocation3], 1
    %3130 = vsyncpa %s3129, 1
    %3131 = vsyncpa [#allocation6], 1
    %s3132 = scalar_lea.sflag [#allocation6], 1
    %3133 = vsyncpa %s3132, 1
    %3134 = vsyncpa [#allocation9], 1
    %3135 = vsyncpa [#allocation4], 1
    %s3136 = scalar_lea.sflag [#allocation4], 1
    %3137 = vsyncpa %s3136, 1

</llo_original>
